<compile_context>
chip_gen: v7x
topology: tpu7x:2x2x1
jax: 0.10.0
libtpu: 0.0.40
codegen_flags: <defaults>
</compile_context>

<pallas_src>
import functools

import jax
import jax.numpy as jnp
from jax.experimental import pallas as pl
from jax.experimental.pallas import tpu as pltpu

_BF16 = jnp.bfloat16
_F32 = jnp.float32


def _silu(t):
    # t * sigmoid(t), written with exp/div only (robust Pallas lowering).
    return t / (1.0 + jnp.exp(-t))


# ----------------------------------------------------------------------------
# Fused kernel: edgenn + conv-layer stack + readout  (grid axis = layer index)
# ----------------------------------------------------------------------------
def _sbf_fused_kernel(
        # graph structure / features (constant blocks, fetched once per step)
        x_ref, ea_ref, sbf_ref, rbf_ref,
        src_ref, dst_ref, dstT_ref, boh_ref, bohT_ref, aoh_ref,
        invln_ref, invpool_ref, hm_ref,
        ew1_ref, eb1_ref, ew2_ref, eb2_ref,
        # per-layer weights (block index = layer)
        wqkv_ref, bqkv_ref, we2_ref, wsbf_ref, wrbf_ref, mw_ref, mb_ref,
        # readout weights (constant blocks)
        upw_ref, upb_ref, rrw_ref, rrb_ref, row_ref, rob_ref, ow_ref, ob_ref,
        # output
        o_ref,
        # scratch
        ea_scr, h_scr, cat_scr,
        *, channels, eps, readout_hidden):
    C = channels
    layer = pl.program_id(0)
    last = pl.num_programs(0) - 1

    @pl.when(layer == 0)
    def _init():
        # edgenn: Linear -> SiLU -> Linear, computed once, kept resident (bf16).
        t = jnp.dot(ea_ref[...], ew1_ref[...], preferred_element_type=_F32) + eb1_ref[...]
        t = _silu(t).astype(_BF16)
        ea_scr[...] = (jnp.dot(t, ew2_ref[...], preferred_element_type=_F32)
                       + eb2_ref[...]).astype(_BF16)
        # node activation carried across layers in VMEM scratch (f32 accum).
        h_scr[...] = x_ref[...].astype(_F32)

    x_in = h_scr[...]                       # [N, C] f32  (== out_res_0)
    x_bf = x_in.astype(_BF16)
    ea = ea_scr[...]                        # [E, emb] bf16

    # ---- SBFTransformerConv -------------------------------------------------
    # TODO(synk): original SBFTransformerConv source unavailable; PyG
    # TransformerConv-style edge attention with sbf attention bias and rbf gate.
    qkv = jnp.dot(x_bf, wqkv_ref[0], preferred_element_type=_F32) + bqkv_ref[0]   # [N, 3C]
    q_n = qkv[:, :C].astype(_BF16)                                                # [N, C]
    kv_n = qkv[:, C:].astype(_BF16)                                               # [N, 2C]
    e2 = jnp.dot(ea, we2_ref[0], preferred_element_type=_F32)                     # [E, 2C] (= [e|e])

    q = jnp.dot(dst_ref[...], q_n, preferred_element_type=_F32)                   # [E, C]
    kv = jnp.dot(src_ref[...], kv_n, preferred_element_type=_F32) + e2            # [E, 2C]
    k = kv[:, :C]
    v = kv[:, C:]

    # per-head logits, duplicated across each head's channels (lane-dense [E,C]);
    # the 1/sqrt(head_dim) scale is folded into hm_ref.
    qk = (q * k).astype(_BF16)
    logits = (jnp.dot(qk, hm_ref[...], preferred_element_type=_F32)
              + jnp.dot(sbf_ref[...], wsbf_ref[0], preferred_element_type=_F32))
    # TODO(synk): global per-column max (softmax shift-invariant); a
    # per-destination segment max would be more robust for large logit ranges.
    logits = logits - jnp.max(logits, axis=0, keepdims=True)
    p = jnp.exp(logits)                                                            # [E, C]

    # fused scatter: one [N,E]x[E,2C] matmul produces agg and denom together.
    cat_scr[:, :C] = p * v
    cat_scr[:, C:] = p
    agg_den = jnp.dot(dstT_ref[...], cat_scr[...].astype(_BF16),
                      preferred_element_type=_F32)                                 # [N, 2C]
    conv = agg_den[:, :C] / jnp.maximum(agg_den[:, C:], 1e-12)
    conv = conv * jnp.dot(rbf_ref[...], wrbf_ref[0], preferred_element_type=_F32)  # rbf gate

    # ---- graph-wise LayerNorm (affine=False), restructured stats ------------
    # TODO(synk): custom LayerNorm source unavailable; graph-mode semantics used.
    rs = jnp.sum(conv, axis=1, keepdims=True)                                      # [N, 1]
    rs2 = jnp.sum(conv * conv, axis=1, keepdims=True)                              # [N, 1]
    s1 = jnp.dot(boh_ref[...], rs, preferred_element_type=_F32)                    # [G, 1]
    s2 = jnp.dot(boh_ref[...], rs2, preferred_element_type=_F32)                   # [G, 1]
    mean = s1 * invln_ref[...]                       # invln = 1/(count*C), hoisted
    var = jnp.maximum(s2 * invln_ref[...] - mean * mean, 0.0)
    inv = jax.lax.rsqrt(var + eps)
    mean_n = jnp.dot(bohT_ref[...], mean, preferred_element_type=_F32)             # [N, 1]
    inv_n = jnp.dot(bohT_ref[...], inv, preferred_element_type=_F32)               # [N, 1]
    h = (conv - mean_n) * inv_n

    # ---- residual MLP tail ---------------------------------------------------
    # TODO(synk): ResidualLayer source unavailable; DimeNet form used.
    def res_layer(t, j):
        u = _silu(jnp.dot(t.astype(_BF16), mw_ref[0, j],
                          preferred_element_type=_F32) + mb_ref[0, j])
        u = _silu(jnp.dot(u.astype(_BF16), mw_ref[0, j + 1],
                          preferred_element_type=_F32) + mb_ref[0, j + 1])
        return t + u

    h = res_layer(h, 0)                                                    # bf_skip
    d = jnp.dot(h.astype(_BF16), mw_ref[0, 2], preferred_element_type=_F32) + mb_ref[0, 2]
    h = _silu(d) + x_in                                                    # AF(dense) + out_res_0
    h = res_layer(h, 3)                                                    # af_skip[0]
    h = res_layer(h, 5)                                                    # af_skip[1]

    h_scr[...] = h

    # ---- fused readout on the last layer --------------------------------------
    # TODO(synk): MolWise source unavailable; rbf folded in additively, mean pool.
    @pl.when(layer == last)
    def _readout():
        up = _silu(jnp.dot(h.astype(_BF16), upw_ref[...],
                           preferred_element_type=_F32) + upb_ref[...])     # AF(UpProjection)
        z = up + jnp.dot(rbf_ref[...], rrw_ref[...],
                         preferred_element_type=_F32) + rrb_ref[...]
        for dd in range(readout_hidden):
            z = _silu(jnp.dot(z.astype(_BF16), row_ref[dd],
                              preferred_element_type=_F32) + rob_ref[dd])
        y = jnp.dot(z.astype(_BF16), ow_ref[...],
                    preferred_element_type=_F32) + ob_ref[...]              # [N, 1]
        o_ref[...] = (jnp.dot(aoh_ref[...], y, preferred_element_type=_F32)
                      * invpool_ref[...])                                   # mean pool [G, 1]


# ----------------------------------------------------------------------------
# Parameters (glorot-style init; per-layer weights stacked on a leading axis)
# TODO(synk): Glorot_Ortho_ replaced by plain glorot normal init.
# ----------------------------------------------------------------------------
def init_params(key, conv_layers, emb, sbf_feat, rbf_dim, c, heads, readout_depth):
    assert readout_depth >= 2, "readout_depth must be >= 2 for this packing"
    L = conv_layers
    keys = iter(jax.random.split(key, 64))
    nk = lambda: next(keys)

    def glorot(shape):
        fan_in, fan_out = shape[-2], shape[-1]
        std = (2.0 / (fan_in + fan_out)) ** 0.5
        return jax.random.normal(nk(), shape, jnp.float32) * std

    z = lambda shape: jnp.zeros(shape, jnp.float32)
    return {
        "edgenn_w1": glorot((emb, emb)), "edgenn_b1": z((1, emb)),
        "edgenn_w2": glorot((emb, emb)), "edgenn_b2": z((1, emb)),
        # conv layers (stacked): qkv packed as [Wq | Wk | Wv]
        "conv_wqkv": glorot((L, c, 3 * c)),
        "conv_bqkv": z((L, 1, 3 * c)),
        "conv_we": glorot((L, emb, c)),
        "conv_wsbf": glorot((L, sbf_feat, heads)),
        "conv_wrbf": glorot((L, rbf_dim, c)),
        # mlp_w rows: bf.w1, bf.w2, dense_bf, af0.w1, af0.w2, af1.w1, af1.w2
        "mlp_w": glorot((L, 7, c, c)),
        "mlp_b": z((L, 7, 1, c)),
        # readout
        "up_w": glorot((c, 2 * c)), "up_b": z((1, 2 * c)),
        "ro_rbf_w": glorot((rbf_dim, 2 * c)), "ro_rbf_b": z((1, 2 * c)),
        "ro_w": glorot((readout_depth - 1, 2 * c, 2 * c)),
        "ro_b": z((readout_depth - 1, 1, 2 * c)),
        "ro_out_w": glorot((2 * c, 1)), "ro_out_b": z((1, 1)),
    }


# ----------------------------------------------------------------------------
# Forward pass (index glue in plain JAX; all heavy compute in ONE pallas_call)
# ----------------------------------------------------------------------------
def sbf_transformer_global_forward(params, data, edge_index_0, atom_batch, *,
                                   conv_layers, heads, readout_depth, num_graphs):
    # TODO(synk): edge_index_0 is consumed by MolWise in the reference; its role
    # is not recoverable from the snippet, so it is unused here.
    del edge_index_0

    x = data["x"]
    n, c = x.shape
    e, emb = data["edge_attr"].shape
    s = data["edge_sbf"].shape[1]
    r = data["node_rbf"].shape[1]
    head_dim = c // heads
    g = num_graphs                      # static Python int
    hidden = readout_depth - 1

    # gather/scatter operators as dense 0/1 bf16 matrices (exact in bf16).
    # TODO(synk): at production graph sizes replace with scalar-prefetched int32
    # indices (PrefetchScalarGridSpec) + edge tiling + segment reductions.
    src_oh = jax.nn.one_hot(data["edge_index"][0], n, dtype=_BF16)     # [E, N]
    dst_oh = jax.nn.one_hot(data["edge_index"][1], n, dtype=_BF16)     # [E, N]
    dstT_oh = dst_oh.T                                                 # [N, E]
    batch_ohT = jax.nn.one_hot(data["batch"], g, dtype=_F32)           # [N, G]
    batch_oh = batch_ohT.T                                             # [G, N]
    atom_oh = jax.nn.one_hot(atom_batch, g, dtype=_F32).T              # [G, N]

    # layer-invariant normalization constants (hoisted out of the layer loop;
    # guarded against empty graph slots).
    inv_cnt_ln = 1.0 / (jnp.maximum(jnp.sum(batch_oh, axis=1, keepdims=True), 1.0) * c)
    inv_cnt_pool = 1.0 / jnp.maximum(jnp.sum(atom_oh, axis=1, keepdims=True), 1.0)

    # per-head block-diagonal mixing matrix with 1/sqrt(head_dim) folded in.
    hm_scaled = (jnp.kron(jnp.eye(heads, dtype=_F32),
                          jnp.ones((head_dim, head_dim), _F32))
                 * (1.0 / (float(head_dim) ** 0.5))).astype(_BF16)     # [C, C]
    # per-head sbf attention weights expanded across each head's channels.
    wsbf_full = jnp.repeat(params["conv_wsbf"], head_dim, axis=2).astype(_BF16)  # [L,S,C]
    # edge projection duplicated so it adds to k and v in one shot.
    we2 = jnp.concatenate([params["conv_we"], params["conv_we"]],
                          axis=-1).astype(_BF16)                                  # [L,emb,2C]

    wbf = lambda name: params[name].astype(_BF16)

    const_ops = [
        x.astype(_BF16), data["edge_attr"].astype(_BF16),
        data["edge_sbf"].astype(_BF16), data["node_rbf"].astype(_BF16),
        src_oh, dst_oh, dstT_oh, batch_oh, batch_ohT, atom_oh,
        inv_cnt_ln, inv_cnt_pool, hm_scaled,
        wbf("edgenn_w1"), params["edgenn_b1"], wbf("edgenn_w2"), params["edgenn_b2"],
    ]
    layer_ops = [
        wbf("conv_wqkv"), params["conv_bqkv"], we2, wsbf_full, wbf("conv_wrbf"),
        wbf("mlp_w"), params["mlp_b"],
    ]
    tail_ops = [
        wbf("up_w"), params["up_b"], wbf("ro_rbf_w"), params["ro_rbf_b"],
        wbf("ro_w"), params["ro_b"], wbf("ro_out_w"), params["ro_out_b"],
    ]
    operands = const_ops + layer_ops + tail_ops

    def const(shape):
        nd = len(shape)
        return pl.BlockSpec(shape, lambda l, _nd=nd: (0,) * _nd)

    def per_layer(*tail):
        nd = len(tail)
        return pl.BlockSpec((1,) + tuple(tail), lambda l, _nd=nd: (l,) + (0,) * _nd)

    const_specs = [
        const((n, c)), const((e, emb)), const((e, s)), const((n, r)),
        const((e, n)), const((e, n)), const((n, e)),
        const((g, n)), const((n, g)), const((g, n)),
        const((g, 1)), const((g, 1)), const((c, c)),
        const((emb, emb)), const((1, emb)), const((emb, emb)), const((1, emb)),
    ]
    layer_specs = [
        per_layer(c, 3 * c), per_layer(1, 3 * c), per_layer(emb, 2 * c),
        per_layer(s, c), per_layer(r, c), per_layer(7, c, c), per_layer(7, 1, c),
    ]
    tail_specs = [
        const((c, 2 * c)), const((1, 2 * c)), const((r, 2 * c)), const((1, 2 * c)),
        const((hidden, 2 * c, 2 * c)), const((hidden, 1, 2 * c)),
        const((2 * c, 1)), const((1, 1)),
    ]
    in_specs = const_specs + layer_specs + tail_specs

    # explicit VMEM budget from the actual resident set (2x for pipelining),
    # capped at v7x's 64 MiB physical VMEM.
    def _nbytes(a):
        return int(a.size) * a.dtype.itemsize

    resident = (sum(_nbytes(a) for a in const_ops + tail_ops)
                + 2 * sum(_nbytes(a) // conv_layers for a in layer_ops))
    scratch_bytes = e * emb * 2 + n * c * 4 + e * 2 * c * 4
    est = 2 * resident + scratch_bytes + g * 4
    vmem_limit = int(min(max(est + (8 << 20), 32 << 20), 64 << 20))

    # TODO(synk): pipeline_mode=pl.Buffered(1) on constant blocks and a
    # "parallel" node/edge-tile grid axis (v7x second TensorCore) are further
    # wins at production graph sizes.
    pooled = pl.pallas_call(
        functools.partial(_sbf_fused_kernel, channels=c, eps=1e-8,
                          readout_hidden=hidden),
        grid=(conv_layers,),
        out_shape=jax.ShapeDtypeStruct((g, 1), jnp.float32),
        in_specs=in_specs,
        out_specs=pl.BlockSpec((g, 1), lambda l: (0, 0)),
        scratch_shapes=[
            pltpu.VMEM((e, emb), _BF16),           # edgenn output (resident, bf16)
            pltpu.VMEM((n, c), jnp.float32),       # node activations across layers
            pltpu.VMEM((e, 2 * c), jnp.float32),   # [p*v | p] staging for fused scatter
        ],
        compiler_params=pltpu.CompilerParams(
            dimension_semantics=("arbitrary",),
            vmem_limit_bytes=vmem_limit),
    )(*operands)

    return pooled.reshape(-1)   # results.view(-1) -> [num_graphs]


# ----------------------------------------------------------------------------
# Main
# ----------------------------------------------------------------------------
if __name__ == "__main__":
    CONV_LAYERS = 2
    EMB_SIZE = 32
    SBF_DIM = 4
    RBF_DIM = 8
    IN_CHANNELS = 32
    HEADS = 8
    READOUT_DEPTH = 3
    SBF_FEAT = SBF_DIM * RBF_DIM

    N_NODES, N_EDGES, N_GRAPHS = 16, 40, 2

    key = jax.random.PRNGKey(0)
    k_param, kx, kea, ksbf, krbf, ksrc, kdst = jax.random.split(key, 7)

    params = init_params(k_param, CONV_LAYERS, EMB_SIZE, SBF_FEAT, RBF_DIM,
                         IN_CHANNELS, HEADS, READOUT_DEPTH)

    batch = jnp.concatenate([jnp.zeros(N_NODES // 2, jnp.int32),
                             jnp.ones(N_NODES - N_NODES // 2, jnp.int32)])
    data = {
        "x": jax.random.normal(kx, (N_NODES, IN_CHANNELS), jnp.float32),
        "edge_attr": jax.random.normal(kea, (N_EDGES, EMB_SIZE), jnp.float32),
        "edge_sbf": jax.random.normal(ksbf, (N_EDGES, SBF_FEAT), jnp.float32),
        "node_rbf": jax.random.normal(krbf, (N_NODES, RBF_DIM), jnp.float32),
        "edge_index": jnp.stack([
            jax.random.randint(ksrc, (N_EDGES,), 0, N_NODES, jnp.int32),
            jax.random.randint(kdst, (N_EDGES,), 0, N_NODES, jnp.int32)]),
        "batch": batch,
    }
    atom_batch = batch
    edge_index_0 = data["edge_index"]   # unused by this implementation

    fwd = jax.jit(functools.partial(
        sbf_transformer_global_forward,
        conv_layers=CONV_LAYERS, heads=HEADS, readout_depth=READOUT_DEPTH,
        num_graphs=N_GRAPHS))

    result = fwd(params, data, edge_index_0, atom_batch)
    result = jax.block_until_ready(result)
    assert result.shape == (N_GRAPHS,)
    assert bool(jnp.all(jnp.isfinite(result)))
    print("KERNEL_OK")
</pallas_src>

<mosaic_0001>
module attributes {stable_mosaic.version = 11 : i64} {
  func.func @_sbf_fused_kernel(%arg0: i32, %arg1: memref<16x32xbf16, #tpu.memory_space<vmem>>, %arg2: memref<40x32xbf16, #tpu.memory_space<vmem>>, %arg3: memref<40x32xbf16, #tpu.memory_space<vmem>>, %arg4: memref<16x8xbf16, #tpu.memory_space<vmem>>, %arg5: memref<40x16xbf16, #tpu.memory_space<vmem>>, %arg6: memref<40x16xbf16, #tpu.memory_space<vmem>>, %arg7: memref<16x40xbf16, #tpu.memory_space<vmem>>, %arg8: memref<2x16xf32, #tpu.memory_space<vmem>>, %arg9: memref<16x2xf32, #tpu.memory_space<vmem>>, %arg10: memref<2x16xf32, #tpu.memory_space<vmem>>, %arg11: memref<2x1xf32, #tpu.memory_space<vmem>>, %arg12: memref<2x1xf32, #tpu.memory_space<vmem>>, %arg13: memref<32x32xbf16, #tpu.memory_space<vmem>>, %arg14: memref<32x32xbf16, #tpu.memory_space<vmem>>, %arg15: memref<1x32xf32, #tpu.memory_space<vmem>>, %arg16: memref<32x32xbf16, #tpu.memory_space<vmem>>, %arg17: memref<1x32xf32, #tpu.memory_space<vmem>>, %arg18: memref<1x32x96xbf16, #tpu.memory_space<vmem>>, %arg19: memref<1x1x96xf32, #tpu.memory_space<vmem>>, %arg20: memref<1x32x64xbf16, #tpu.memory_space<vmem>>, %arg21: memref<1x32x32xbf16, #tpu.memory_space<vmem>>, %arg22: memref<1x8x32xbf16, #tpu.memory_space<vmem>>, %arg23: memref<1x7x32x32xbf16, #tpu.memory_space<vmem>>, %arg24: memref<1x7x1x32xf32, #tpu.memory_space<vmem>>, %arg25: memref<32x64xbf16, #tpu.memory_space<vmem>>, %arg26: memref<1x64xf32, #tpu.memory_space<vmem>>, %arg27: memref<8x64xbf16, #tpu.memory_space<vmem>>, %arg28: memref<1x64xf32, #tpu.memory_space<vmem>>, %arg29: memref<2x64x64xbf16, #tpu.memory_space<vmem>>, %arg30: memref<2x1x64xf32, #tpu.memory_space<vmem>>, %arg31: memref<64x1xbf16, #tpu.memory_space<vmem>>, %arg32: memref<1x1xf32, #tpu.memory_space<vmem>>, %arg33: memref<2x1xf32, #tpu.memory_space<vmem>>, %arg34: memref<40x32xbf16, #tpu.memory_space<vmem>>, %arg35: memref<16x32xf32, #tpu.memory_space<vmem>>, %arg36: memref<40x64xf32, #tpu.memory_space<vmem>>) attributes {dimension_semantics = [#tpu.dimension_semantics<arbitrary>], iteration_bounds = array<i64: 2>, scalar_prefetch = 0 : i64, scratch_operands = 3 : i64, tpu.core_type = #tpu.core_type<tc>, window_params = [{pipeline_mode = #tpu.pipeline_mode<synchronous>, transform_indices = @transform_0, window_bounds = array<i64: 16, 32>}, {pipeline_mode = #tpu.pipeline_mode<synchronous>, transform_indices = @transform_1, window_bounds = array<i64: 40, 32>}, {pipeline_mode = #tpu.pipeline_mode<synchronous>, transform_indices = @transform_2, window_bounds = array<i64: 40, 32>}, {pipeline_mode = #tpu.pipeline_mode<synchronous>, transform_indices = @transform_3, window_bounds = array<i64: 16, 8>}, {pipeline_mode = #tpu.pipeline_mode<synchronous>, transform_indices = @transform_4, window_bounds = array<i64: 40, 16>}, {pipeline_mode = #tpu.pipeline_mode<synchronous>, transform_indices = @transform_5, window_bounds = array<i64: 40, 16>}, {pipeline_mode = #tpu.pipeline_mode<synchronous>, transform_indices = @transform_6, window_bounds = array<i64: 16, 40>}, {pipeline_mode = #tpu.pipeline_mode<synchronous>, transform_indices = @transform_7, window_bounds = array<i64: 2, 16>}, {pipeline_mode = #tpu.pipeline_mode<synchronous>, transform_indices = @transform_8, window_bounds = array<i64: 16, 2>}, {pipeline_mode = #tpu.pipeline_mode<synchronous>, transform_indices = @transform_9, window_bounds = array<i64: 2, 16>}, {pipeline_mode = #tpu.pipeline_mode<synchronous>, transform_indices = @transform_10, window_bounds = array<i64: 2, 1>}, {pipeline_mode = #tpu.pipeline_mode<synchronous>, transform_indices = @transform_11, window_bounds = array<i64: 2, 1>}, {pipeline_mode = #tpu.pipeline_mode<synchronous>, transform_indices = @transform_12, window_bounds = array<i64: 32, 32>}, {pipeline_mode = #tpu.pipeline_mode<synchronous>, transform_indices = @transform_13, window_bounds = array<i64: 32, 32>}, {pipeline_mode = #tpu.pipeline_mode<synchronous>, transform_indices = @transform_14, window_bounds = array<i64: 1, 32>}, {pipeline_mode = #tpu.pipeline_mode<synchronous>, transform_indices = @transform_15, window_bounds = array<i64: 32, 32>}, {pipeline_mode = #tpu.pipeline_mode<synchronous>, transform_indices = @transform_16, window_bounds = array<i64: 1, 32>}, {transform_indices = @transform_17, window_bounds = array<i64: 1, 32, 96>}, {transform_indices = @transform_18, window_bounds = array<i64: 1, 1, 96>}, {transform_indices = @transform_19, window_bounds = array<i64: 1, 32, 64>}, {transform_indices = @transform_20, window_bounds = array<i64: 1, 32, 32>}, {transform_indices = @transform_21, window_bounds = array<i64: 1, 8, 32>}, {transform_indices = @transform_22, window_bounds = array<i64: 1, 7, 32, 32>}, {transform_indices = @transform_23, window_bounds = array<i64: 1, 7, 1, 32>}, {pipeline_mode = #tpu.pipeline_mode<synchronous>, transform_indices = @transform_24, window_bounds = array<i64: 32, 64>}, {pipeline_mode = #tpu.pipeline_mode<synchronous>, transform_indices = @transform_25, window_bounds = array<i64: 1, 64>}, {pipeline_mode = #tpu.pipeline_mode<synchronous>, transform_indices = @transform_26, window_bounds = array<i64: 8, 64>}, {pipeline_mode = #tpu.pipeline_mode<synchronous>, transform_indices = @transform_27, window_bounds = array<i64: 1, 64>}, {pipeline_mode = #tpu.pipeline_mode<synchronous>, transform_indices = @transform_28, window_bounds = array<i64: 2, 64, 64>}, {pipeline_mode = #tpu.pipeline_mode<synchronous>, transform_indices = @transform_29, window_bounds = array<i64: 2, 1, 64>}, {pipeline_mode = #tpu.pipeline_mode<synchronous>, transform_indices = @transform_30, window_bounds = array<i64: 64, 1>}, {pipeline_mode = #tpu.pipeline_mode<synchronous>, transform_indices = @transform_31, window_bounds = array<i64: 1, 1>}, {pipeline_mode = #tpu.pipeline_mode<synchronous>, transform_indices = @transform_32, window_bounds = array<i64: 2, 1>}]} {
    %c0_i32 = arith.constant 0 : i32
    %0 = arith.cmpi eq, %arg0, %c0_i32 : i32
    %1 = arith.extui %0 : i1 to i32
    %c0_i32_0 = arith.constant 0 : i32
    %2 = arith.cmpi ne, %1, %c0_i32_0 : i32
    scf.if %2 {
      %c0_139 = arith.constant 0 : index
      %c0_140 = arith.constant 0 : index
      %192 = vector.load %arg2[%c0_139, %c0_140] : memref<40x32xbf16, #tpu.memory_space<vmem>>, vector<40x32xbf16>
      %c0_141 = arith.constant 0 : index
      %c0_142 = arith.constant 0 : index
      %193 = vector.load %arg14[%c0_141, %c0_142] : memref<32x32xbf16, #tpu.memory_space<vmem>>, vector<32x32xbf16>
      %cst_143 = arith.constant dense<0.000000e+00> : vector<40x32xf32>
      %194 = tpu.matmul %192, %193, %cst_143 {dimension_numbers = #tpu.dot_dimension_numbers<[1], [0], [0], [1], [0, 0, 1, 1], [], []>} : vector<40x32xbf16>, vector<32x32xbf16>, vector<40x32xf32> -> vector<40x32xf32>
      %c0_144 = arith.constant 0 : index
      %c0_145 = arith.constant 0 : index
      %195 = vector.load %arg15[%c0_144, %c0_145] : memref<1x32xf32, #tpu.memory_space<vmem>>, vector<1x32xf32>
      %196 = vector.broadcast %195 : vector<1x32xf32> to vector<40x32xf32>
      %197 = arith.addf %194, %196 : vector<40x32xf32>
      %cst_146 = arith.constant 0.000000e+00 : f32
      %198 = vector.broadcast %cst_146 : f32 to vector<40x32xf32>
      %199 = arith.subf %198, %197 : vector<40x32xf32>
      %200 = math.exp %199 : vector<40x32xf32>
      %cst_147 = arith.constant 1.000000e+00 : f32
      %201 = vector.broadcast %cst_147 : f32 to vector<40x32xf32>
      %202 = arith.addf %201, %200 : vector<40x32xf32>
      %203 = arith.divf %197, %202 : vector<40x32xf32>
      %204 = arith.truncf %203 : vector<40x32xf32> to vector<40x32xbf16>
      %c0_148 = arith.constant 0 : index
      %c0_149 = arith.constant 0 : index
      %205 = vector.load %arg16[%c0_148, %c0_149] : memref<32x32xbf16, #tpu.memory_space<vmem>>, vector<32x32xbf16>
      %cst_150 = arith.constant dense<0.000000e+00> : vector<40x32xf32>
      %206 = tpu.matmul %204, %205, %cst_150 {dimension_numbers = #tpu.dot_dimension_numbers<[1], [0], [0], [1], [0, 0, 1, 1], [], []>} : vector<40x32xbf16>, vector<32x32xbf16>, vector<40x32xf32> -> vector<40x32xf32>
      %c0_151 = arith.constant 0 : index
      %c0_152 = arith.constant 0 : index
      %207 = vector.load %arg17[%c0_151, %c0_152] : memref<1x32xf32, #tpu.memory_space<vmem>>, vector<1x32xf32>
      %208 = vector.broadcast %207 : vector<1x32xf32> to vector<40x32xf32>
      %209 = arith.addf %206, %208 : vector<40x32xf32>
      %210 = arith.truncf %209 : vector<40x32xf32> to vector<40x32xbf16>
      %c0_153 = arith.constant 0 : index
      %c0_154 = arith.constant 0 : index
      %211 = vector.load %arg34[%c0_153, %c0_154] : memref<40x32xbf16, #tpu.memory_space<vmem>>, vector<40x32xbf16>
      tpu.vector_store %arg34[%c0_153, %c0_154], %210 {strides = array<i32>} : memref<40x32xbf16, #tpu.memory_space<vmem>>, vector<40x32xbf16>,
      %c0_155 = arith.constant 0 : index
      %c0_156 = arith.constant 0 : index
      %212 = vector.load %arg1[%c0_155, %c0_156] : memref<16x32xbf16, #tpu.memory_space<vmem>>, vector<16x32xbf16>
      %213 = arith.extf %212 : vector<16x32xbf16> to vector<16x32xf32>
      %c0_157 = arith.constant 0 : index
      %c0_158 = arith.constant 0 : index
      %214 = vector.load %arg35[%c0_157, %c0_158] : memref<16x32xf32, #tpu.memory_space<vmem>>, vector<16x32xf32>
      tpu.vector_store %arg35[%c0_157, %c0_158], %213 {strides = array<i32>} : memref<16x32xf32, #tpu.memory_space<vmem>>, vector<16x32xf32>,
    } else {
    }
    %c0 = arith.constant 0 : index
    %c0_1 = arith.constant 0 : index
    %3 = vector.load %arg35[%c0, %c0_1] : memref<16x32xf32, #tpu.memory_space<vmem>>, vector<16x32xf32>
    %4 = arith.truncf %3 : vector<16x32xf32> to vector<16x32xbf16>
    %c0_2 = arith.constant 0 : index
    %c0_3 = arith.constant 0 : index
    %5 = vector.load %arg34[%c0_2, %c0_3] : memref<40x32xbf16, #tpu.memory_space<vmem>>, vector<40x32xbf16>
    %c0_4 = arith.constant 0 : index
    %c0_5 = arith.constant 0 : index
    %c0_6 = arith.constant 0 : index
    %6 = vector.load %arg18[%c0_4, %c0_5, %c0_6] : memref<1x32x96xbf16, #tpu.memory_space<vmem>>, vector<1x32x96xbf16>
    %7 = vector.shape_cast %6 : vector<1x32x96xbf16> to vector<32x96xbf16>
    %cst = arith.constant dense<0.000000e+00> : vector<16x96xf32>
    %8 = tpu.matmul %4, %7, %cst {dimension_numbers = #tpu.dot_dimension_numbers<[1], [0], [0], [1], [0, 0, 1, 1], [], []>} : vector<16x32xbf16>, vector<32x96xbf16>, vector<16x96xf32> -> vector<16x96xf32>
    %c0_7 = arith.constant 0 : index
    %c0_8 = arith.constant 0 : index
    %c0_9 = arith.constant 0 : index
    %9 = vector.load %arg19[%c0_7, %c0_8, %c0_9] : memref<1x1x96xf32, #tpu.memory_space<vmem>>, vector<1x1x96xf32>
    %10 = vector.shape_cast %9 : vector<1x1x96xf32> to vector<1x96xf32>
    %11 = vector.broadcast %10 : vector<1x96xf32> to vector<16x96xf32>
    %12 = arith.addf %8, %11 : vector<16x96xf32>
    %13 = vector.extract_strided_slice %12 {offsets = [0, 0], sizes = [16, 32], strides = [1, 1]} : vector<16x96xf32> to vector<16x32xf32>
    %14 = arith.truncf %13 : vector<16x32xf32> to vector<16x32xbf16>
    %15 = vector.extract_strided_slice %12 {offsets = [0, 32], sizes = [16, 64], strides = [1, 1]} : vector<16x96xf32> to vector<16x64xf32>
    %16 = arith.truncf %15 : vector<16x64xf32> to vector<16x64xbf16>
    %c0_10 = arith.constant 0 : index
    %c0_11 = arith.constant 0 : index
    %c0_12 = arith.constant 0 : index
    %17 = vector.load %arg20[%c0_10, %c0_11, %c0_12] : memref<1x32x64xbf16, #tpu.memory_space<vmem>>, vector<1x32x64xbf16>
    %18 = vector.shape_cast %17 : vector<1x32x64xbf16> to vector<32x64xbf16>
    %cst_13 = arith.constant dense<0.000000e+00> : vector<40x64xf32>
    %19 = tpu.matmul %5, %18, %cst_13 {dimension_numbers = #tpu.dot_dimension_numbers<[1], [0], [0], [1], [0, 0, 1, 1], [], []>} : vector<40x32xbf16>, vector<32x64xbf16>, vector<40x64xf32> -> vector<40x64xf32>
    %c0_14 = arith.constant 0 : index
    %c0_15 = arith.constant 0 : index
    %20 = vector.load %arg6[%c0_14, %c0_15] : memref<40x16xbf16, #tpu.memory_space<vmem>>, vector<40x16xbf16>
    %cst_16 = arith.constant dense<0.000000e+00> : vector<40x32xf32>
    %21 = tpu.matmul %20, %14, %cst_16 {dimension_numbers = #tpu.dot_dimension_numbers<[1], [0], [0], [1], [0, 0, 1, 1], [], []>} : vector<40x16xbf16>, vector<16x32xbf16>, vector<40x32xf32> -> vector<40x32xf32>
    %c0_17 = arith.constant 0 : index
    %c0_18 = arith.constant 0 : index
    %22 = vector.load %arg5[%c0_17, %c0_18] : memref<40x16xbf16, #tpu.memory_space<vmem>>, vector<40x16xbf16>
    %cst_19 = arith.constant dense<0.000000e+00> : vector<40x64xf32>
    %23 = tpu.matmul %22, %16, %cst_19 {dimension_numbers = #tpu.dot_dimension_numbers<[1], [0], [0], [1], [0, 0, 1, 1], [], []>} : vector<40x16xbf16>, vector<16x64xbf16>, vector<40x64xf32> -> vector<40x64xf32>
    %24 = arith.addf %23, %19 : vector<40x64xf32>
    %25 = vector.extract_strided_slice %24 {offsets = [0, 0], sizes = [40, 32], strides = [1, 1]} : vector<40x64xf32> to vector<40x32xf32>
    %26 = vector.extract_strided_slice %24 {offsets = [0, 32], sizes = [40, 32], strides = [1, 1]} : vector<40x64xf32> to vector<40x32xf32>
    %27 = arith.mulf %21, %25 : vector<40x32xf32>
    %28 = arith.truncf %27 : vector<40x32xf32> to vector<40x32xbf16>
    %c0_20 = arith.constant 0 : index
    %c0_21 = arith.constant 0 : index
    %29 = vector.load %arg13[%c0_20, %c0_21] : memref<32x32xbf16, #tpu.memory_space<vmem>>, vector<32x32xbf16>
    %cst_22 = arith.constant dense<0.000000e+00> : vector<40x32xf32>
    %30 = tpu.matmul %28, %29, %cst_22 {dimension_numbers = #tpu.dot_dimension_numbers<[1], [0], [0], [1], [0, 0, 1, 1], [], []>} : vector<40x32xbf16>, vector<32x32xbf16>, vector<40x32xf32> -> vector<40x32xf32>
    %c0_23 = arith.constant 0 : index
    %c0_24 = arith.constant 0 : index
    %31 = vector.load %arg3[%c0_23, %c0_24] : memref<40x32xbf16, #tpu.memory_space<vmem>>, vector<40x32xbf16>
    %c0_25 = arith.constant 0 : index
    %c0_26 = arith.constant 0 : index
    %c0_27 = arith.constant 0 : index
    %32 = vector.load %arg21[%c0_25, %c0_26, %c0_27] : memref<1x32x32xbf16, #tpu.memory_space<vmem>>, vector<1x32x32xbf16>
    %33 = vector.shape_cast %32 : vector<1x32x32xbf16> to vector<32x32xbf16>
    %cst_28 = arith.constant dense<0.000000e+00> : vector<40x32xf32>
    %34 = tpu.matmul %31, %33, %cst_28 {dimension_numbers = #tpu.dot_dimension_numbers<[1], [0], [0], [1], [0, 0, 1, 1], [], []>} : vector<40x32xbf16>, vector<32x32xbf16>, vector<40x32xf32> -> vector<40x32xf32>
    %35 = arith.addf %30, %34 : vector<40x32xf32>
    %cst_29 = arith.constant dense<0xFF800000> : vector<32xf32>
    %36 = vector.multi_reduction <maximumf>, %35, %cst_29 [0] : vector<40x32xf32> to vector<32xf32>
    %37 = vector.shape_cast %36 : vector<32xf32> to vector<1x32xf32>
    %38 = vector.broadcast %37 : vector<1x32xf32> to vector<40x32xf32>
    %39 = arith.subf %35, %38 : vector<40x32xf32>
    %40 = math.exp %39 : vector<40x32xf32>
    %41 = arith.mulf %40, %26 : vector<40x32xf32>
    %c0_30 = arith.constant 0 : index
    %c0_31 = arith.constant 0 : index
    %42 = vector.load %arg36[%c0_30, %c0_31] : memref<40x64xf32, #tpu.memory_space<vmem>>, vector<40x32xf32>
    tpu.vector_store %arg36[%c0_30, %c0_31], %41 {strides = array<i32>} : memref<40x64xf32, #tpu.memory_space<vmem>>, vector<40x32xf32>,
    %c0_32 = arith.constant 0 : index
    %c32 = arith.constant 32 : index
    %43 = vector.load %arg36[%c0_32, %c32] : memref<40x64xf32, #tpu.memory_space<vmem>>, vector<40x32xf32>
    tpu.vector_store %arg36[%c0_32, %c32], %40 {strides = array<i32>} : memref<40x64xf32, #tpu.memory_space<vmem>>, vector<40x32xf32>,
    %c0_33 = arith.constant 0 : index
    %c0_34 = arith.constant 0 : index
    %44 = vector.load %arg7[%c0_33, %c0_34] : memref<16x40xbf16, #tpu.memory_space<vmem>>, vector<16x40xbf16>
    %c0_35 = arith.constant 0 : index
    %c0_36 = arith.constant 0 : index
    %45 = vector.load %arg36[%c0_35, %c0_36] : memref<40x64xf32, #tpu.memory_space<vmem>>, vector<40x64xf32>
    %46 = arith.truncf %45 : vector<40x64xf32> to vector<40x64xbf16>
    %cst_37 = arith.constant dense<0.000000e+00> : vector<16x64xf32>
    %47 = tpu.matmul %44, %46, %cst_37 {dimension_numbers = #tpu.dot_dimension_numbers<[1], [0], [0], [1], [0, 0, 1, 1], [], []>} : vector<16x40xbf16>, vector<40x64xbf16>, vector<16x64xf32> -> vector<16x64xf32>
    %48 = vector.extract_strided_slice %47 {offsets = [0, 0], sizes = [16, 32], strides = [1, 1]} : vector<16x64xf32> to vector<16x32xf32>
    %49 = vector.extract_strided_slice %47 {offsets = [0, 32], sizes = [16, 32], strides = [1, 1]} : vector<16x64xf32> to vector<16x32xf32>
    %cst_38 = arith.constant 9.99999996E-13 : f32
    %50 = vector.broadcast %cst_38 : f32 to vector<16x32xf32>
    %51 = arith.maximumf %49, %50 : vector<16x32xf32>
    %52 = arith.divf %48, %51 : vector<16x32xf32>
    %c0_39 = arith.constant 0 : index
    %c0_40 = arith.constant 0 : index
    %53 = vector.load %arg4[%c0_39, %c0_40] : memref<16x8xbf16, #tpu.memory_space<vmem>>, vector<16x8xbf16>
    %c0_41 = arith.constant 0 : index
    %c0_42 = arith.constant 0 : index
    %c0_43 = arith.constant 0 : index
    %54 = vector.load %arg22[%c0_41, %c0_42, %c0_43] : memref<1x8x32xbf16, #tpu.memory_space<vmem>>, vector<1x8x32xbf16>
    %55 = vector.shape_cast %54 : vector<1x8x32xbf16> to vector<8x32xbf16>
    %cst_44 = arith.constant dense<0.000000e+00> : vector<16x32xf32>
    %56 = tpu.matmul %53, %55, %cst_44 {dimension_numbers = #tpu.dot_dimension_numbers<[1], [0], [0], [1], [0, 0, 1, 1], [], []>} : vector<16x8xbf16>, vector<8x32xbf16>, vector<16x32xf32> -> vector<16x32xf32>
    %57 = arith.mulf %52, %56 : vector<16x32xf32>
    %cst_45 = arith.constant dense<0.000000e+00> : vector<16xf32>
    %58 = vector.multi_reduction <add>, %57, %cst_45 [1] : vector<16x32xf32> to vector<16xf32>
    %59 = vector.shape_cast %58 : vector<16xf32> to vector<16x1xf32>
    %60 = arith.mulf %57, %57 : vector<16x32xf32>
    %cst_46 = arith.constant dense<0.000000e+00> : vector<16xf32>
    %61 = vector.multi_reduction <add>, %60, %cst_46 [1] : vector<16x32xf32> to vector<16xf32>
    %62 = vector.shape_cast %61 : vector<16xf32> to vector<16x1xf32>
    %c0_47 = arith.constant 0 : index
    %c0_48 = arith.constant 0 : index
    %63 = vector.load %arg8[%c0_47, %c0_48] : memref<2x16xf32, #tpu.memory_space<vmem>>, vector<2x16xf32>
    %cst_49 = arith.constant dense<0.000000e+00> : vector<2x1xf32>
    %64 = tpu.matmul %63, %59, %cst_49 {dimension_numbers = #tpu.dot_dimension_numbers<[1], [0], [0], [1], [0, 0, 1, 1], [], []>} : vector<2x16xf32>, vector<16x1xf32>, vector<2x1xf32> -> vector<2x1xf32>
    %c0_50 = arith.constant 0 : index
    %c0_51 = arith.constant 0 : index
    %65 = vector.load %arg8[%c0_50, %c0_51] : memref<2x16xf32, #tpu.memory_space<vmem>>, vector<2x16xf32>
    %cst_52 = arith.constant dense<0.000000e+00> : vector<2x1xf32>
    %66 = tpu.matmul %65, %62, %cst_52 {dimension_numbers = #tpu.dot_dimension_numbers<[1], [0], [0], [1], [0, 0, 1, 1], [], []>} : vector<2x16xf32>, vector<16x1xf32>, vector<2x1xf32> -> vector<2x1xf32>
    %c0_53 = arith.constant 0 : index
    %c0_54 = arith.constant 0 : index
    %67 = vector.load %arg11[%c0_53, %c0_54] : memref<2x1xf32, #tpu.memory_space<vmem>>, vector<2x1xf32>
    %68 = arith.mulf %64, %67 : vector<2x1xf32>
    %c0_55 = arith.constant 0 : index
    %c0_56 = arith.constant 0 : index
    %69 = vector.load %arg11[%c0_55, %c0_56] : memref<2x1xf32, #tpu.memory_space<vmem>>, vector<2x1xf32>
    %70 = arith.mulf %66, %69 : vector<2x1xf32>
    %71 = arith.mulf %68, %68 : vector<2x1xf32>
    %72 = arith.subf %70, %71 : vector<2x1xf32>
    %cst_57 = arith.constant 0.000000e+00 : f32
    %73 = vector.broadcast %cst_57 : f32 to vector<2x1xf32>
    %74 = arith.maximumf %72, %73 : vector<2x1xf32>
    %cst_58 = arith.constant 9.99999993E-9 : f32
    %75 = vector.broadcast %cst_58 : f32 to vector<2x1xf32>
    %76 = arith.addf %74, %75 : vector<2x1xf32>
    %77 = math.rsqrt %76 : vector<2x1xf32>
    %c0_59 = arith.constant 0 : index
    %c0_60 = arith.constant 0 : index
    %78 = vector.load %arg9[%c0_59, %c0_60] : memref<16x2xf32, #tpu.memory_space<vmem>>, vector<16x2xf32>
    %cst_61 = arith.constant dense<0.000000e+00> : vector<16x1xf32>
    %79 = tpu.matmul %78, %68, %cst_61 {dimension_numbers = #tpu.dot_dimension_numbers<[1], [0], [0], [1], [0, 0, 1, 1], [], []>} : vector<16x2xf32>, vector<2x1xf32>, vector<16x1xf32> -> vector<16x1xf32>
    %c0_62 = arith.constant 0 : index
    %c0_63 = arith.constant 0 : index
    %80 = vector.load %arg9[%c0_62, %c0_63] : memref<16x2xf32, #tpu.memory_space<vmem>>, vector<16x2xf32>
    %cst_64 = arith.constant dense<0.000000e+00> : vector<16x1xf32>
    %81 = tpu.matmul %80, %77, %cst_64 {dimension_numbers = #tpu.dot_dimension_numbers<[1], [0], [0], [1], [0, 0, 1, 1], [], []>} : vector<16x2xf32>, vector<2x1xf32>, vector<16x1xf32> -> vector<16x1xf32>
    %82 = vector.broadcast %79 : vector<16x1xf32> to vector<16x32xf32>
    %83 = arith.subf %57, %82 : vector<16x32xf32>
    %84 = vector.broadcast %81 : vector<16x1xf32> to vector<16x32xf32>
    %85 = arith.mulf %83, %84 : vector<16x32xf32>
    %86 = arith.truncf %85 : vector<16x32xf32> to vector<16x32xbf16>
    %c0_65 = arith.constant 0 : index
    %c0_66 = arith.constant 0 : index
    %c0_67 = arith.constant 0 : index
    %c0_68 = arith.constant 0 : index
    %87 = vector.load %arg23[%c0_65, %c0_66, %c0_67, %c0_68] : memref<1x7x32x32xbf16, #tpu.memory_space<vmem>>, vector<1x1x32x32xbf16>
    %88 = vector.shape_cast %87 : vector<1x1x32x32xbf16> to vector<32x32xbf16>
    %cst_69 = arith.constant dense<0.000000e+00> : vector<16x32xf32>
    %89 = tpu.matmul %86, %88, %cst_69 {dimension_numbers = #tpu.dot_dimension_numbers<[1], [0], [0], [1], [0, 0, 1, 1], [], []>} : vector<16x32xbf16>, vector<32x32xbf16>, vector<16x32xf32> -> vector<16x32xf32>
    %c0_70 = arith.constant 0 : index
    %c0_71 = arith.constant 0 : index
    %c0_72 = arith.constant 0 : index
    %c0_73 = arith.constant 0 : index
    %90 = vector.load %arg24[%c0_70, %c0_71, %c0_72, %c0_73] : memref<1x7x1x32xf32, #tpu.memory_space<vmem>>, vector<1x1x1x32xf32>
    %91 = vector.shape_cast %90 : vector<1x1x1x32xf32> to vector<1x32xf32>
    %92 = vector.broadcast %91 : vector<1x32xf32> to vector<16x32xf32>
    %93 = arith.addf %89, %92 : vector<16x32xf32>
    %cst_74 = arith.constant 0.000000e+00 : f32
    %94 = vector.broadcast %cst_74 : f32 to vector<16x32xf32>
    %95 = arith.subf %94, %93 : vector<16x32xf32>
    %96 = math.exp %95 : vector<16x32xf32>
    %cst_75 = arith.constant 1.000000e+00 : f32
    %97 = vector.broadcast %cst_75 : f32 to vector<16x32xf32>
    %98 = arith.addf %97, %96 : vector<16x32xf32>
    %99 = arith.divf %93, %98 : vector<16x32xf32>
    %100 = arith.truncf %99 : vector<16x32xf32> to vector<16x32xbf16>
    %c0_76 = arith.constant 0 : index
    %c1 = arith.constant 1 : index
    %c0_77 = arith.constant 0 : index
    %c0_78 = arith.constant 0 : index
    %101 = vector.load %arg23[%c0_76, %c1, %c0_77, %c0_78] : memref<1x7x32x32xbf16, #tpu.memory_space<vmem>>, vector<1x1x32x32xbf16>
    %102 = vector.shape_cast %101 : vector<1x1x32x32xbf16> to vector<32x32xbf16>
    %cst_79 = arith.constant dense<0.000000e+00> : vector<16x32xf32>
    %103 = tpu.matmul %100, %102, %cst_79 {dimension_numbers = #tpu.dot_dimension_numbers<[1], [0], [0], [1], [0, 0, 1, 1], [], []>} : vector<16x32xbf16>, vector<32x32xbf16>, vector<16x32xf32> -> vector<16x32xf32>
    %c0_80 = arith.constant 0 : index
    %c1_81 = arith.constant 1 : index
    %c0_82 = arith.constant 0 : index
    %c0_83 = arith.constant 0 : index
    %104 = vector.load %arg24[%c0_80, %c1_81, %c0_82, %c0_83] : memref<1x7x1x32xf32, #tpu.memory_space<vmem>>, vector<1x1x1x32xf32>
    %105 = vector.shape_cast %104 : vector<1x1x1x32xf32> to vector<1x32xf32>
    %106 = vector.broadcast %105 : vector<1x32xf32> to vector<16x32xf32>
    %107 = arith.addf %103, %106 : vector<16x32xf32>
    %cst_84 = arith.constant 0.000000e+00 : f32
    %108 = vector.broadcast %cst_84 : f32 to vector<16x32xf32>
    %109 = arith.subf %108, %107 : vector<16x32xf32>
    %110 = math.exp %109 : vector<16x32xf32>
    %cst_85 = arith.constant 1.000000e+00 : f32
    %111 = vector.broadcast %cst_85 : f32 to vector<16x32xf32>
    %112 = arith.addf %111, %110 : vector<16x32xf32>
    %113 = arith.divf %107, %112 : vector<16x32xf32>
    %114 = arith.addf %85, %113 : vector<16x32xf32>
    %115 = arith.truncf %114 : vector<16x32xf32> to vector<16x32xbf16>
    %c0_86 = arith.constant 0 : index
    %c2 = arith.constant 2 : index
    %c0_87 = arith.constant 0 : index
    %c0_88 = arith.constant 0 : index
    %116 = vector.load %arg23[%c0_86, %c2, %c0_87, %c0_88] : memref<1x7x32x32xbf16, #tpu.memory_space<vmem>>, vector<1x1x32x32xbf16>
    %117 = vector.shape_cast %116 : vector<1x1x32x32xbf16> to vector<32x32xbf16>
    %cst_89 = arith.constant dense<0.000000e+00> : vector<16x32xf32>
    %118 = tpu.matmul %115, %117, %cst_89 {dimension_numbers = #tpu.dot_dimension_numbers<[1], [0], [0], [1], [0, 0, 1, 1], [], []>} : vector<16x32xbf16>, vector<32x32xbf16>, vector<16x32xf32> -> vector<16x32xf32>
    %c0_90 = arith.constant 0 : index
    %c2_91 = arith.constant 2 : index
    %c0_92 = arith.constant 0 : index
    %c0_93 = arith.constant 0 : index
    %119 = vector.load %arg24[%c0_90, %c2_91, %c0_92, %c0_93] : memref<1x7x1x32xf32, #tpu.memory_space<vmem>>, vector<1x1x1x32xf32>
    %120 = vector.shape_cast %119 : vector<1x1x1x32xf32> to vector<1x32xf32>
    %121 = vector.broadcast %120 : vector<1x32xf32> to vector<16x32xf32>
    %122 = arith.addf %118, %121 : vector<16x32xf32>
    %cst_94 = arith.constant 0.000000e+00 : f32
    %123 = vector.broadcast %cst_94 : f32 to vector<16x32xf32>
    %124 = arith.subf %123, %122 : vector<16x32xf32>
    %125 = math.exp %124 : vector<16x32xf32>
    %cst_95 = arith.constant 1.000000e+00 : f32
    %126 = vector.broadcast %cst_95 : f32 to vector<16x32xf32>
    %127 = arith.addf %126, %125 : vector<16x32xf32>
    %128 = arith.divf %122, %127 : vector<16x32xf32>
    %129 = arith.addf %128, %3 : vector<16x32xf32>
    %130 = arith.truncf %129 : vector<16x32xf32> to vector<16x32xbf16>
    %c0_96 = arith.constant 0 : index
    %c3 = arith.constant 3 : index
    %c0_97 = arith.constant 0 : index
    %c0_98 = arith.constant 0 : index
    %131 = vector.load %arg23[%c0_96, %c3, %c0_97, %c0_98] : memref<1x7x32x32xbf16, #tpu.memory_space<vmem>>, vector<1x1x32x32xbf16>
    %132 = vector.shape_cast %131 : vector<1x1x32x32xbf16> to vector<32x32xbf16>
    %cst_99 = arith.constant dense<0.000000e+00> : vector<16x32xf32>
    %133 = tpu.matmul %130, %132, %cst_99 {dimension_numbers = #tpu.dot_dimension_numbers<[1], [0], [0], [1], [0, 0, 1, 1], [], []>} : vector<16x32xbf16>, vector<32x32xbf16>, vector<16x32xf32> -> vector<16x32xf32>
    %c0_100 = arith.constant 0 : index
    %c3_101 = arith.constant 3 : index
    %c0_102 = arith.constant 0 : index
    %c0_103 = arith.constant 0 : index
    %134 = vector.load %arg24[%c0_100, %c3_101, %c0_102, %c0_103] : memref<1x7x1x32xf32, #tpu.memory_space<vmem>>, vector<1x1x1x32xf32>
    %135 = vector.shape_cast %134 : vector<1x1x1x32xf32> to vector<1x32xf32>
    %136 = vector.broadcast %135 : vector<1x32xf32> to vector<16x32xf32>
    %137 = arith.addf %133, %136 : vector<16x32xf32>
    %cst_104 = arith.constant 0.000000e+00 : f32
    %138 = vector.broadcast %cst_104 : f32 to vector<16x32xf32>
    %139 = arith.subf %138, %137 : vector<16x32xf32>
    %140 = math.exp %139 : vector<16x32xf32>
    %cst_105 = arith.constant 1.000000e+00 : f32
    %141 = vector.broadcast %cst_105 : f32 to vector<16x32xf32>
    %142 = arith.addf %141, %140 : vector<16x32xf32>
    %143 = arith.divf %137, %142 : vector<16x32xf32>
    %144 = arith.truncf %143 : vector<16x32xf32> to vector<16x32xbf16>
    %c0_106 = arith.constant 0 : index
    %c4 = arith.constant 4 : index
    %c0_107 = arith.constant 0 : index
    %c0_108 = arith.constant 0 : index
    %145 = vector.load %arg23[%c0_106, %c4, %c0_107, %c0_108] : memref<1x7x32x32xbf16, #tpu.memory_space<vmem>>, vector<1x1x32x32xbf16>
    %146 = vector.shape_cast %145 : vector<1x1x32x32xbf16> to vector<32x32xbf16>
    %cst_109 = arith.constant dense<0.000000e+00> : vector<16x32xf32>
    %147 = tpu.matmul %144, %146, %cst_109 {dimension_numbers = #tpu.dot_dimension_numbers<[1], [0], [0], [1], [0, 0, 1, 1], [], []>} : vector<16x32xbf16>, vector<32x32xbf16>, vector<16x32xf32> -> vector<16x32xf32>
    %c0_110 = arith.constant 0 : index
    %c4_111 = arith.constant 4 : index
    %c0_112 = arith.constant 0 : index
    %c0_113 = arith.constant 0 : index
    %148 = vector.load %arg24[%c0_110, %c4_111, %c0_112, %c0_113] : memref<1x7x1x32xf32, #tpu.memory_space<vmem>>, vector<1x1x1x32xf32>
    %149 = vector.shape_cast %148 : vector<1x1x1x32xf32> to vector<1x32xf32>
    %150 = vector.broadcast %149 : vector<1x32xf32> to vector<16x32xf32>
    %151 = arith.addf %147, %150 : vector<16x32xf32>
    %cst_114 = arith.constant 0.000000e+00 : f32
    %152 = vector.broadcast %cst_114 : f32 to vector<16x32xf32>
    %153 = arith.subf %152, %151 : vector<16x32xf32>
    %154 = math.exp %153 : vector<16x32xf32>
    %cst_115 = arith.constant 1.000000e+00 : f32
    %155 = vector.broadcast %cst_115 : f32 to vector<16x32xf32>
    %156 = arith.addf %155, %154 : vector<16x32xf32>
    %157 = arith.divf %151, %156 : vector<16x32xf32>
    %158 = arith.addf %129, %157 : vector<16x32xf32>
    %159 = arith.truncf %158 : vector<16x32xf32> to vector<16x32xbf16>
    %c0_116 = arith.constant 0 : index
    %c5 = arith.constant 5 : index
    %c0_117 = arith.constant 0 : index
    %c0_118 = arith.constant 0 : index
    %160 = vector.load %arg23[%c0_116, %c5, %c0_117, %c0_118] : memref<1x7x32x32xbf16, #tpu.memory_space<vmem>>, vector<1x1x32x32xbf16>
    %161 = vector.shape_cast %160 : vector<1x1x32x32xbf16> to vector<32x32xbf16>
    %cst_119 = arith.constant dense<0.000000e+00> : vector<16x32xf32>
    %162 = tpu.matmul %159, %161, %cst_119 {dimension_numbers = #tpu.dot_dimension_numbers<[1], [0], [0], [1], [0, 0, 1, 1], [], []>} : vector<16x32xbf16>, vector<32x32xbf16>, vector<16x32xf32> -> vector<16x32xf32>
    %c0_120 = arith.constant 0 : index
    %c5_121 = arith.constant 5 : index
    %c0_122 = arith.constant 0 : index
    %c0_123 = arith.constant 0 : index
    %163 = vector.load %arg24[%c0_120, %c5_121, %c0_122, %c0_123] : memref<1x7x1x32xf32, #tpu.memory_space<vmem>>, vector<1x1x1x32xf32>
    %164 = vector.shape_cast %163 : vector<1x1x1x32xf32> to vector<1x32xf32>
    %165 = vector.broadcast %164 : vector<1x32xf32> to vector<16x32xf32>
    %166 = arith.addf %162, %165 : vector<16x32xf32>
    %cst_124 = arith.constant 0.000000e+00 : f32
    %167 = vector.broadcast %cst_124 : f32 to vector<16x32xf32>
    %168 = arith.subf %167, %166 : vector<16x32xf32>
    %169 = math.exp %168 : vector<16x32xf32>
    %cst_125 = arith.constant 1.000000e+00 : f32
    %170 = vector.broadcast %cst_125 : f32 to vector<16x32xf32>
    %171 = arith.addf %170, %169 : vector<16x32xf32>
    %172 = arith.divf %166, %171 : vector<16x32xf32>
    %173 = arith.truncf %172 : vector<16x32xf32> to vector<16x32xbf16>
    %c0_126 = arith.constant 0 : index
    %c6 = arith.constant 6 : index
    %c0_127 = arith.constant 0 : index
    %c0_128 = arith.constant 0 : index
    %174 = vector.load %arg23[%c0_126, %c6, %c0_127, %c0_128] : memref<1x7x32x32xbf16, #tpu.memory_space<vmem>>, vector<1x1x32x32xbf16>
    %175 = vector.shape_cast %174 : vector<1x1x32x32xbf16> to vector<32x32xbf16>
    %cst_129 = arith.constant dense<0.000000e+00> : vector<16x32xf32>
    %176 = tpu.matmul %173, %175, %cst_129 {dimension_numbers = #tpu.dot_dimension_numbers<[1], [0], [0], [1], [0, 0, 1, 1], [], []>} : vector<16x32xbf16>, vector<32x32xbf16>, vector<16x32xf32> -> vector<16x32xf32>
    %c0_130 = arith.constant 0 : index
    %c6_131 = arith.constant 6 : index
    %c0_132 = arith.constant 0 : index
    %c0_133 = arith.constant 0 : index
    %177 = vector.load %arg24[%c0_130, %c6_131, %c0_132, %c0_133] : memref<1x7x1x32xf32, #tpu.memory_space<vmem>>, vector<1x1x1x32xf32>
    %178 = vector.shape_cast %177 : vector<1x1x1x32xf32> to vector<1x32xf32>
    %179 = vector.broadcast %178 : vector<1x32xf32> to vector<16x32xf32>
    %180 = arith.addf %176, %179 : vector<16x32xf32>
    %cst_134 = arith.constant 0.000000e+00 : f32
    %181 = vector.broadcast %cst_134 : f32 to vector<16x32xf32>
    %182 = arith.subf %181, %180 : vector<16x32xf32>
    %183 = math.exp %182 : vector<16x32xf32>
    %cst_135 = arith.constant 1.000000e+00 : f32
    %184 = vector.broadcast %cst_135 : f32 to vector<16x32xf32>
    %185 = arith.addf %184, %183 : vector<16x32xf32>
    %186 = arith.divf %180, %185 : vector<16x32xf32>
    %187 = arith.addf %158, %186 : vector<16x32xf32>
    %c0_136 = arith.constant 0 : index
    %c0_137 = arith.constant 0 : index
    %188 = vector.load %arg35[%c0_136, %c0_137] : memref<16x32xf32, #tpu.memory_space<vmem>>, vector<16x32xf32>
    tpu.vector_store %arg35[%c0_136, %c0_137], %187 {strides = array<i32>} : memref<16x32xf32, #tpu.memory_space<vmem>>, vector<16x32xf32>,
    %c1_i32 = arith.constant 1 : i32
    %189 = arith.cmpi eq, %arg0, %c1_i32 : i32
    %190 = arith.extui %189 : i1 to i32
    %c0_i32_138 = arith.constant 0 : i32
    %191 = arith.cmpi ne, %190, %c0_i32_138 : i32
    scf.if %191 {
      %192 = arith.truncf %187 : vector<16x32xf32> to vector<16x32xbf16>
      %c0_139 = arith.constant 0 : index
      %c0_140 = arith.constant 0 : index
      %193 = vector.load %arg25[%c0_139, %c0_140] : memref<32x64xbf16, #tpu.memory_space<vmem>>, vector<32x64xbf16>
      %cst_141 = arith.constant dense<0.000000e+00> : vector<16x64xf32>
      %194 = tpu.matmul %192, %193, %cst_141 {dimension_numbers = #tpu.dot_dimension_numbers<[1], [0], [0], [1], [0, 0, 1, 1], [], []>} : vector<16x32xbf16>, vector<32x64xbf16>, vector<16x64xf32> -> vector<16x64xf32>
      %c0_142 = arith.constant 0 : index
      %c0_143 = arith.constant 0 : index
      %195 = vector.load %arg26[%c0_142, %c0_143] : memref<1x64xf32, #tpu.memory_space<vmem>>, vector<1x64xf32>
      %196 = vector.broadcast %195 : vector<1x64xf32> to vector<16x64xf32>
      %197 = arith.addf %194, %196 : vector<16x64xf32>
      %cst_144 = arith.constant 0.000000e+00 : f32
      %198 = vector.broadcast %cst_144 : f32 to vector<16x64xf32>
      %199 = arith.subf %198, %197 : vector<16x64xf32>
      %200 = math.exp %199 : vector<16x64xf32>
      %cst_145 = arith.constant 1.000000e+00 : f32
      %201 = vector.broadcast %cst_145 : f32 to vector<16x64xf32>
      %202 = arith.addf %201, %200 : vector<16x64xf32>
      %203 = arith.divf %197, %202 : vector<16x64xf32>
      %c0_146 = arith.constant 0 : index
      %c0_147 = arith.constant 0 : index
      %204 = vector.load %arg4[%c0_146, %c0_147] : memref<16x8xbf16, #tpu.memory_space<vmem>>, vector<16x8xbf16>
      %c0_148 = arith.constant 0 : index
      %c0_149 = arith.constant 0 : index
      %205 = vector.load %arg27[%c0_148, %c0_149] : memref<8x64xbf16, #tpu.memory_space<vmem>>, vector<8x64xbf16>
      %cst_150 = arith.constant dense<0.000000e+00> : vector<16x64xf32>
      %206 = tpu.matmul %204, %205, %cst_150 {dimension_numbers = #tpu.dot_dimension_numbers<[1], [0], [0], [1], [0, 0, 1, 1], [], []>} : vector<16x8xbf16>, vector<8x64xbf16>, vector<16x64xf32> -> vector<16x64xf32>
      %207 = arith.addf %203, %206 : vector<16x64xf32>
      %c0_151 = arith.constant 0 : index
      %c0_152 = arith.constant 0 : index
      %208 = vector.load %arg28[%c0_151, %c0_152] : memref<1x64xf32, #tpu.memory_space<vmem>>, vector<1x64xf32>
      %209 = vector.broadcast %208 : vector<1x64xf32> to vector<16x64xf32>
      %210 = arith.addf %207, %209 : vector<16x64xf32>
      %211 = arith.truncf %210 : vector<16x64xf32> to vector<16x64xbf16>
      %c0_153 = arith.constant 0 : index
      %c0_154 = arith.constant 0 : index
      %c0_155 = arith.constant 0 : index
      %212 = vector.load %arg29[%c0_153, %c0_154, %c0_155] : memref<2x64x64xbf16, #tpu.memory_space<vmem>>, vector<1x64x64xbf16>
      %213 = vector.shape_cast %212 : vector<1x64x64xbf16> to vector<64x64xbf16>
      %cst_156 = arith.constant dense<0.000000e+00> : vector<16x64xf32>
      %214 = tpu.matmul %211, %213, %cst_156 {dimension_numbers = #tpu.dot_dimension_numbers<[1], [0], [0], [1], [0, 0, 1, 1], [], []>} : vector<16x64xbf16>, vector<64x64xbf16>, vector<16x64xf32> -> vector<16x64xf32>
      %c0_157 = arith.constant 0 : index
      %c0_158 = arith.constant 0 : index
      %c0_159 = arith.constant 0 : index
      %215 = vector.load %arg30[%c0_157, %c0_158, %c0_159] : memref<2x1x64xf32, #tpu.memory_space<vmem>>, vector<1x1x64xf32>
      %216 = vector.shape_cast %215 : vector<1x1x64xf32> to vector<1x64xf32>
      %217 = vector.broadcast %216 : vector<1x64xf32> to vector<16x64xf32>
      %218 = arith.addf %214, %217 : vector<16x64xf32>
      %cst_160 = arith.constant 0.000000e+00 : f32
      %219 = vector.broadcast %cst_160 : f32 to vector<16x64xf32>
      %220 = arith.subf %219, %218 : vector<16x64xf32>
      %221 = math.exp %220 : vector<16x64xf32>
      %cst_161 = arith.constant 1.000000e+00 : f32
      %222 = vector.broadcast %cst_161 : f32 to vector<16x64xf32>
      %223 = arith.addf %222, %221 : vector<16x64xf32>
      %224 = arith.divf %218, %223 : vector<16x64xf32>
      %225 = arith.truncf %224 : vector<16x64xf32> to vector<16x64xbf16>
      %c1_162 = arith.constant 1 : index
      %c0_163 = arith.constant 0 : index
      %c0_164 = arith.constant 0 : index
      %226 = vector.load %arg29[%c1_162, %c0_163, %c0_164] : memref<2x64x64xbf16, #tpu.memory_space<vmem>>, vector<1x64x64xbf16>
      %227 = vector.shape_cast %226 : vector<1x64x64xbf16> to vector<64x64xbf16>
      %cst_165 = arith.constant dense<0.000000e+00> : vector<16x64xf32>
      %228 = tpu.matmul %225, %227, %cst_165 {dimension_numbers = #tpu.dot_dimension_numbers<[1], [0], [0], [1], [0, 0, 1, 1], [], []>} : vector<16x64xbf16>, vector<64x64xbf16>, vector<16x64xf32> -> vector<16x64xf32>
      %c1_166 = arith.constant 1 : index
      %c0_167 = arith.constant 0 : index
      %c0_168 = arith.constant 0 : index
      %229 = vector.load %arg30[%c1_166, %c0_167, %c0_168] : memref<2x1x64xf32, #tpu.memory_space<vmem>>, vector<1x1x64xf32>
      %230 = vector.shape_cast %229 : vector<1x1x64xf32> to vector<1x64xf32>
      %231 = vector.broadcast %230 : vector<1x64xf32> to vector<16x64xf32>
      %232 = arith.addf %228, %231 : vector<16x64xf32>
      %cst_169 = arith.constant 0.000000e+00 : f32
      %233 = vector.broadcast %cst_169 : f32 to vector<16x64xf32>
      %234 = arith.subf %233, %232 : vector<16x64xf32>
      %235 = math.exp %234 : vector<16x64xf32>
      %cst_170 = arith.constant 1.000000e+00 : f32
      %236 = vector.broadcast %cst_170 : f32 to vector<16x64xf32>
      %237 = arith.addf %236, %235 : vector<16x64xf32>
      %238 = arith.divf %232, %237 : vector<16x64xf32>
      %239 = arith.truncf %238 : vector<16x64xf32> to vector<16x64xbf16>
      %c0_171 = arith.constant 0 : index
      %c0_172 = arith.constant 0 : index
      %240 = vector.load %arg31[%c0_171, %c0_172] : memref<64x1xbf16, #tpu.memory_space<vmem>>, vector<64x1xbf16>
      %cst_173 = arith.constant dense<0.000000e+00> : vector<16x1xf32>
      %241 = tpu.matmul %239, %240, %cst_173 {dimension_numbers = #tpu.dot_dimension_numbers<[1], [0], [0], [1], [0, 0, 1, 1], [], []>} : vector<16x64xbf16>, vector<64x1xbf16>, vector<16x1xf32> -> vector<16x1xf32>
      %c0_174 = arith.constant 0 : index
      %c0_175 = arith.constant 0 : index
      %242 = vector.load %arg32[%c0_174, %c0_175] : memref<1x1xf32, #tpu.memory_space<vmem>>, vector<1x1xf32>
      %243 = vector.broadcast %242 : vector<1x1xf32> to vector<16x1xf32>
      %244 = arith.addf %241, %243 : vector<16x1xf32>
      %c0_176 = arith.constant 0 : index
      %c0_177 = arith.constant 0 : index
      %245 = vector.load %arg10[%c0_176, %c0_177] : memref<2x16xf32, #tpu.memory_space<vmem>>, vector<2x16xf32>
      %cst_178 = arith.constant dense<0.000000e+00> : vector<2x1xf32>
      %246 = tpu.matmul %245, %244, %cst_178 {dimension_numbers = #tpu.dot_dimension_numbers<[1], [0], [0], [1], [0, 0, 1, 1], [], []>} : vector<2x16xf32>, vector<16x1xf32>, vector<2x1xf32> -> vector<2x1xf32>
      %c0_179 = arith.constant 0 : index
      %c0_180 = arith.constant 0 : index
      %247 = vector.load %arg12[%c0_179, %c0_180] : memref<2x1xf32, #tpu.memory_space<vmem>>, vector<2x1xf32>
      %248 = arith.mulf %246, %247 : vector<2x1xf32>
      %c0_181 = arith.constant 0 : index
      %c0_182 = arith.constant 0 : index
      %249 = vector.load %arg33[%c0_181, %c0_182] : memref<2x1xf32, #tpu.memory_space<vmem>>, vector<2x1xf32>
      tpu.vector_store %arg33[%c0_181, %c0_182], %248 {strides = array<i32>} : memref<2x1xf32, #tpu.memory_space<vmem>>, vector<2x1xf32>,
    } else {
    }
    return
  }
  func.func @transform_0(%arg0: i32) -> (i32, i32) {
    %c0_i32 = arith.constant 0 : i32
    %c0_i32_0 = arith.constant 0 : i32
    %c0_i32_1 = arith.constant 0 : i32
    return %c0_i32, %c0_i32_0 : i32, i32
  }
  func.func @transform_1(%arg0: i32) -> (i32, i32) {
    %c0_i32 = arith.constant 0 : i32
    %c0_i32_0 = arith.constant 0 : i32
    %c0_i32_1 = arith.constant 0 : i32
    return %c0_i32, %c0_i32_0 : i32, i32
  }
  func.func @transform_2(%arg0: i32) -> (i32, i32) {
    %c0_i32 = arith.constant 0 : i32
    %c0_i32_0 = arith.constant 0 : i32
    %c0_i32_1 = arith.constant 0 : i32
    return %c0_i32, %c0_i32_0 : i32, i32
  }
  func.func @transform_3(%arg0: i32) -> (i32, i32) {
    %c0_i32 = arith.constant 0 : i32
    %c0_i32_0 = arith.constant 0 : i32
    %c0_i32_1 = arith.constant 0 : i32
    return %c0_i32, %c0_i32_0 : i32, i32
  }
  func.func @transform_4(%arg0: i32) -> (i32, i32) {
    %c0_i32 = arith.constant 0 : i32
    %c0_i32_0 = arith.constant 0 : i32
    %c0_i32_1 = arith.constant 0 : i32
    return %c0_i32, %c0_i32_0 : i32, i32
  }
  func.func @transform_5(%arg0: i32) -> (i32, i32) {
    %c0_i32 = arith.constant 0 : i32
    %c0_i32_0 = arith.constant 0 : i32
    %c0_i32_1 = arith.constant 0 : i32
    return %c0_i32, %c0_i32_0 : i32, i32
  }
  func.func @transform_6(%arg0: i32) -> (i32, i32) {
    %c0_i32 = arith.constant 0 : i32
    %c0_i32_0 = arith.constant 0 : i32
    %c0_i32_1 = arith.constant 0 : i32
    return %c0_i32, %c0_i32_0 : i32, i32
  }
  func.func @transform_7(%arg0: i32) -> (i32, i32) {
    %c0_i32 = arith.constant 0 : i32
    %c0_i32_0 = arith.constant 0 : i32
    %c0_i32_1 = arith.constant 0 : i32
    return %c0_i32, %c0_i32_0 : i32, i32
  }
  func.func @transform_8(%arg0: i32) -> (i32, i32) {
    %c0_i32 = arith.constant 0 : i32
    %c0_i32_0 = arith.constant 0 : i32
    %c0_i32_1 = arith.constant 0 : i32
    return %c0_i32, %c0_i32_0 : i32, i32
  }
  func.func @transform_9(%arg0: i32) -> (i32, i32) {
    %c0_i32 = arith.constant 0 : i32
    %c0_i32_0 = arith.constant 0 : i32
    %c0_i32_1 = arith.constant 0 : i32
    return %c0_i32, %c0_i32_0 : i32, i32
  }
  func.func @transform_10(%arg0: i32) -> (i32, i32) {
    %c0_i32 = arith.constant 0 : i32
    %c0_i32_0 = arith.constant 0 : i32
    %c0_i32_1 = arith.constant 0 : i32
    return %c0_i32, %c0_i32_0 : i32, i32
  }
  func.func @transform_11(%arg0: i32) -> (i32, i32) {
    %c0_i32 = arith.constant 0 : i32
    %c0_i32_0 = arith.constant 0 : i32
    %c0_i32_1 = arith.constant 0 : i32
    return %c0_i32, %c0_i32_0 : i32, i32
  }
  func.func @transform_12(%arg0: i32) -> (i32, i32) {
    %c0_i32 = arith.constant 0 : i32
    %c0_i32_0 = arith.constant 0 : i32
    %c0_i32_1 = arith.constant 0 : i32
    return %c0_i32, %c0_i32_0 : i32, i32
  }
  func.func @transform_13(%arg0: i32) -> (i32, i32) {
    %c0_i32 = arith.constant 0 : i32
    %c0_i32_0 = arith.constant 0 : i32
    %c0_i32_1 = arith.constant 0 : i32
    return %c0_i32, %c0_i32_0 : i32, i32
  }
  func.func @transform_14(%arg0: i32) -> (i32, i32) {
    %c0_i32 = arith.constant 0 : i32
    %c0_i32_0 = arith.constant 0 : i32
    %c0_i32_1 = arith.constant 0 : i32
    return %c0_i32, %c0_i32_0 : i32, i32
  }
  func.func @transform_15(%arg0: i32) -> (i32, i32) {
    %c0_i32 = arith.constant 0 : i32
    %c0_i32_0 = arith.constant 0 : i32
    %c0_i32_1 = arith.constant 0 : i32
    return %c0_i32, %c0_i32_0 : i32, i32
  }
  func.func @transform_16(%arg0: i32) -> (i32, i32) {
    %c0_i32 = arith.constant 0 : i32
    %c0_i32_0 = arith.constant 0 : i32
    %c0_i32_1 = arith.constant 0 : i32
    return %c0_i32, %c0_i32_0 : i32, i32
  }
  func.func @transform_17(%arg0: i32) -> (i32, i32, i32) {
    %c0_i32 = arith.constant 0 : i32
    %c0_i32_0 = arith.constant 0 : i32
    %c0_i32_1 = arith.constant 0 : i32
    return %arg0, %c0_i32, %c0_i32_0 : i32, i32, i32
  }
  func.func @transform_18(%arg0: i32) -> (i32, i32, i32) {
    %c0_i32 = arith.constant 0 : i32
    %c0_i32_0 = arith.constant 0 : i32
    %c0_i32_1 = arith.constant 0 : i32
    return %arg0, %c0_i32, %c0_i32_0 : i32, i32, i32
  }
  func.func @transform_19(%arg0: i32) -> (i32, i32, i32) {
    %c0_i32 = arith.constant 0 : i32
    %c0_i32_0 = arith.constant 0 : i32
    %c0_i32_1 = arith.constant 0 : i32
    return %arg0, %c0_i32, %c0_i32_0 : i32, i32, i32
  }
  func.func @transform_20(%arg0: i32) -> (i32, i32, i32) {
    %c0_i32 = arith.constant 0 : i32
    %c0_i32_0 = arith.constant 0 : i32
    %c0_i32_1 = arith.constant 0 : i32
    return %arg0, %c0_i32, %c0_i32_0 : i32, i32, i32
  }
  func.func @transform_21(%arg0: i32) -> (i32, i32, i32) {
    %c0_i32 = arith.constant 0 : i32
    %c0_i32_0 = arith.constant 0 : i32
    %c0_i32_1 = arith.constant 0 : i32
    return %arg0, %c0_i32, %c0_i32_0 : i32, i32, i32
  }
  func.func @transform_22(%arg0: i32) -> (i32, i32, i32, i32) {
    %c0_i32 = arith.constant 0 : i32
    %c0_i32_0 = arith.constant 0 : i32
    %c0_i32_1 = arith.constant 0 : i32
    %c0_i32_2 = arith.constant 0 : i32
    return %arg0, %c0_i32, %c0_i32_0, %c0_i32_1 : i32, i32, i32, i32
  }
  func.func @transform_23(%arg0: i32) -> (i32, i32, i32, i32) {
    %c0_i32 = arith.constant 0 : i32
    %c0_i32_0 = arith.constant 0 : i32
    %c0_i32_1 = arith.constant 0 : i32
    %c0_i32_2 = arith.constant 0 : i32
    return %arg0, %c0_i32, %c0_i32_0, %c0_i32_1 : i32, i32, i32, i32
  }
  func.func @transform_24(%arg0: i32) -> (i32, i32) {
    %c0_i32 = arith.constant 0 : i32
    %c0_i32_0 = arith.constant 0 : i32
    %c0_i32_1 = arith.constant 0 : i32
    return %c0_i32, %c0_i32_0 : i32, i32
  }
  func.func @transform_25(%arg0: i32) -> (i32, i32) {
    %c0_i32 = arith.constant 0 : i32
    %c0_i32_0 = arith.constant 0 : i32
    %c0_i32_1 = arith.constant 0 : i32
    return %c0_i32, %c0_i32_0 : i32, i32
  }
  func.func @transform_26(%arg0: i32) -> (i32, i32) {
    %c0_i32 = arith.constant 0 : i32
    %c0_i32_0 = arith.constant 0 : i32
    %c0_i32_1 = arith.constant 0 : i32
    return %c0_i32, %c0_i32_0 : i32, i32
  }
  func.func @transform_27(%arg0: i32) -> (i32, i32) {
    %c0_i32 = arith.constant 0 : i32
    %c0_i32_0 = arith.constant 0 : i32
    %c0_i32_1 = arith.constant 0 : i32
    return %c0_i32, %c0_i32_0 : i32, i32
  }
  func.func @transform_28(%arg0: i32) -> (i32, i32, i32) {
    %c0_i32 = arith.constant 0 : i32
    %c0_i32_0 = arith.constant 0 : i32
    %c0_i32_1 = arith.constant 0 : i32
    %c0_i32_2 = arith.constant 0 : i32
    return %c0_i32, %c0_i32_0, %c0_i32_1 : i32, i32, i32
  }
  func.func @transform_29(%arg0: i32) -> (i32, i32, i32) {
    %c0_i32 = arith.constant 0 : i32
    %c0_i32_0 = arith.constant 0 : i32
    %c0_i32_1 = arith.constant 0 : i32
    %c0_i32_2 = arith.constant 0 : i32
    return %c0_i32, %c0_i32_0, %c0_i32_1 : i32, i32, i32
  }
  func.func @transform_30(%arg0: i32) -> (i32, i32) {
    %c0_i32 = arith.constant 0 : i32
    %c0_i32_0 = arith.constant 0 : i32
    %c0_i32_1 = arith.constant 0 : i32
    return %c0_i32, %c0_i32_0 : i32, i32
  }
  func.func @transform_31(%arg0: i32) -> (i32, i32) {
    %c0_i32 = arith.constant 0 : i32
    %c0_i32_0 = arith.constant 0 : i32
    %c0_i32_1 = arith.constant 0 : i32
    return %c0_i32, %c0_i32_0 : i32, i32
  }
  func.func @transform_32(%arg0: i32) -> (i32, i32) {
    %c0_i32 = arith.constant 0 : i32
    %c0_i32_0 = arith.constant 0 : i32
    %c0_i32_1 = arith.constant 0 : i32
    return %c0_i32, %c0_i32_0 : i32, i32
  }
}

</mosaic_0001>

<llo_original>
// kernel: sbf_transformer_global_forward.1
$region0: #{sbf_transformer_global_forward.1}
  #allocation0 [shape = 'u32[]', space=smem, size = 0x4, offset = 0x4, fixed_abs, tag = 'smem constant byte address 0x4 - core index']
  #allocation1 [shape = 'u32[144,128]{1,0:T(1,128)}', space=vmem, size = 0x12000, scoped, tag = 'internal scratch']
  #allocation2 [shape = 'bf16[40,32]{1,0:T(8,128)(2,1)}', space=vmem, size = 0x2800, scoped, tag = 'scratch operand']
  #allocation3 [shape = 'f32[16,32]{1,0:T(8,128)}', space=vmem, size = 0x2000, scoped, tag = 'scratch operand']
  #allocation4 [shape = 'f32[40,64]{1,0:T(8,128)}', space=vmem, size = 0x5000, scoped, tag = 'scratch operand']
  #allocation5 [shape = 'f32[1,1]{1,0:T(1,128)S(1)}', space=vmem, size = 0x200, scoped, tag = 'scoped memory for sbf_transformer_global_forward.1']
  %s0 = inlined_call_operand.smem [shape: u32[33], index: -1, kind: input, shape index: {}]
  %s1 = sld [smem:[%s0]]
  %s2 = scalar_lea.smem %s0, 1
  %s3 = sld [smem:[%s2]]
  %s4 = scalar_lea.smem %s0, 2
  %s5 = sld [smem:[%s4]]
  %s6 = scalar_lea.smem %s0, 3
  %s7 = sld [smem:[%s6]]
  %s8 = scalar_lea.smem %s0, 4
  %s9 = sld [smem:[%s8]]
  %s10 = scalar_lea.smem %s0, 5
  %s11 = sld [smem:[%s10]]
  %s12 = scalar_lea.smem %s0, 6
  %s13 = sld [smem:[%s12]]
  %s14 = scalar_lea.smem %s0, 7
  %s15 = sld [smem:[%s14]]
  %s16 = scalar_lea.smem %s0, 8
  %s17 = sld [smem:[%s16]]
  %s18 = scalar_lea.smem %s0, 9
  %s19 = sld [smem:[%s18]]
  %s20 = scalar_lea.smem %s0, 10
  %s21 = sld [smem:[%s20]]
  %s22 = scalar_lea.smem %s0, 11
  %s23 = sld [smem:[%s22]]
  %s24 = scalar_lea.smem %s0, 12
  %s25 = sld [smem:[%s24]]
  %s26 = scalar_lea.smem %s0, 13
  %s27 = sld [smem:[%s26]]
  %s28 = scalar_lea.smem %s0, 14
  %s29 = sld [smem:[%s28]]
  %s30 = scalar_lea.smem %s0, 15
  %s31 = sld [smem:[%s30]]
  %s32 = scalar_lea.smem %s0, 16
  %s33 = sld [smem:[%s32]]
  %s34 = scalar_lea.smem %s0, 17
  %s35 = sld [smem:[%s34]]
  %s36 = scalar_lea.smem %s0, 18
  %s37 = sld [smem:[%s36]]
  %s38 = scalar_lea.smem %s0, 19
  %s39 = sld [smem:[%s38]]
  %s40 = scalar_lea.smem %s0, 20
  %s41 = sld [smem:[%s40]]
  %s42 = scalar_lea.smem %s0, 21
  %s43 = sld [smem:[%s42]]
  %s44 = scalar_lea.smem %s0, 22
  %s45 = sld [smem:[%s44]]
  %s46 = scalar_lea.smem %s0, 23
  %s47 = sld [smem:[%s46]]
  %s48 = scalar_lea.smem %s0, 24
  %s49 = sld [smem:[%s48]]
  %s50 = scalar_lea.smem %s0, 25
  %s51 = sld [smem:[%s50]]
  %s52 = scalar_lea.smem %s0, 26
  %s53 = sld [smem:[%s52]]
  %s54 = scalar_lea.smem %s0, 27
  %s55 = sld [smem:[%s54]]
  %s56 = scalar_lea.smem %s0, 28
  %s57 = sld [smem:[%s56]]
  %s58 = scalar_lea.smem %s0, 29
  %s59 = sld [smem:[%s58]]
  %s60 = scalar_lea.smem %s0, 30
  %s61 = sld [smem:[%s60]]
  %s62 = scalar_lea.smem %s0, 31
  %s63 = sld [smem:[%s62]]
  %s64 = scalar_lea.smem %s0, 32
  %s65 = sld [smem:[%s64]]
  %s66 = sld [smem:[#allocation0]]
  $region169: #{sbf_transformer_global_forward.1} parent=0
    _
  %s68 = ssub.s32 1, %s66
  %s69 = scalar_select 0, %s68, %s66
  %v70 = vstv %s63
  %71 = vst [vmem:[#allocation5] sm:$0x1] %v70
  loop: start=0, step=1, limit=4
  $region2: #{sbf_transformer_global_forward.1} parent=0 // loop_pre_header
    _
  $region3: #{sbf_transformer_global_forward.1} parent=0 // loop_header
    %s73 = sphi 0, %s77
    %p74 = scmp.ge.s32.totalorder %s73, 4
    %s81 = sphi 0, %s81
    %s83 = sphi 0, %s81
    %s84 = sphi 0, %s83
    %s98 = sphi 0, %s84
    %s102 = sphi 0, %s102
    %s104 = sphi 0, %s102
    %s105 = sphi 0, %s104
    %s119 = sphi 0, %s105
    %s123 = sphi 0, %s123
    %s125 = sphi 0, %s123
    %s126 = sphi 0, %s125
    %s140 = sphi 0, %s126
    %s144 = sphi 0, %s144
    %s146 = sphi 0, %s144
    %s147 = sphi 0, %s146
    %s161 = sphi 0, %s147
    %s165 = sphi 0, %s165
    %s167 = sphi 0, %s165
    %s168 = sphi 0, %s167
    %s182 = sphi 0, %s168
    %s186 = sphi 0, %s186
    %s188 = sphi 0, %s186
    %s189 = sphi 0, %s188
    %s203 = sphi 0, %s189
    %s207 = sphi 0, %s207
    %s209 = sphi 0, %s207
    %s210 = sphi 0, %s209
    %s224 = sphi 0, %s210
    %s228 = sphi 0, %s228
    %s230 = sphi 0, %s228
    %s231 = sphi 0, %s230
    %s245 = sphi 0, %s231
    %s249 = sphi 0, %s249
    %s251 = sphi 0, %s249
    %s252 = sphi 0, %s251
    %s266 = sphi 0, %s252
    %s270 = sphi 0, %s270
    %s272 = sphi 0, %s270
    %s273 = sphi 0, %s272
    %s287 = sphi 0, %s273
    %s291 = sphi 0, %s291
    %s293 = sphi 0, %s291
    %s294 = sphi 0, %s293
    %s308 = sphi 0, %s294
    %s312 = sphi 0, %s312
    %s314 = sphi 0, %s312
    %s315 = sphi 0, %s314
    %s329 = sphi 0, %s315
    %s333 = sphi 0, %s333
    %s335 = sphi 0, %s333
    %s336 = sphi 0, %s335
    %s350 = sphi 0, %s336
    %s354 = sphi 0, %s354
    %s356 = sphi 0, %s354
    %s357 = sphi 0, %s356
    %s371 = sphi 0, %s357
    %s375 = sphi 0, %s375
    %s377 = sphi 0, %s375
    %s378 = sphi 0, %s377
    %s392 = sphi 0, %s378
    %s396 = sphi 0, %s396
    %s398 = sphi 0, %s396
    %s399 = sphi 0, %s398
    %s413 = sphi 0, %s399
    %s417 = sphi 0, %s417
    %s419 = sphi 0, %s417
    %s420 = sphi 0, %s419
    %s434 = sphi 0, %s420
    %s440 = sphi 0, %s442
    %s443 = sphi 0, %s440
    %s444 = sphi 0, %s443
    %s460 = sphi 0, %s444
    %s466 = sphi 0, %s468
    %s469 = sphi 0, %s466
    %s470 = sphi 0, %s469
    %s486 = sphi 0, %s470
    %s492 = sphi 0, %s494
    %s495 = sphi 0, %s492
    %s496 = sphi 0, %s495
    %s512 = sphi 0, %s496
    %s518 = sphi 0, %s520
    %s521 = sphi 0, %s518
    %s522 = sphi 0, %s521
    %s538 = sphi 0, %s522
    %s544 = sphi 0, %s546
    %s547 = sphi 0, %s544
    %s548 = sphi 0, %s547
    %s564 = sphi 0, %s548
    %s570 = sphi 0, %s572
    %s573 = sphi 0, %s570
    %s574 = sphi 0, %s573
    %s590 = sphi 0, %s574
    %s596 = sphi 0, %s598
    %s599 = sphi 0, %s596
    %s600 = sphi 0, %s599
    %s616 = sphi 0, %s600
    %s620 = sphi 0, %s620
    %s622 = sphi 0, %s620
    %s623 = sphi 0, %s622
    %s637 = sphi 0, %s623
    %s641 = sphi 0, %s641
    %s643 = sphi 0, %s641
    %s644 = sphi 0, %s643
    %s658 = sphi 0, %s644
    %s662 = sphi 0, %s662
    %s664 = sphi 0, %s662
    %s665 = sphi 0, %s664
    %s679 = sphi 0, %s665
    %s683 = sphi 0, %s683
    %s685 = sphi 0, %s683
    %s686 = sphi 0, %s685
    %s700 = sphi 0, %s686
    %s704 = sphi 0, %s704
    %s706 = sphi 0, %s704
    %s707 = sphi 0, %s706
    %s721 = sphi 0, %s707
    %s725 = sphi 0, %s725
    %s727 = sphi 0, %s725
    %s728 = sphi 0, %s727
    %s742 = sphi 0, %s728
    %s746 = sphi 0, %s746
    %s748 = sphi 0, %s746
    %s749 = sphi 0, %s748
    %s763 = sphi 0, %s749
    %s767 = sphi 0, %s767
    %s769 = sphi 0, %s767
    %s770 = sphi 0, %s769
    %s784 = sphi 0, %s770
    %s788 = sphi 0, %s788
    %s790 = sphi 0, %s788
    %s791 = sphi 0, %s790
    %s805 = sphi 0, %s791
  $region4: #{sbf_transformer_global_forward.1} parent=0 // loop_header_branch
    %76 = sbr.rel (%p74) target = $region8
  $region5: #{sbf_transformer_global_forward.1} parent=0 // loop_body
    %s78 = ssub.s32 %s73, 1
    %s79 = ssub.s32 %s73, 2
    %s80 = sadd.s32 %s73, 1
    %s82 = sadd.s32 %s81, 1
    %p85 = scmp.eq.s32.totalorder %s73, 1
    %p86 = scmp.ne.s32.totalorder %s81, %s83
    %p87 = scmp.eq.s32.totalorder %s73, 0
    %p88 = por %p86, %p87
    %p89 = scmp.ne.s32.totalorder %s81, %s83
    %p90 = scmp.eq.s32.totalorder %s78, 1
    %p91 = por %p89, %p90
    %p92 = scmp.ne.s32.totalorder %s83, %s84
    %p93 = scmp.eq.s32.totalorder %s78, 0
    %p94 = por %p92, %p93
    %p95 = scmp.ne.s32.totalorder %s83, %s84
    %p96 = scmp.eq.s32.totalorder %s79, 1
    %p97 = por %p95, %p96
    %p99 = scmp.ne.s32.totalorder %s84, %s98
    %p100 = scmp.eq.s32.totalorder %s79, 0
    %p101 = por %p99, %p100
    %s103 = sadd.s32 %s102, 1
    %p106 = scmp.eq.s32.totalorder %s73, 1
    %p107 = scmp.ne.s32.totalorder %s102, %s104
    %p108 = scmp.eq.s32.totalorder %s73, 0
    %p109 = por %p107, %p108
    %p110 = scmp.ne.s32.totalorder %s102, %s104
    %p111 = scmp.eq.s32.totalorder %s78, 1
    %p112 = por %p110, %p111
    %p113 = scmp.ne.s32.totalorder %s104, %s105
    %p114 = scmp.eq.s32.totalorder %s78, 0
    %p115 = por %p113, %p114
    %p116 = scmp.ne.s32.totalorder %s104, %s105
    %p117 = scmp.eq.s32.totalorder %s79, 1
    %p118 = por %p116, %p117
    %p120 = scmp.ne.s32.totalorder %s105, %s119
    %p121 = scmp.eq.s32.totalorder %s79, 0
    %p122 = por %p120, %p121
    %s124 = sadd.s32 %s123, 1
    %p127 = scmp.eq.s32.totalorder %s73, 1
    %p128 = scmp.ne.s32.totalorder %s123, %s125
    %p129 = scmp.eq.s32.totalorder %s73, 0
    %p130 = por %p128, %p129
    %p131 = scmp.ne.s32.totalorder %s123, %s125
    %p132 = scmp.eq.s32.totalorder %s78, 1
    %p133 = por %p131, %p132
    %p134 = scmp.ne.s32.totalorder %s125, %s126
    %p135 = scmp.eq.s32.totalorder %s78, 0
    %p136 = por %p134, %p135
    %p137 = scmp.ne.s32.totalorder %s125, %s126
    %p138 = scmp.eq.s32.totalorder %s79, 1
    %p139 = por %p137, %p138
    %p141 = scmp.ne.s32.totalorder %s126, %s140
    %p142 = scmp.eq.s32.totalorder %s79, 0
    %p143 = por %p141, %p142
    %s145 = sadd.s32 %s144, 1
    %p148 = scmp.eq.s32.totalorder %s73, 1
    %p149 = scmp.ne.s32.totalorder %s144, %s146
    %p150 = scmp.eq.s32.totalorder %s73, 0
    %p151 = por %p149, %p150
    %p152 = scmp.ne.s32.totalorder %s144, %s146
    %p153 = scmp.eq.s32.totalorder %s78, 1
    %p154 = por %p152, %p153
    %p155 = scmp.ne.s32.totalorder %s146, %s147
    %p156 = scmp.eq.s32.totalorder %s78, 0
    %p157 = por %p155, %p156
    %p158 = scmp.ne.s32.totalorder %s146, %s147
    %p159 = scmp.eq.s32.totalorder %s79, 1
    %p160 = por %p158, %p159
    %p162 = scmp.ne.s32.totalorder %s147, %s161
    %p163 = scmp.eq.s32.totalorder %s79, 0
    %p164 = por %p162, %p163
    %s166 = sadd.s32 %s165, 1
    %p169 = scmp.eq.s32.totalorder %s73, 1
    %p170 = scmp.ne.s32.totalorder %s165, %s167
    %p171 = scmp.eq.s32.totalorder %s73, 0
    %p172 = por %p170, %p171
    %p173 = scmp.ne.s32.totalorder %s165, %s167
    %p174 = scmp.eq.s32.totalorder %s78, 1
    %p175 = por %p173, %p174
    %p176 = scmp.ne.s32.totalorder %s167, %s168
    %p177 = scmp.eq.s32.totalorder %s78, 0
    %p178 = por %p176, %p177
    %p179 = scmp.ne.s32.totalorder %s167, %s168
    %p180 = scmp.eq.s32.totalorder %s79, 1
    %p181 = por %p179, %p180
    %p183 = scmp.ne.s32.totalorder %s168, %s182
    %p184 = scmp.eq.s32.totalorder %s79, 0
    %p185 = por %p183, %p184
    %s187 = sadd.s32 %s186, 1
    %p190 = scmp.eq.s32.totalorder %s73, 1
    %p191 = scmp.ne.s32.totalorder %s186, %s188
    %p192 = scmp.eq.s32.totalorder %s73, 0
    %p193 = por %p191, %p192
    %p194 = scmp.ne.s32.totalorder %s186, %s188
    %p195 = scmp.eq.s32.totalorder %s78, 1
    %p196 = por %p194, %p195
    %p197 = scmp.ne.s32.totalorder %s188, %s189
    %p198 = scmp.eq.s32.totalorder %s78, 0
    %p199 = por %p197, %p198
    %p200 = scmp.ne.s32.totalorder %s188, %s189
    %p201 = scmp.eq.s32.totalorder %s79, 1
    %p202 = por %p200, %p201
    %p204 = scmp.ne.s32.totalorder %s189, %s203
    %p205 = scmp.eq.s32.totalorder %s79, 0
    %p206 = por %p204, %p205
    %s208 = sadd.s32 %s207, 1
    %p211 = scmp.eq.s32.totalorder %s73, 1
    %p212 = scmp.ne.s32.totalorder %s207, %s209
    %p213 = scmp.eq.s32.totalorder %s73, 0
    %p214 = por %p212, %p213
    %p215 = scmp.ne.s32.totalorder %s207, %s209
    %p216 = scmp.eq.s32.totalorder %s78, 1
    %p217 = por %p215, %p216
    %p218 = scmp.ne.s32.totalorder %s209, %s210
    %p219 = scmp.eq.s32.totalorder %s78, 0
    %p220 = por %p218, %p219
    %p221 = scmp.ne.s32.totalorder %s209, %s210
    %p222 = scmp.eq.s32.totalorder %s79, 1
    %p223 = por %p221, %p222
    %p225 = scmp.ne.s32.totalorder %s210, %s224
    %p226 = scmp.eq.s32.totalorder %s79, 0
    %p227 = por %p225, %p226
    %s229 = sadd.s32 %s228, 1
    %p232 = scmp.eq.s32.totalorder %s73, 1
    %p233 = scmp.ne.s32.totalorder %s228, %s230
    %p234 = scmp.eq.s32.totalorder %s73, 0
    %p235 = por %p233, %p234
    %p236 = scmp.ne.s32.totalorder %s228, %s230
    %p237 = scmp.eq.s32.totalorder %s78, 1
    %p238 = por %p236, %p237
    %p239 = scmp.ne.s32.totalorder %s230, %s231
    %p240 = scmp.eq.s32.totalorder %s78, 0
    %p241 = por %p239, %p240
    %p242 = scmp.ne.s32.totalorder %s230, %s231
    %p243 = scmp.eq.s32.totalorder %s79, 1
    %p244 = por %p242, %p243
    %p246 = scmp.ne.s32.totalorder %s231, %s245
    %p247 = scmp.eq.s32.totalorder %s79, 0
    %p248 = por %p246, %p247
    %s250 = sadd.s32 %s249, 1
    %p253 = scmp.eq.s32.totalorder %s73, 1
    %p254 = scmp.ne.s32.totalorder %s249, %s251
    %p255 = scmp.eq.s32.totalorder %s73, 0
    %p256 = por %p254, %p255
    %p257 = scmp.ne.s32.totalorder %s249, %s251
    %p258 = scmp.eq.s32.totalorder %s78, 1
    %p259 = por %p257, %p258
    %p260 = scmp.ne.s32.totalorder %s251, %s252
    %p261 = scmp.eq.s32.totalorder %s78, 0
    %p262 = por %p260, %p261
    %p263 = scmp.ne.s32.totalorder %s251, %s252
    %p264 = scmp.eq.s32.totalorder %s79, 1
    %p265 = por %p263, %p264
    %p267 = scmp.ne.s32.totalorder %s252, %s266
    %p268 = scmp.eq.s32.totalorder %s79, 0
    %p269 = por %p267, %p268
    %s271 = sadd.s32 %s270, 1
    %p274 = scmp.eq.s32.totalorder %s73, 1
    %p275 = scmp.ne.s32.totalorder %s270, %s272
    %p276 = scmp.eq.s32.totalorder %s73, 0
    %p277 = por %p275, %p276
    %p278 = scmp.ne.s32.totalorder %s270, %s272
    %p279 = scmp.eq.s32.totalorder %s78, 1
    %p280 = por %p278, %p279
    %p281 = scmp.ne.s32.totalorder %s272, %s273
    %p282 = scmp.eq.s32.totalorder %s78, 0
    %p283 = por %p281, %p282
    %p284 = scmp.ne.s32.totalorder %s272, %s273
    %p285 = scmp.eq.s32.totalorder %s79, 1
    %p286 = por %p284, %p285
    %p288 = scmp.ne.s32.totalorder %s273, %s287
    %p289 = scmp.eq.s32.totalorder %s79, 0
    %p290 = por %p288, %p289
    %s292 = sadd.s32 %s291, 1
    %p295 = scmp.eq.s32.totalorder %s73, 1
    %p296 = scmp.ne.s32.totalorder %s291, %s293
    %p297 = scmp.eq.s32.totalorder %s73, 0
    %p298 = por %p296, %p297
    %p299 = scmp.ne.s32.totalorder %s291, %s293
    %p300 = scmp.eq.s32.totalorder %s78, 1
    %p301 = por %p299, %p300
    %p302 = scmp.ne.s32.totalorder %s293, %s294
    %p303 = scmp.eq.s32.totalorder %s78, 0
    %p304 = por %p302, %p303
    %p305 = scmp.ne.s32.totalorder %s293, %s294
    %p306 = scmp.eq.s32.totalorder %s79, 1
    %p307 = por %p305, %p306
    %p309 = scmp.ne.s32.totalorder %s294, %s308
    %p310 = scmp.eq.s32.totalorder %s79, 0
    %p311 = por %p309, %p310
    %s313 = sadd.s32 %s312, 1
    %p316 = scmp.eq.s32.totalorder %s73, 1
    %p317 = scmp.ne.s32.totalorder %s312, %s314
    %p318 = scmp.eq.s32.totalorder %s73, 0
    %p319 = por %p317, %p318
    %p320 = scmp.ne.s32.totalorder %s312, %s314
    %p321 = scmp.eq.s32.totalorder %s78, 1
    %p322 = por %p320, %p321
    %p323 = scmp.ne.s32.totalorder %s314, %s315
    %p324 = scmp.eq.s32.totalorder %s78, 0
    %p325 = por %p323, %p324
    %p326 = scmp.ne.s32.totalorder %s314, %s315
    %p327 = scmp.eq.s32.totalorder %s79, 1
    %p328 = por %p326, %p327
    %p330 = scmp.ne.s32.totalorder %s315, %s329
    %p331 = scmp.eq.s32.totalorder %s79, 0
    %p332 = por %p330, %p331
    %s334 = sadd.s32 %s333, 1
    %p337 = scmp.eq.s32.totalorder %s73, 1
    %p338 = scmp.ne.s32.totalorder %s333, %s335
    %p339 = scmp.eq.s32.totalorder %s73, 0
    %p340 = por %p338, %p339
    %p341 = scmp.ne.s32.totalorder %s333, %s335
    %p342 = scmp.eq.s32.totalorder %s78, 1
    %p343 = por %p341, %p342
    %p344 = scmp.ne.s32.totalorder %s335, %s336
    %p345 = scmp.eq.s32.totalorder %s78, 0
    %p346 = por %p344, %p345
    %p347 = scmp.ne.s32.totalorder %s335, %s336
    %p348 = scmp.eq.s32.totalorder %s79, 1
    %p349 = por %p347, %p348
    %p351 = scmp.ne.s32.totalorder %s336, %s350
    %p352 = scmp.eq.s32.totalorder %s79, 0
    %p353 = por %p351, %p352
    %s355 = sadd.s32 %s354, 1
    %p358 = scmp.eq.s32.totalorder %s73, 1
    %p359 = scmp.ne.s32.totalorder %s354, %s356
    %p360 = scmp.eq.s32.totalorder %s73, 0
    %p361 = por %p359, %p360
    %p362 = scmp.ne.s32.totalorder %s354, %s356
    %p363 = scmp.eq.s32.totalorder %s78, 1
    %p364 = por %p362, %p363
    %p365 = scmp.ne.s32.totalorder %s356, %s357
    %p366 = scmp.eq.s32.totalorder %s78, 0
    %p367 = por %p365, %p366
    %p368 = scmp.ne.s32.totalorder %s356, %s357
    %p369 = scmp.eq.s32.totalorder %s79, 1
    %p370 = por %p368, %p369
    %p372 = scmp.ne.s32.totalorder %s357, %s371
    %p373 = scmp.eq.s32.totalorder %s79, 0
    %p374 = por %p372, %p373
    %s376 = sadd.s32 %s375, 1
    %p379 = scmp.eq.s32.totalorder %s73, 1
    %p380 = scmp.ne.s32.totalorder %s375, %s377
    %p381 = scmp.eq.s32.totalorder %s73, 0
    %p382 = por %p380, %p381
    %p383 = scmp.ne.s32.totalorder %s375, %s377
    %p384 = scmp.eq.s32.totalorder %s78, 1
    %p385 = por %p383, %p384
    %p386 = scmp.ne.s32.totalorder %s377, %s378
    %p387 = scmp.eq.s32.totalorder %s78, 0
    %p388 = por %p386, %p387
    %p389 = scmp.ne.s32.totalorder %s377, %s378
    %p390 = scmp.eq.s32.totalorder %s79, 1
    %p391 = por %p389, %p390
    %p393 = scmp.ne.s32.totalorder %s378, %s392
    %p394 = scmp.eq.s32.totalorder %s79, 0
    %p395 = por %p393, %p394
    %s397 = sadd.s32 %s396, 1
    %p400 = scmp.eq.s32.totalorder %s73, 1
    %p401 = scmp.ne.s32.totalorder %s396, %s398
    %p402 = scmp.eq.s32.totalorder %s73, 0
    %p403 = por %p401, %p402
    %p404 = scmp.ne.s32.totalorder %s396, %s398
    %p405 = scmp.eq.s32.totalorder %s78, 1
    %p406 = por %p404, %p405
    %p407 = scmp.ne.s32.totalorder %s398, %s399
    %p408 = scmp.eq.s32.totalorder %s78, 0
    %p409 = por %p407, %p408
    %p410 = scmp.ne.s32.totalorder %s398, %s399
    %p411 = scmp.eq.s32.totalorder %s79, 1
    %p412 = por %p410, %p411
    %p414 = scmp.ne.s32.totalorder %s399, %s413
    %p415 = scmp.eq.s32.totalorder %s79, 0
    %p416 = por %p414, %p415
    %s418 = sadd.s32 %s417, 1
    %p421 = scmp.eq.s32.totalorder %s73, 1
    %p422 = scmp.ne.s32.totalorder %s417, %s419
    %p423 = scmp.eq.s32.totalorder %s73, 0
    %p424 = por %p422, %p423
    %p425 = scmp.ne.s32.totalorder %s417, %s419
    %p426 = scmp.eq.s32.totalorder %s78, 1
    %p427 = por %p425, %p426
    %p428 = scmp.ne.s32.totalorder %s419, %s420
    %p429 = scmp.eq.s32.totalorder %s78, 0
    %p430 = por %p428, %p429
    %p431 = scmp.ne.s32.totalorder %s419, %s420
    %p432 = scmp.eq.s32.totalorder %s79, 1
    %p433 = por %p431, %p432
    %p435 = scmp.ne.s32.totalorder %s420, %s434
    %p436 = scmp.eq.s32.totalorder %s79, 0
    %p437 = por %p435, %p436
    %s438 = ssub.s32 %s73, %s80
    %p439 = scmp.eq.s32.totalorder %s438, 0
    %s441 = sadd.s32 %s440, 1
    %s442 = scalar_select %p439, %s440, %s441
    %p445 = pneg %p439
    %p446 = scmp.eq.s32.totalorder %s73, 1
    %p447 = por %p445, %p446
    %p448 = scmp.ne.s32.totalorder %s440, %s443
    %p449 = scmp.eq.s32.totalorder %s73, 0
    %p450 = por %p448, %p449
    %p451 = scmp.ne.s32.totalorder %s440, %s443
    %p452 = scmp.eq.s32.totalorder %s78, 1
    %p453 = por %p451, %p452
    %p454 = scmp.ne.s32.totalorder %s443, %s444
    %p455 = scmp.eq.s32.totalorder %s78, 0
    %p456 = por %p454, %p455
    %p457 = scmp.ne.s32.totalorder %s443, %s444
    %p458 = scmp.eq.s32.totalorder %s79, 1
    %p459 = por %p457, %p458
    %p461 = scmp.ne.s32.totalorder %s444, %s460
    %p462 = scmp.eq.s32.totalorder %s79, 0
    %p463 = por %p461, %p462
    %s464 = ssub.s32 %s73, %s80
    %p465 = scmp.eq.s32.totalorder %s464, 0
    %s467 = sadd.s32 %s466, 1
    %s468 = scalar_select %p465, %s466, %s467
    %p471 = pneg %p465
    %p472 = scmp.eq.s32.totalorder %s73, 1
    %p473 = por %p471, %p472
    %p474 = scmp.ne.s32.totalorder %s466, %s469
    %p475 = scmp.eq.s32.totalorder %s73, 0
    %p476 = por %p474, %p475
    %p477 = scmp.ne.s32.totalorder %s466, %s469
    %p478 = scmp.eq.s32.totalorder %s78, 1
    %p479 = por %p477, %p478
    %p480 = scmp.ne.s32.totalorder %s469, %s470
    %p481 = scmp.eq.s32.totalorder %s78, 0
    %p482 = por %p480, %p481
    %p483 = scmp.ne.s32.totalorder %s469, %s470
    %p484 = scmp.eq.s32.totalorder %s79, 1
    %p485 = por %p483, %p484
    %p487 = scmp.ne.s32.totalorder %s470, %s486
    %p488 = scmp.eq.s32.totalorder %s79, 0
    %p489 = por %p487, %p488
    %s490 = ssub.s32 %s73, %s80
    %p491 = scmp.eq.s32.totalorder %s490, 0
    %s493 = sadd.s32 %s492, 1
    %s494 = scalar_select %p491, %s492, %s493
    %p497 = pneg %p491
    %p498 = scmp.eq.s32.totalorder %s73, 1
    %p499 = por %p497, %p498
    %p500 = scmp.ne.s32.totalorder %s492, %s495
    %p501 = scmp.eq.s32.totalorder %s73, 0
    %p502 = por %p500, %p501
    %p503 = scmp.ne.s32.totalorder %s492, %s495
    %p504 = scmp.eq.s32.totalorder %s78, 1
    %p505 = por %p503, %p504
    %p506 = scmp.ne.s32.totalorder %s495, %s496
    %p507 = scmp.eq.s32.totalorder %s78, 0
    %p508 = por %p506, %p507
    %p509 = scmp.ne.s32.totalorder %s495, %s496
    %p510 = scmp.eq.s32.totalorder %s79, 1
    %p511 = por %p509, %p510
    %p513 = scmp.ne.s32.totalorder %s496, %s512
    %p514 = scmp.eq.s32.totalorder %s79, 0
    %p515 = por %p513, %p514
    %s516 = ssub.s32 %s73, %s80
    %p517 = scmp.eq.s32.totalorder %s516, 0
    %s519 = sadd.s32 %s518, 1
    %s520 = scalar_select %p517, %s518, %s519
    %p523 = pneg %p517
    %p524 = scmp.eq.s32.totalorder %s73, 1
    %p525 = por %p523, %p524
    %p526 = scmp.ne.s32.totalorder %s518, %s521
    %p527 = scmp.eq.s32.totalorder %s73, 0
    %p528 = por %p526, %p527
    %p529 = scmp.ne.s32.totalorder %s518, %s521
    %p530 = scmp.eq.s32.totalorder %s78, 1
    %p531 = por %p529, %p530
    %p532 = scmp.ne.s32.totalorder %s521, %s522
    %p533 = scmp.eq.s32.totalorder %s78, 0
    %p534 = por %p532, %p533
    %p535 = scmp.ne.s32.totalorder %s521, %s522
    %p536 = scmp.eq.s32.totalorder %s79, 1
    %p537 = por %p535, %p536
    %p539 = scmp.ne.s32.totalorder %s522, %s538
    %p540 = scmp.eq.s32.totalorder %s79, 0
    %p541 = por %p539, %p540
    %s542 = ssub.s32 %s73, %s80
    %p543 = scmp.eq.s32.totalorder %s542, 0
    %s545 = sadd.s32 %s544, 1
    %s546 = scalar_select %p543, %s544, %s545
    %p549 = pneg %p543
    %p550 = scmp.eq.s32.totalorder %s73, 1
    %p551 = por %p549, %p550
    %p552 = scmp.ne.s32.totalorder %s544, %s547
    %p553 = scmp.eq.s32.totalorder %s73, 0
    %p554 = por %p552, %p553
    %p555 = scmp.ne.s32.totalorder %s544, %s547
    %p556 = scmp.eq.s32.totalorder %s78, 1
    %p557 = por %p555, %p556
    %p558 = scmp.ne.s32.totalorder %s547, %s548
    %p559 = scmp.eq.s32.totalorder %s78, 0
    %p560 = por %p558, %p559
    %p561 = scmp.ne.s32.totalorder %s547, %s548
    %p562 = scmp.eq.s32.totalorder %s79, 1
    %p563 = por %p561, %p562
    %p565 = scmp.ne.s32.totalorder %s548, %s564
    %p566 = scmp.eq.s32.totalorder %s79, 0
    %p567 = por %p565, %p566
    %s568 = ssub.s32 %s73, %s80
    %p569 = scmp.eq.s32.totalorder %s568, 0
    %s571 = sadd.s32 %s570, 1
    %s572 = scalar_select %p569, %s570, %s571
    %p575 = pneg %p569
    %p576 = scmp.eq.s32.totalorder %s73, 1
    %p577 = por %p575, %p576
    %p578 = scmp.ne.s32.totalorder %s570, %s573
    %p579 = scmp.eq.s32.totalorder %s73, 0
    %p580 = por %p578, %p579
    %p581 = scmp.ne.s32.totalorder %s570, %s573
    %p582 = scmp.eq.s32.totalorder %s78, 1
    %p583 = por %p581, %p582
    %p584 = scmp.ne.s32.totalorder %s573, %s574
    %p585 = scmp.eq.s32.totalorder %s78, 0
    %p586 = por %p584, %p585
    %p587 = scmp.ne.s32.totalorder %s573, %s574
    %p588 = scmp.eq.s32.totalorder %s79, 1
    %p589 = por %p587, %p588
    %p591 = scmp.ne.s32.totalorder %s574, %s590
    %p592 = scmp.eq.s32.totalorder %s79, 0
    %p593 = por %p591, %p592
    %s594 = ssub.s32 %s73, %s80
    %p595 = scmp.eq.s32.totalorder %s594, 0
    %s597 = sadd.s32 %s596, 1
    %s598 = scalar_select %p595, %s596, %s597
    %p601 = pneg %p595
    %p602 = scmp.eq.s32.totalorder %s73, 1
    %p603 = por %p601, %p602
    %p604 = scmp.ne.s32.totalorder %s596, %s599
    %p605 = scmp.eq.s32.totalorder %s73, 0
    %p606 = por %p604, %p605
    %p607 = scmp.ne.s32.totalorder %s596, %s599
    %p608 = scmp.eq.s32.totalorder %s78, 1
    %p609 = por %p607, %p608
    %p610 = scmp.ne.s32.totalorder %s599, %s600
    %p611 = scmp.eq.s32.totalorder %s78, 0
    %p612 = por %p610, %p611
    %p613 = scmp.ne.s32.totalorder %s599, %s600
    %p614 = scmp.eq.s32.totalorder %s79, 1
    %p615 = por %p613, %p614
    %p617 = scmp.ne.s32.totalorder %s600, %s616
    %p618 = scmp.eq.s32.totalorder %s79, 0
    %p619 = por %p617, %p618
    %s621 = sadd.s32 %s620, 1
    %p624 = scmp.eq.s32.totalorder %s73, 1
    %p625 = scmp.ne.s32.totalorder %s620, %s622
    %p626 = scmp.eq.s32.totalorder %s73, 0
    %p627 = por %p625, %p626
    %p628 = scmp.ne.s32.totalorder %s620, %s622
    %p629 = scmp.eq.s32.totalorder %s78, 1
    %p630 = por %p628, %p629
    %p631 = scmp.ne.s32.totalorder %s622, %s623
    %p632 = scmp.eq.s32.totalorder %s78, 0
    %p633 = por %p631, %p632
    %p634 = scmp.ne.s32.totalorder %s622, %s623
    %p635 = scmp.eq.s32.totalorder %s79, 1
    %p636 = por %p634, %p635
    %p638 = scmp.ne.s32.totalorder %s623, %s637
    %p639 = scmp.eq.s32.totalorder %s79, 0
    %p640 = por %p638, %p639
    %s642 = sadd.s32 %s641, 1
    %p645 = scmp.eq.s32.totalorder %s73, 1
    %p646 = scmp.ne.s32.totalorder %s641, %s643
    %p647 = scmp.eq.s32.totalorder %s73, 0
    %p648 = por %p646, %p647
    %p649 = scmp.ne.s32.totalorder %s641, %s643
    %p650 = scmp.eq.s32.totalorder %s78, 1
    %p651 = por %p649, %p650
    %p652 = scmp.ne.s32.totalorder %s643, %s644
    %p653 = scmp.eq.s32.totalorder %s78, 0
    %p654 = por %p652, %p653
    %p655 = scmp.ne.s32.totalorder %s643, %s644
    %p656 = scmp.eq.s32.totalorder %s79, 1
    %p657 = por %p655, %p656
    %p659 = scmp.ne.s32.totalorder %s644, %s658
    %p660 = scmp.eq.s32.totalorder %s79, 0
    %p661 = por %p659, %p660
    %s663 = sadd.s32 %s662, 1
    %p666 = scmp.eq.s32.totalorder %s73, 1
    %p667 = scmp.ne.s32.totalorder %s662, %s664
    %p668 = scmp.eq.s32.totalorder %s73, 0
    %p669 = por %p667, %p668
    %p670 = scmp.ne.s32.totalorder %s662, %s664
    %p671 = scmp.eq.s32.totalorder %s78, 1
    %p672 = por %p670, %p671
    %p673 = scmp.ne.s32.totalorder %s664, %s665
    %p674 = scmp.eq.s32.totalorder %s78, 0
    %p675 = por %p673, %p674
    %p676 = scmp.ne.s32.totalorder %s664, %s665
    %p677 = scmp.eq.s32.totalorder %s79, 1
    %p678 = por %p676, %p677
    %p680 = scmp.ne.s32.totalorder %s665, %s679
    %p681 = scmp.eq.s32.totalorder %s79, 0
    %p682 = por %p680, %p681
    %s684 = sadd.s32 %s683, 1
    %p687 = scmp.eq.s32.totalorder %s73, 1
    %p688 = scmp.ne.s32.totalorder %s683, %s685
    %p689 = scmp.eq.s32.totalorder %s73, 0
    %p690 = por %p688, %p689
    %p691 = scmp.ne.s32.totalorder %s683, %s685
    %p692 = scmp.eq.s32.totalorder %s78, 1
    %p693 = por %p691, %p692
    %p694 = scmp.ne.s32.totalorder %s685, %s686
    %p695 = scmp.eq.s32.totalorder %s78, 0
    %p696 = por %p694, %p695
    %p697 = scmp.ne.s32.totalorder %s685, %s686
    %p698 = scmp.eq.s32.totalorder %s79, 1
    %p699 = por %p697, %p698
    %p701 = scmp.ne.s32.totalorder %s686, %s700
    %p702 = scmp.eq.s32.totalorder %s79, 0
    %p703 = por %p701, %p702
    %s705 = sadd.s32 %s704, 1
    %p708 = scmp.eq.s32.totalorder %s73, 1
    %p709 = scmp.ne.s32.totalorder %s704, %s706
    %p710 = scmp.eq.s32.totalorder %s73, 0
    %p711 = por %p709, %p710
    %p712 = scmp.ne.s32.totalorder %s704, %s706
    %p713 = scmp.eq.s32.totalorder %s78, 1
    %p714 = por %p712, %p713
    %p715 = scmp.ne.s32.totalorder %s706, %s707
    %p716 = scmp.eq.s32.totalorder %s78, 0
    %p717 = por %p715, %p716
    %p718 = scmp.ne.s32.totalorder %s706, %s707
    %p719 = scmp.eq.s32.totalorder %s79, 1
    %p720 = por %p718, %p719
    %p722 = scmp.ne.s32.totalorder %s707, %s721
    %p723 = scmp.eq.s32.totalorder %s79, 0
    %p724 = por %p722, %p723
    %s726 = sadd.s32 %s725, 1
    %p729 = scmp.eq.s32.totalorder %s73, 1
    %p730 = scmp.ne.s32.totalorder %s725, %s727
    %p731 = scmp.eq.s32.totalorder %s73, 0
    %p732 = por %p730, %p731
    %p733 = scmp.ne.s32.totalorder %s725, %s727
    %p734 = scmp.eq.s32.totalorder %s78, 1
    %p735 = por %p733, %p734
    %p736 = scmp.ne.s32.totalorder %s727, %s728
    %p737 = scmp.eq.s32.totalorder %s78, 0
    %p738 = por %p736, %p737
    %p739 = scmp.ne.s32.totalorder %s727, %s728
    %p740 = scmp.eq.s32.totalorder %s79, 1
    %p741 = por %p739, %p740
    %p743 = scmp.ne.s32.totalorder %s728, %s742
    %p744 = scmp.eq.s32.totalorder %s79, 0
    %p745 = por %p743, %p744
    %s747 = sadd.s32 %s746, 1
    %p750 = scmp.eq.s32.totalorder %s73, 1
    %p751 = scmp.ne.s32.totalorder %s746, %s748
    %p752 = scmp.eq.s32.totalorder %s73, 0
    %p753 = por %p751, %p752
    %p754 = scmp.ne.s32.totalorder %s746, %s748
    %p755 = scmp.eq.s32.totalorder %s78, 1
    %p756 = por %p754, %p755
    %p757 = scmp.ne.s32.totalorder %s748, %s749
    %p758 = scmp.eq.s32.totalorder %s78, 0
    %p759 = por %p757, %p758
    %p760 = scmp.ne.s32.totalorder %s748, %s749
    %p761 = scmp.eq.s32.totalorder %s79, 1
    %p762 = por %p760, %p761
    %p764 = scmp.ne.s32.totalorder %s749, %s763
    %p765 = scmp.eq.s32.totalorder %s79, 0
    %p766 = por %p764, %p765
    %s768 = sadd.s32 %s767, 1
    %p771 = scmp.eq.s32.totalorder %s73, 1
    %p772 = scmp.ne.s32.totalorder %s767, %s769
    %p773 = scmp.eq.s32.totalorder %s73, 0
    %p774 = por %p772, %p773
    %p775 = scmp.ne.s32.totalorder %s767, %s769
    %p776 = scmp.eq.s32.totalorder %s78, 1
    %p777 = por %p775, %p776
    %p778 = scmp.ne.s32.totalorder %s769, %s770
    %p779 = scmp.eq.s32.totalorder %s78, 0
    %p780 = por %p778, %p779
    %p781 = scmp.ne.s32.totalorder %s769, %s770
    %p782 = scmp.eq.s32.totalorder %s79, 1
    %p783 = por %p781, %p782
    %p785 = scmp.ne.s32.totalorder %s770, %s784
    %p786 = scmp.eq.s32.totalorder %s79, 0
    %p787 = por %p785, %p786
    %s789 = sadd.s32 %s788, 1
    %p792 = scmp.eq.s32.totalorder %s73, 1
    %p793 = scmp.ne.s32.totalorder %s788, %s790
    %p794 = scmp.eq.s32.totalorder %s73, 0
    %p795 = por %p793, %p794
    %p796 = scmp.ne.s32.totalorder %s788, %s790
    %p797 = scmp.eq.s32.totalorder %s78, 1
    %p798 = por %p796, %p797
    %p799 = scmp.ne.s32.totalorder %s790, %s791
    %p800 = scmp.eq.s32.totalorder %s78, 0
    %p801 = por %p799, %p800
    %p802 = scmp.ne.s32.totalorder %s790, %s791
    %p803 = scmp.eq.s32.totalorder %s79, 1
    %p804 = por %p802, %p803
    %p806 = scmp.ne.s32.totalorder %s791, %s805
    %p807 = scmp.eq.s32.totalorder %s79, 0
    %p808 = por %p806, %p807
    %p809 = scmp.le.s32.totalorder 1, %s73
    %p810 = scmp.lt.s32.totalorder %s73, 3
    %p811 = pnand %p809, %p810
    %p812 = pneg %p811
    // Predicated region
    $region9: #{sbf_transformer_global_forward.1} parent=5 // pred_check
      _
    $region10: #{sbf_transformer_global_forward.1} parent=5 // pred_check_branch
      %814 = sbr.rel (%p811) target = $region12
    $region11: #{sbf_transformer_global_forward.1} parent=5 // pred_region
      %s815 = ssub.s32 %s73, 1
      // Predicated region
      $region13: #{sbf_transformer_global_forward.1} parent=11 // pred_check
        %p816 = pneg %p94
      $region14: #{sbf_transformer_global_forward.1} parent=11 // pred_check_branch
        %818 = sbr.rel (%p816) target = $region16
      $region15: #{sbf_transformer_global_forward.1} parent=11 // pred_region
        _
      $region16: #{sbf_transformer_global_forward.1} parent=11 // pred_fallthru
        _
      // Predicated region
      $region17: #{sbf_transformer_global_forward.1} parent=11 // pred_check
        %p819 = pneg %p115
      $region18: #{sbf_transformer_global_forward.1} parent=11 // pred_check_branch
        %821 = sbr.rel (%p819) target = $region20
      $region19: #{sbf_transformer_global_forward.1} parent=11 // pred_region
        _
      $region20: #{sbf_transformer_global_forward.1} parent=11 // pred_fallthru
        _
      // Predicated region
      $region21: #{sbf_transformer_global_forward.1} parent=11 // pred_check
        %p822 = pneg %p136
      $region22: #{sbf_transformer_global_forward.1} parent=11 // pred_check_branch
        %824 = sbr.rel (%p822) target = $region24
      $region23: #{sbf_transformer_global_forward.1} parent=11 // pred_region
        _
      $region24: #{sbf_transformer_global_forward.1} parent=11 // pred_fallthru
        _
      // Predicated region
      $region25: #{sbf_transformer_global_forward.1} parent=11 // pred_check
        %p825 = pneg %p157
      $region26: #{sbf_transformer_global_forward.1} parent=11 // pred_check_branch
        %827 = sbr.rel (%p825) target = $region28
      $region27: #{sbf_transformer_global_forward.1} parent=11 // pred_region
        _
      $region28: #{sbf_transformer_global_forward.1} parent=11 // pred_fallthru
        _
      // Predicated region
      $region29: #{sbf_transformer_global_forward.1} parent=11 // pred_check
        %p828 = pneg %p178
      $region30: #{sbf_transformer_global_forward.1} parent=11 // pred_check_branch
        %830 = sbr.rel (%p828) target = $region32
      $region31: #{sbf_transformer_global_forward.1} parent=11 // pred_region
        _
      $region32: #{sbf_transformer_global_forward.1} parent=11 // pred_fallthru
        _
      // Predicated region
      $region33: #{sbf_transformer_global_forward.1} parent=11 // pred_check
        %p831 = pneg %p199
      $region34: #{sbf_transformer_global_forward.1} parent=11 // pred_check_branch
        %833 = sbr.rel (%p831) target = $region36
      $region35: #{sbf_transformer_global_forward.1} parent=11 // pred_region
        _
      $region36: #{sbf_transformer_global_forward.1} parent=11 // pred_fallthru
        _
      // Predicated region
      $region37: #{sbf_transformer_global_forward.1} parent=11 // pred_check
        %p834 = pneg %p220
      $region38: #{sbf_transformer_global_forward.1} parent=11 // pred_check_branch
        %836 = sbr.rel (%p834) target = $region40
      $region39: #{sbf_transformer_global_forward.1} parent=11 // pred_region
        _
      $region40: #{sbf_transformer_global_forward.1} parent=11 // pred_fallthru
        _
      // Predicated region
      $region41: #{sbf_transformer_global_forward.1} parent=11 // pred_check
        %p837 = pneg %p241
      $region42: #{sbf_transformer_global_forward.1} parent=11 // pred_check_branch
        %839 = sbr.rel (%p837) target = $region44
      $region43: #{sbf_transformer_global_forward.1} parent=11 // pred_region
        _
      $region44: #{sbf_transformer_global_forward.1} parent=11 // pred_fallthru
        _
      // Predicated region
      $region45: #{sbf_transformer_global_forward.1} parent=11 // pred_check
        %p840 = pneg %p262
      $region46: #{sbf_transformer_global_forward.1} parent=11 // pred_check_branch
        %842 = sbr.rel (%p840) target = $region48
      $region47: #{sbf_transformer_global_forward.1} parent=11 // pred_region
        _
      $region48: #{sbf_transformer_global_forward.1} parent=11 // pred_fallthru
        _
      // Predicated region
      $region49: #{sbf_transformer_global_forward.1} parent=11 // pred_check
        %p843 = pneg %p283
      $region50: #{sbf_transformer_global_forward.1} parent=11 // pred_check_branch
        %845 = sbr.rel (%p843) target = $region52
      $region51: #{sbf_transformer_global_forward.1} parent=11 // pred_region
        _
      $region52: #{sbf_transformer_global_forward.1} parent=11 // pred_fallthru
        _
      // Predicated region
      $region53: #{sbf_transformer_global_forward.1} parent=11 // pred_check
        %p846 = pneg %p304
      $region54: #{sbf_transformer_global_forward.1} parent=11 // pred_check_branch
        %848 = sbr.rel (%p846) target = $region56
      $region55: #{sbf_transformer_global_forward.1} parent=11 // pred_region
        _
      $region56: #{sbf_transformer_global_forward.1} parent=11 // pred_fallthru
        _
      // Predicated region
      $region57: #{sbf_transformer_global_forward.1} parent=11 // pred_check
        %p849 = pneg %p325
      $region58: #{sbf_transformer_global_forward.1} parent=11 // pred_check_branch
        %851 = sbr.rel (%p849) target = $region60
      $region59: #{sbf_transformer_global_forward.1} parent=11 // pred_region
        _
      $region60: #{sbf_transformer_global_forward.1} parent=11 // pred_fallthru
        _
      // Predicated region
      $region61: #{sbf_transformer_global_forward.1} parent=11 // pred_check
        %p852 = pneg %p346
      $region62: #{sbf_transformer_global_forward.1} parent=11 // pred_check_branch
        %854 = sbr.rel (%p852) target = $region64
      $region63: #{sbf_transformer_global_forward.1} parent=11 // pred_region
        _
      $region64: #{sbf_transformer_global_forward.1} parent=11 // pred_fallthru
        _
      // Predicated region
      $region65: #{sbf_transformer_global_forward.1} parent=11 // pred_check
        %p855 = pneg %p367
      $region66: #{sbf_transformer_global_forward.1} parent=11 // pred_check_branch
        %857 = sbr.rel (%p855) target = $region68
      $region67: #{sbf_transformer_global_forward.1} parent=11 // pred_region
        _
      $region68: #{sbf_transformer_global_forward.1} parent=11 // pred_fallthru
        _
      // Predicated region
      $region69: #{sbf_transformer_global_forward.1} parent=11 // pred_check
        %p858 = pneg %p388
      $region70: #{sbf_transformer_global_forward.1} parent=11 // pred_check_branch
        %860 = sbr.rel (%p858) target = $region72
      $region71: #{sbf_transformer_global_forward.1} parent=11 // pred_region
        _
      $region72: #{sbf_transformer_global_forward.1} parent=11 // pred_fallthru
        _
      // Predicated region
      $region73: #{sbf_transformer_global_forward.1} parent=11 // pred_check
        %p861 = pneg %p409
      $region74: #{sbf_transformer_global_forward.1} parent=11 // pred_check_branch
        %863 = sbr.rel (%p861) target = $region76
      $region75: #{sbf_transformer_global_forward.1} parent=11 // pred_region
        _
      $region76: #{sbf_transformer_global_forward.1} parent=11 // pred_fallthru
        _
      // Predicated region
      $region77: #{sbf_transformer_global_forward.1} parent=11 // pred_check
        %p864 = pneg %p430
      $region78: #{sbf_transformer_global_forward.1} parent=11 // pred_check_branch
        %866 = sbr.rel (%p864) target = $region80
      $region79: #{sbf_transformer_global_forward.1} parent=11 // pred_region
        _
      $region80: #{sbf_transformer_global_forward.1} parent=11 // pred_fallthru
        _
      // Predicated region
      $region81: #{sbf_transformer_global_forward.1} parent=11 // pred_check
        %p867 = pneg %p633
      $region82: #{sbf_transformer_global_forward.1} parent=11 // pred_check_branch
        %869 = sbr.rel (%p867) target = $region84
      $region83: #{sbf_transformer_global_forward.1} parent=11 // pred_region
        _
      $region84: #{sbf_transformer_global_forward.1} parent=11 // pred_fallthru
        _
      // Predicated region
      $region85: #{sbf_transformer_global_forward.1} parent=11 // pred_check
        %p870 = pneg %p654
      $region86: #{sbf_transformer_global_forward.1} parent=11 // pred_check_branch
        %872 = sbr.rel (%p870) target = $region88
      $region87: #{sbf_transformer_global_forward.1} parent=11 // pred_region
        _
      $region88: #{sbf_transformer_global_forward.1} parent=11 // pred_fallthru
        _
      // Predicated region
      $region89: #{sbf_transformer_global_forward.1} parent=11 // pred_check
        %p873 = pneg %p675
      $region90: #{sbf_transformer_global_forward.1} parent=11 // pred_check_branch
        %875 = sbr.rel (%p873) target = $region92
      $region91: #{sbf_transformer_global_forward.1} parent=11 // pred_region
        _
      $region92: #{sbf_transformer_global_forward.1} parent=11 // pred_fallthru
        _
      // Predicated region
      $region93: #{sbf_transformer_global_forward.1} parent=11 // pred_check
        %p876 = pneg %p696
      $region94: #{sbf_transformer_global_forward.1} parent=11 // pred_check_branch
        %878 = sbr.rel (%p876) target = $region96
      $region95: #{sbf_transformer_global_forward.1} parent=11 // pred_region
        _
      $region96: #{sbf_transformer_global_forward.1} parent=11 // pred_fallthru
        _
      // Predicated region
      $region97: #{sbf_transformer_global_forward.1} parent=11 // pred_check
        %p879 = pneg %p717
      $region98: #{sbf_transformer_global_forward.1} parent=11 // pred_check_branch
        %881 = sbr.rel (%p879) target = $region100
      $region99: #{sbf_transformer_global_forward.1} parent=11 // pred_region
        _
      $region100: #{sbf_transformer_global_forward.1} parent=11 // pred_fallthru
        _
      // Predicated region
      $region101: #{sbf_transformer_global_forward.1} parent=11 // pred_check
        %p882 = pneg %p738
      $region102: #{sbf_transformer_global_forward.1} parent=11 // pred_check_branch
        %884 = sbr.rel (%p882) target = $region104
      $region103: #{sbf_transformer_global_forward.1} parent=11 // pred_region
        _
      $region104: #{sbf_transformer_global_forward.1} parent=11 // pred_fallthru
        _
      // Predicated region
      $region105: #{sbf_transformer_global_forward.1} parent=11 // pred_check
        %p885 = pneg %p759
      $region106: #{sbf_transformer_global_forward.1} parent=11 // pred_check_branch
        %887 = sbr.rel (%p885) target = $region108
      $region107: #{sbf_transformer_global_forward.1} parent=11 // pred_region
        _
      $region108: #{sbf_transformer_global_forward.1} parent=11 // pred_fallthru
        _
      // Predicated region
      $region109: #{sbf_transformer_global_forward.1} parent=11 // pred_check
        %p888 = pneg %p780
      $region110: #{sbf_transformer_global_forward.1} parent=11 // pred_check_branch
        %890 = sbr.rel (%p888) target = $region112
      $region111: #{sbf_transformer_global_forward.1} parent=11 // pred_region
        _
      $region112: #{sbf_transformer_global_forward.1} parent=11 // pred_fallthru
        _
    $region12: #{sbf_transformer_global_forward.1} parent=5 // pred_fallthru
      _
    %p891 = scmp.lt.s32.totalorder %s73, 2
    // Predicated region
    $region113: #{sbf_transformer_global_forward.1} parent=5 // pred_check
      %p892 = pneg %p891
    $region114: #{sbf_transformer_global_forward.1} parent=5 // pred_check_branch
      %894 = sbr.rel (%p892) target = $region116
    $region115: #{sbf_transformer_global_forward.1} parent=5 // pred_region
      // Predicated region
      $region117: #{sbf_transformer_global_forward.1} parent=115 // pred_check
        %p895 = pneg %p450
      $region118: #{sbf_transformer_global_forward.1} parent=115 // pred_check_branch
        %897 = sbr.rel (%p895) target = $region120
      $region119: #{sbf_transformer_global_forward.1} parent=115 // pred_region
        %p898 = scmp.lt.s32.totalorder %s73, 1
        %s899 = scalar_select %p898, %s73, 1
        %s900 = smul.addr %s899, 4
        %s901 = smul.addr %s900, 4
        %s902 = scalar_lea.vmem %s35, %s901
      $region120: #{sbf_transformer_global_forward.1} parent=115 // pred_fallthru
        _
      // Predicated region
      $region121: #{sbf_transformer_global_forward.1} parent=115 // pred_check
        %p903 = pneg %p476
      $region122: #{sbf_transformer_global_forward.1} parent=115 // pred_check_branch
        %905 = sbr.rel (%p903) target = $region124
      $region123: #{sbf_transformer_global_forward.1} parent=115 // pred_region
        %p906 = scmp.lt.s32.totalorder %s73, 1
        %s907 = scalar_select %p906, %s73, 1
        %s908 = scalar_lea.vmem %s37, %s907
      $region124: #{sbf_transformer_global_forward.1} parent=115 // pred_fallthru
        _
      // Predicated region
      $region125: #{sbf_transformer_global_forward.1} parent=115 // pred_check
        %p909 = pneg %p502
      $region126: #{sbf_transformer_global_forward.1} parent=115 // pred_check_branch
        %911 = sbr.rel (%p909) target = $region128
      $region127: #{sbf_transformer_global_forward.1} parent=115 // pred_region
        %p912 = scmp.lt.s32.totalorder %s73, 1
        %s913 = scalar_select %p912, %s73, 1
        %s914 = smul.addr %s913, 4
        %s915 = smul.addr %s914, 4
        %s916 = scalar_lea.vmem %s39, %s915
      $region128: #{sbf_transformer_global_forward.1} parent=115 // pred_fallthru
        _
      // Predicated region
      $region129: #{sbf_transformer_global_forward.1} parent=115 // pred_check
        %p917 = pneg %p528
      $region130: #{sbf_transformer_global_forward.1} parent=115 // pred_check_branch
        %919 = sbr.rel (%p917) target = $region132
      $region131: #{sbf_transformer_global_forward.1} parent=115 // pred_region
        %p920 = scmp.lt.s32.totalorder %s73, 1
        %s921 = scalar_select %p920, %s73, 1
        %s922 = smul.addr %s921, 4
        %s923 = smul.addr %s922, 4
        %s924 = scalar_lea.vmem %s41, %s923
      $region132: #{sbf_transformer_global_forward.1} parent=115 // pred_fallthru
        _
      // Predicated region
      $region133: #{sbf_transformer_global_forward.1} parent=115 // pred_check
        %p925 = pneg %p554
      $region134: #{sbf_transformer_global_forward.1} parent=115 // pred_check_branch
        %927 = sbr.rel (%p925) target = $region136
      $region135: #{sbf_transformer_global_forward.1} parent=115 // pred_region
        %p928 = scmp.lt.s32.totalorder %s73, 1
        %s929 = scalar_select %p928, %s73, 1
        %s930 = smul.addr %s929, 4
        %s931 = scalar_lea.vmem %s43, %s930
      $region136: #{sbf_transformer_global_forward.1} parent=115 // pred_fallthru
        _
      // Predicated region
      $region137: #{sbf_transformer_global_forward.1} parent=115 // pred_check
        %p932 = pneg %p580
      $region138: #{sbf_transformer_global_forward.1} parent=115 // pred_check_branch
        %934 = sbr.rel (%p932) target = $region140
      $region139: #{sbf_transformer_global_forward.1} parent=115 // pred_region
        %p935 = scmp.lt.s32.totalorder %s73, 1
        %s936 = scalar_select %p935, %s73, 1
        %s937 = smul.addr %s936, 28
        %s938 = smul.addr %s937, 4
        %s939 = scalar_lea.vmem %s45, %s938
      $region140: #{sbf_transformer_global_forward.1} parent=115 // pred_fallthru
        _
      // Predicated region
      $region141: #{sbf_transformer_global_forward.1} parent=115 // pred_check
        %p940 = pneg %p606
      $region142: #{sbf_transformer_global_forward.1} parent=115 // pred_check_branch
        %942 = sbr.rel (%p940) target = $region144
      $region143: #{sbf_transformer_global_forward.1} parent=115 // pred_region
        %p943 = scmp.lt.s32.totalorder %s73, 1
        %s944 = scalar_select %p943, %s73, 1
        %s945 = smul.addr %s944, 7
        %s946 = scalar_lea.vmem %s47, %s945
      $region144: #{sbf_transformer_global_forward.1} parent=115 // pred_fallthru
        _
    $region116: #{sbf_transformer_global_forward.1} parent=5 // pred_fallthru
      _
    %p947 = scmp.le.s32.totalorder 1, %s73
    %p948 = scmp.lt.s32.totalorder %s73, 3
    %p949 = pnand %p947, %p948
    %p950 = pneg %p949
    // Predicated region
    $region145: #{sbf_transformer_global_forward.1} parent=5 // pred_check
      _
    $region146: #{sbf_transformer_global_forward.1} parent=5 // pred_check_branch
      %952 = sbr.rel (%p949) target = $region148
    $region147: #{sbf_transformer_global_forward.1} parent=5 // pred_region
      %s953 = ssub.s32 %s73, 1
      %p954 = pneg %p94
      %p955 = pneg %p91
      %p956 = pneg %p115
      %p957 = pneg %p112
      %p958 = pneg %p136
      %p959 = pneg %p133
      %p960 = pneg %p157
      %p961 = pneg %p154
      %p962 = pneg %p178
      %p963 = pneg %p175
      %p964 = pneg %p199
      %p965 = pneg %p196
      %p966 = pneg %p220
      %p967 = pneg %p217
      %p968 = pneg %p241
      %p969 = pneg %p238
      %p970 = pneg %p262
      %p971 = pneg %p259
      %p972 = pneg %p283
      %p973 = pneg %p280
      %p974 = pneg %p304
      %p975 = pneg %p301
      %p976 = pneg %p325
      %p977 = pneg %p322
      %p978 = pneg %p346
      %p979 = pneg %p343
      %p980 = pneg %p367
      %p981 = pneg %p364
      %p982 = pneg %p388
      %p983 = pneg %p385
      %p984 = pneg %p409
      %p985 = pneg %p406
      %p986 = pneg %p430
      %p987 = pneg %p427
      %p988 = scmp.lt.s32.totalorder %s78, 1
      %s989 = scalar_select %p988, %s78, 1
      %s990 = smul.addr %s989, 4
      %s991 = smul.addr %s990, 4
      %s992 = scalar_lea.vmem %s35, %s991
      %p993 = pneg %p456
      %p994 = pneg %p453
      %p995 = scmp.lt.s32.totalorder %s78, 1
      %s996 = scalar_select %p995, %s78, 1
      %s997 = scalar_lea.vmem %s37, %s996
      %p998 = pneg %p482
      %p999 = pneg %p479
      %p1000 = scmp.lt.s32.totalorder %s78, 1
      %s1001 = scalar_select %p1000, %s78, 1
      %s1002 = smul.addr %s1001, 4
      %s1003 = smul.addr %s1002, 4
      %s1004 = scalar_lea.vmem %s39, %s1003
      %p1005 = pneg %p508
      %p1006 = pneg %p505
      %p1007 = scmp.lt.s32.totalorder %s78, 1
      %s1008 = scalar_select %p1007, %s78, 1
      %s1009 = smul.addr %s1008, 4
      %s1010 = smul.addr %s1009, 4
      %s1011 = scalar_lea.vmem %s41, %s1010
      %p1012 = pneg %p534
      %p1013 = pneg %p531
      %p1014 = scmp.lt.s32.totalorder %s78, 1
      %s1015 = scalar_select %p1014, %s78, 1
      %s1016 = smul.addr %s1015, 4
      %s1017 = scalar_lea.vmem %s43, %s1016
      %p1018 = pneg %p560
      %p1019 = pneg %p557
      %p1020 = scmp.lt.s32.totalorder %s78, 1
      %s1021 = scalar_select %p1020, %s78, 1
      %s1022 = smul.addr %s1021, 28
      %s1023 = smul.addr %s1022, 4
      %s1024 = scalar_lea.vmem %s45, %s1023
      %p1025 = pneg %p586
      %p1026 = pneg %p583
      %p1027 = scmp.lt.s32.totalorder %s78, 1
      %s1028 = scalar_select %p1027, %s78, 1
      %s1029 = smul.addr %s1028, 7
      %s1030 = scalar_lea.vmem %s47, %s1029
      %p1031 = pneg %p612
      %p1032 = pneg %p609
      %p1033 = pneg %p633
      %p1034 = pneg %p630
      %p1035 = pneg %p654
      %p1036 = pneg %p651
      %p1037 = pneg %p675
      %p1038 = pneg %p672
      %p1039 = pneg %p696
      %p1040 = pneg %p693
      %p1041 = pneg %p717
      %p1042 = pneg %p714
      %p1043 = pneg %p738
      %p1044 = pneg %p735
      %p1045 = pneg %p759
      %p1046 = pneg %p756
      %p1047 = pneg %p780
      %p1048 = pneg %p777
      %p1049 = pneg %p801
      %p1050 = pneg %p798
      %p1051 = scmp.lt.s32.totalorder %s78, 1
      %s1052 = scalar_select %p1051, %s78, 1
      %s1053 = smul.addr %s1052, 4
      %s1054 = smul.addr %s1053, 4
      %s1055 = scalar_lea.vmem %s35, %s1054
      %p1056 = scmp.lt.s32.totalorder %s78, 1
      %s1057 = scalar_select %p1056, %s78, 1
      %s1058 = scalar_lea.vmem %s37, %s1057
      %p1059 = scmp.lt.s32.totalorder %s78, 1
      %s1060 = scalar_select %p1059, %s78, 1
      %s1061 = smul.addr %s1060, 4
      %s1062 = smul.addr %s1061, 4
      %s1063 = scalar_lea.vmem %s39, %s1062
      %p1064 = scmp.lt.s32.totalorder %s78, 1
      %s1065 = scalar_select %p1064, %s78, 1
      %s1066 = smul.addr %s1065, 4
      %s1067 = smul.addr %s1066, 4
      %s1068 = scalar_lea.vmem %s41, %s1067
      %p1069 = scmp.lt.s32.totalorder %s78, 1
      %s1070 = scalar_select %p1069, %s78, 1
      %s1071 = smul.addr %s1070, 4
      %s1072 = scalar_lea.vmem %s43, %s1071
      %p1073 = scmp.lt.s32.totalorder %s78, 1
      %s1074 = scalar_select %p1073, %s78, 1
      %s1075 = smul.addr %s1074, 28
      %s1076 = smul.addr %s1075, 4
      %s1077 = scalar_lea.vmem %s45, %s1076
      %p1078 = scmp.lt.s32.totalorder %s78, 1
      %s1079 = scalar_select %p1078, %s78, 1
      %s1080 = smul.addr %s1079, 7
      %s1081 = scalar_lea.vmem %s47, %s1080
      %p1083 = scmp.eq.s32.totalorder %s78, 0
      // Predicated region
      $region149: #{sbf_transformer_global_forward.1} parent=147 // pred_check
        %p1084 = pneg %p1083
      $region150: #{sbf_transformer_global_forward.1} parent=147 // pred_check_branch
        %1086 = sbr.rel (%p1084) target = $region152
      $region151: #{sbf_transformer_global_forward.1} parent=147 // pred_region
        %v1087 = vld [vmem:[%s3] sm:$0xf]
        %v1088 = vld [vmem:[%s3 + $0x4] sm:$0xf]
        %v1089 = vld [vmem:[%s3 + $0x8] sm:$0xf]
        %v1090 = vld [vmem:[%s3 + $0xc] sm:$0xf]
        %v1091 = vld [vmem:[%s3 + $0x10] sm:$0xf]
        %v1092 = vld [vmem:[%s27] sm:$0xf]
        %v1093 = vld [vmem:[%s27 + $0x4] sm:$0xf]
        %v1094 = vld [vmem:[%s27 + $0x8] sm:$0xf]
        %v1095 = vld [vmem:[%s27 + $0xc] sm:$0xf]
        %v1096 = vld [vmem:[%s29] sm:$0x1]
        %v1098 = vlaneseq
        %v1099 = vshrl.u32 %v1098, 7
        %v1100 = vsub.s32 0, %v1099
        %v1101 = vrot.slane %v1096, %v1100
        %v1108 = vunpack.c.l.b16 %v1087
        %v1109 = vunpack.c.l.b16 %v1088
        %v1110 = vunpack.c.l.b16 %v1089
        %v1111 = vunpack.c.l.b16 %v1090
        %v1112 = vunpack.c.l.b16 %v1091
        %v1113 = vpack.c.b16 %v1109, %v1108
        %v1114 = vpack.c.b16 %v1111, %v1110
        %v1115 = vpack.c.b16 %v1112, %v1112
        %v1120 = vunpack.c.l.b16 %v1092
        %v1121 = vunpack.c.l.b16 %v1093
        %v1122 = vunpack.c.l.b16 %v1094
        %v1123 = vunpack.c.l.b16 %v1095
        %v1124 = vpack.c.b16 %v1121, %v1120
        %v1125 = vpack.c.b16 %v1123, %v1122
        %vm1128 = vcmask 261120
        %v1130 = vsel %vm1128, %v1113, 0
        %v1133 = vsel %vm1128, %v1114, 0
        %v1136 = vsel %vm1128, %v1115, 0
        %1138 = vmatprep.subr.bf16.mxu0 0
        %1139 = vmatpush1.bf16.msra.mxu0 %v1124
        %1140 = vmatprep.subr.bf16.mxu0 0
        %1141 = vmatpush1.bf16.msra.mxu0 %v1125
        %1142 = vmatprep.subr.bf16.mxu0 0
        %1143 = vmatpush1.bf16.msra.mxu0 0
        %1144 = vmatprep.subr.bf16.mxu0 0
        %1145 = vmatpush1.bf16.msra.mxu0 0
        %1146 = vmatprep.subr.bf16.mxu0 0
        %1147 = vmatpush1.bf16.msra.mxu0 0
        %1148 = vmatprep.subr.bf16.mxu0 0
        %1149 = vmatpush1.bf16.msra.mxu0 0
        %1150 = vmatprep.subr.bf16.mxu0 0
        %1151 = vmatpush1.bf16.msra.mxu0 0
        %1152 = vmatprep.subr.bf16.mxu0 0
        %1153 = vmatpush1.bf16.msra.mxu0 0
        %1154 = vmatprep.subr.bf16.mxu0 0
        %1155 = vmatpush1.bf16.msra.mxu0 0
        %1156 = vmatprep.subr.bf16.mxu0 0
        %1157 = vmatpush1.bf16.msra.mxu0 0
        %1158 = vmatprep.subr.bf16.mxu0 0
        %1159 = vmatpush1.bf16.msra.mxu0 0
        %1160 = vmatprep.subr.bf16.mxu0 0
        %1161 = vmatpush1.bf16.msra.mxu0 0
        %1162 = vmatprep.subr.bf16.mxu0 0
        %1163 = vmatpush1.bf16.msra.mxu0 0
        %1164 = vmatprep.subr.bf16.mxu0 0
        %1165 = vmatpush1.bf16.msra.mxu0 0
        %1166 = vmatprep.subr.bf16.mxu0 0
        %1167 = vmatpush1.bf16.msra.mxu0 0
        %1168 = vmatprep.subr.bf16.mxu0 0
        %1169 = vmatpush1.bf16.msra.mxu0 0
        %1170 = vmatprep.mubr.bf16.mxu0 0
        %1171 = vmatmul.mubr.bf16.gmra.mrb[0].mxu0 %v1130
        %v1172 = vpop.f32.mrb[0].mxu0
        %v1173 = vadd.f32 %v1101, %v1172
        %v1174 = vpop.f32.mrb[0].mxu0
        %v1175 = vpop.f32.mrb[0].mxu0
        %v1176 = vadd.f32 %v1101, %v1175
        %v1177 = vpop.f32.mrb[0].mxu0
        %1178 = vmatprep.mubr.bf16.mxu0 0
        %1179 = vmatmul.mubr.bf16.gmra.mrb[0].mxu0 %v1133
        %v1180 = vpop.f32.mrb[0].mxu0
        %v1181 = vadd.f32 %v1101, %v1180
        %v1182 = vpop.f32.mrb[0].mxu0
        %v1183 = vpop.f32.mrb[0].mxu0
        %v1184 = vadd.f32 %v1101, %v1183
        %v1185 = vpop.f32.mrb[0].mxu0
        %1186 = vmatprep.mubr.bf16.mxu0 0
        %1187 = vmatmul.mubr.bf16.gmra.mrb[0].mxu0 %v1136
        %v1188 = vpop.f32.mrb[0].mxu0
        %v1189 = vadd.f32 %v1101, %v1188
        %v1190 = vpop.f32.mrb[0].mxu0
        %v1191 = vpop.f32.mrb[0].mxu0
        %v1192 = vpop.f32.mrb[0].mxu0
        %1193 = vdwg.mxu0
        %v1194 = vsub.f32 0.0, %v1173
        %v1195 = vsub.f32 0.0, %v1176
        %v1196 = vsub.f32 0.0, %v1181
        %v1197 = vsub.f32 0.0, %v1184
        %v1198 = vsub.f32 0.0, %v1189
        %v1199 = vmul.f32 %v1194, 1.442695
        %v1200 = vpow.pop %v1199
        %v1201 = vmul.f32 %v1195, 1.442695
        %v1202 = vpow.pop %v1201
        %v1203 = vmul.f32 %v1196, 1.442695
        %v1204 = vpow.pop %v1203
        %v1205 = vmul.f32 %v1197, 1.442695
        %v1206 = vpow.pop %v1205
        %v1207 = vmul.f32 %v1198, 1.442695
        %v1208 = vpow.pop %v1207
        %v1209 = vadd.f32 %v1200, 1.0
        %v1210 = vadd.f32 %v1202, 1.0
        %v1211 = vadd.f32 %v1204, 1.0
        %v1212 = vadd.f32 %v1206, 1.0
        %v1213 = vadd.f32 %v1208, 1.0
        %v1214 = vrcp.pop %v1209
        %v1215 = vmul.f32 %v1173, %v1214
        %v1216 = vrcp.pop %v1210
        %v1217 = vmul.f32 %v1176, %v1216
        %v1218 = vrcp.pop %v1211
        %v1219 = vmul.f32 %v1181, %v1218
        %v1220 = vrcp.pop %v1212
        %v1221 = vmul.f32 %v1184, %v1220
        %v1222 = vrcp.pop %v1213
        %v1223 = vmul.f32 %v1189, %v1222
        %v1224 = vpack.c.bf16 %v1217, %v1215
        %v1225 = vpack.c.bf16 %v1221, %v1219
        %v1226 = vpack.c.bf16 %v1223, %v1223
        %v1227 = vld [vmem:[%s31] sm:$0xf]
        %v1228 = vld [vmem:[%s31 + $0x4] sm:$0xf]
        %v1229 = vld [vmem:[%s31 + $0x8] sm:$0xf]
        %v1230 = vld [vmem:[%s31 + $0xc] sm:$0xf]
        %v1231 = vld [vmem:[%s33] sm:$0x1]
        %v1233 = vlaneseq
        %v1234 = vshrl.u32 %v1233, 7
        %v1235 = vsub.s32 0, %v1234
        %v1236 = vrot.slane %v1231, %v1235
        %v1242 = vunpack.c.l.b16 %v1227
        %v1243 = vunpack.c.l.b16 %v1228
        %v1244 = vunpack.c.l.b16 %v1229
        %v1245 = vunpack.c.l.b16 %v1230
        %v1246 = vpack.c.b16 %v1243, %v1242
        %v1247 = vpack.c.b16 %v1245, %v1244
        %v1251 = vsel %vm1128, %v1224, 0
        %v1254 = vsel %vm1128, %v1225, 0
        %v1257 = vsel %vm1128, %v1226, 0
        %1259 = vmatprep.subr.bf16.mxu0 0
        %1260 = vmatpush1.bf16.msra.mxu0 %v1246
        %1261 = vmatprep.subr.bf16.mxu0 0
        %1262 = vmatpush1.bf16.msra.mxu0 %v1247
        %1263 = vmatprep.subr.bf16.mxu0 0
        %1264 = vmatpush1.bf16.msra.mxu0 0
        %1265 = vmatprep.subr.bf16.mxu0 0
        %1266 = vmatpush1.bf16.msra.mxu0 0
        %1267 = vmatprep.subr.bf16.mxu0 0
        %1268 = vmatpush1.bf16.msra.mxu0 0
        %1269 = vmatprep.subr.bf16.mxu0 0
        %1270 = vmatpush1.bf16.msra.mxu0 0
        %1271 = vmatprep.subr.bf16.mxu0 0
        %1272 = vmatpush1.bf16.msra.mxu0 0
        %1273 = vmatprep.subr.bf16.mxu0 0
        %1274 = vmatpush1.bf16.msra.mxu0 0
        %1275 = vmatprep.subr.bf16.mxu0 0
        %1276 = vmatpush1.bf16.msra.mxu0 0
        %1277 = vmatprep.subr.bf16.mxu0 0
        %1278 = vmatpush1.bf16.msra.mxu0 0
        %1279 = vmatprep.subr.bf16.mxu0 0
        %1280 = vmatpush1.bf16.msra.mxu0 0
        %1281 = vmatprep.subr.bf16.mxu0 0
        %1282 = vmatpush1.bf16.msra.mxu0 0
        %1283 = vmatprep.subr.bf16.mxu0 0
        %1284 = vmatpush1.bf16.msra.mxu0 0
        %1285 = vmatprep.subr.bf16.mxu0 0
        %1286 = vmatpush1.bf16.msra.mxu0 0
        %1287 = vmatprep.subr.bf16.mxu0 0
        %1288 = vmatpush1.bf16.msra.mxu0 0
        %1289 = vmatprep.subr.bf16.mxu0 0
        %1290 = vmatpush1.bf16.msra.mxu0 0
        %1291 = vmatprep.mubr.bf16.mxu0 0
        %1292 = vmatmul.mubr.bf16.gmra.mrb[0].mxu0 %v1251
        %v1293 = vpop.f32.mrb[0].mxu0
        %v1294 = vadd.f32 %v1236, %v1293
        %v1295 = vpop.f32.mrb[0].mxu0
        %v1296 = vpop.f32.mrb[0].mxu0
        %v1297 = vadd.f32 %v1236, %v1296
        %v1298 = vpop.f32.mrb[0].mxu0
        %1299 = vmatprep.mubr.bf16.mxu0 0
        %1300 = vmatmul.mubr.bf16.gmra.mrb[0].mxu0 %v1254
        %v1301 = vpop.f32.mrb[0].mxu0
        %v1302 = vadd.f32 %v1236, %v1301
        %v1303 = vpop.f32.mrb[0].mxu0
        %v1304 = vpop.f32.mrb[0].mxu0
        %v1305 = vadd.f32 %v1236, %v1304
        %v1306 = vpop.f32.mrb[0].mxu0
        %1307 = vmatprep.mubr.bf16.mxu0 0
        %1308 = vmatmul.mubr.bf16.gmra.mrb[0].mxu0 %v1257
        %v1309 = vpop.f32.mrb[0].mxu0
        %v1310 = vadd.f32 %v1236, %v1309
        %v1311 = vpop.f32.mrb[0].mxu0
        %v1312 = vpop.f32.mrb[0].mxu0
        %v1313 = vpop.f32.mrb[0].mxu0
        %1314 = vdwg.mxu0
        %v1315 = vpack.c.bf16 %v1297, %v1294
        %v1316 = vpack.c.bf16 %v1305, %v1302
        %v1317 = vpack.c.bf16 %v1310, %v1310
        %v1321 = vunpack.c.l.b16 %v1315
        %v1322 = vunpack.c.h.b16 %v1315
        %v1323 = vunpack.c.l.b16 %v1316
        %v1324 = vunpack.c.h.b16 %v1316
        %v1325 = vunpack.c.l.b16 %v1317
        %v1326 = vpack.c.b16 %v1321, %v1321
        %v1327 = vpack.c.b16 %v1322, %v1322
        %v1328 = vpack.c.b16 %v1323, %v1323
        %v1329 = vpack.c.b16 %v1324, %v1324
        %v1330 = vpack.c.b16 %v1325, %v1325
        %vm1336 = vcmask 257024
        %1337 = vst.msk [vmem:[#allocation2] sm:$0xf] %vm1336, %v1326
        %1338 = vst.msk [vmem:[#allocation2 + $0x4] sm:$0xf] %vm1336, %v1327
        %1339 = vst.msk [vmem:[#allocation2 + $0x8] sm:$0xf] %vm1336, %v1328
        %1340 = vst.msk [vmem:[#allocation2 + $0xc] sm:$0xf] %vm1336, %v1329
        %1341 = vst.msk [vmem:[#allocation2 + $0x10] sm:$0xf] %vm1336, %v1330
        %v1342 = vld [vmem:[%s1] sm:$0xf]
        %v1343 = vld [vmem:[%s1 + $0x4] sm:$0xf]
        %v1344 = vunpack.c.l.bf16 %v1342
        %v1345 = vunpack.c.l.bf16 %v1343
        %1346 = vst.msk [vmem:[#allocation3] sm:$0xff] %vm1128, %v1344
        %1347 = vst.msk [vmem:[#allocation3 + $0x8] sm:$0xff] %vm1128, %v1345
      $region152: #{sbf_transformer_global_forward.1} parent=147 // pred_fallthru
        _
      %v1348 = vld [vmem:[#allocation3] sm:$0xff]
      %v1349 = vld [vmem:[#allocation3 + $0x8] sm:$0xff]
      %v1350 = vpack.c.bf16 %v1349, %v1348
      %v1351 = vld [vmem:[#allocation2] sm:$0xf]
      %v1352 = vld [vmem:[#allocation2 + $0x4] sm:$0xf]
      %v1353 = vld [vmem:[#allocation2 + $0x8] sm:$0xf]
      %v1354 = vld [vmem:[#allocation2 + $0xc] sm:$0xf]
      %v1355 = vld [vmem:[#allocation2 + $0x10] sm:$0xf]
      %v1356 = vld [vmem:[%s1055] sm:$0xf]
      %v1357 = vld [vmem:[%s1055 + $0x4] sm:$0xf]
      %v1358 = vld [vmem:[%s1055 + $0x8] sm:$0xf]
      %v1359 = vld [vmem:[%s1055 + $0xc] sm:$0xf]
      %v1360 = vld [vmem:[%s1058] sm:$0x1]
      %v1362 = vlaneseq
      %v1363 = vshrl.u32 %v1362, 7
      %v1364 = vsub.s32 0, %v1363
      %v1365 = vrot.slane %v1360, %v1364
      %v1371 = vunpack.c.l.b16 %v1356
      %v1372 = vunpack.c.l.b16 %v1357
      %v1373 = vunpack.c.l.b16 %v1358
      %v1374 = vunpack.c.l.b16 %v1359
      %v1375 = vpack.c.b16 %v1372, %v1371
      %v1376 = vpack.c.b16 %v1374, %v1373
      %vm1379 = vcmask 261120
      %v1381 = vsel %vm1379, %v1350, 0
      %1383 = vmatprep.subr.bf16.mxu0 0
      %1384 = vmatpush1.bf16.msra.mxu0 %v1375
      %1385 = vmatprep.subr.bf16.mxu0 0
      %1386 = vmatpush1.bf16.msra.mxu0 %v1376
      %1387 = vmatprep.subr.bf16.mxu0 0
      %1388 = vmatpush1.bf16.msra.mxu0 0
      %1389 = vmatprep.subr.bf16.mxu0 0
      %1390 = vmatpush1.bf16.msra.mxu0 0
      %1391 = vmatprep.subr.bf16.mxu0 0
      %1392 = vmatpush1.bf16.msra.mxu0 0
      %1393 = vmatprep.subr.bf16.mxu0 0
      %1394 = vmatpush1.bf16.msra.mxu0 0
      %1395 = vmatprep.subr.bf16.mxu0 0
      %1396 = vmatpush1.bf16.msra.mxu0 0
      %1397 = vmatprep.subr.bf16.mxu0 0
      %1398 = vmatpush1.bf16.msra.mxu0 0
      %1399 = vmatprep.subr.bf16.mxu0 0
      %1400 = vmatpush1.bf16.msra.mxu0 0
      %1401 = vmatprep.subr.bf16.mxu0 0
      %1402 = vmatpush1.bf16.msra.mxu0 0
      %1403 = vmatprep.subr.bf16.mxu0 0
      %1404 = vmatpush1.bf16.msra.mxu0 0
      %1405 = vmatprep.subr.bf16.mxu0 0
      %1406 = vmatpush1.bf16.msra.mxu0 0
      %1407 = vmatprep.subr.bf16.mxu0 0
      %1408 = vmatpush1.bf16.msra.mxu0 0
      %1409 = vmatprep.subr.bf16.mxu0 0
      %1410 = vmatpush1.bf16.msra.mxu0 0
      %1411 = vmatprep.subr.bf16.mxu0 0
      %1412 = vmatpush1.bf16.msra.mxu0 0
      %1413 = vmatprep.subr.bf16.mxu0 0
      %1414 = vmatpush1.bf16.msra.mxu0 0
      %1415 = vmatprep.mubr.bf16.mxu0 0
      %1416 = vmatmul.mubr.bf16.gmra.mrb[0].mxu0 %v1381
      %v1417 = vpop.f32.mrb[0].mxu0
      %v1418 = vadd.f32 %v1365, %v1417
      %v1419 = vpop.f32.mrb[0].mxu0
      %v1420 = vpop.f32.mrb[0].mxu0
      %v1421 = vadd.f32 %v1365, %v1420
      %v1422 = vpop.f32.mrb[0].mxu0
      %1423 = vdwg.mxu0
      %v1424 = vpack.c.bf16 %v1421, %v1418
      %v1425 = vld [vmem:[%s1063] sm:$0xf]
      %v1426 = vld [vmem:[%s1063 + $0x4] sm:$0xf]
      %v1427 = vld [vmem:[%s1063 + $0x8] sm:$0xf]
      %v1428 = vld [vmem:[%s1063 + $0xc] sm:$0xf]
      %v1434 = vunpack.c.l.b16 %v1351
      %v1435 = vunpack.c.l.b16 %v1352
      %v1436 = vunpack.c.l.b16 %v1353
      %v1437 = vunpack.c.l.b16 %v1354
      %v1438 = vunpack.c.l.b16 %v1355
      %v1439 = vpack.c.b16 %v1435, %v1434
      %v1440 = vpack.c.b16 %v1437, %v1436
      %v1441 = vpack.c.b16 %v1438, %v1438
      %v1446 = vunpack.c.l.b16 %v1425
      %v1447 = vunpack.c.l.b16 %v1426
      %v1448 = vunpack.c.l.b16 %v1427
      %v1449 = vunpack.c.l.b16 %v1428
      %v1450 = vpack.c.b16 %v1447, %v1446
      %v1451 = vpack.c.b16 %v1449, %v1448
      %v1455 = vsel %vm1379, %v1439, 0
      %v1458 = vsel %vm1379, %v1440, 0
      %v1461 = vsel %vm1379, %v1441, 0
      %1463 = vmatprep.subr.bf16.mxu0 0
      %1464 = vmatpush1.bf16.msra.mxu0 %v1450
      %1465 = vmatprep.subr.bf16.mxu0 0
      %1466 = vmatpush1.bf16.msra.mxu0 %v1451
      %1467 = vmatprep.subr.bf16.mxu0 0
      %1468 = vmatpush1.bf16.msra.mxu0 0
      %1469 = vmatprep.subr.bf16.mxu0 0
      %1470 = vmatpush1.bf16.msra.mxu0 0
      %1471 = vmatprep.subr.bf16.mxu0 0
      %1472 = vmatpush1.bf16.msra.mxu0 0
      %1473 = vmatprep.subr.bf16.mxu0 0
      %1474 = vmatpush1.bf16.msra.mxu0 0
      %1475 = vmatprep.subr.bf16.mxu0 0
      %1476 = vmatpush1.bf16.msra.mxu0 0
      %1477 = vmatprep.subr.bf16.mxu0 0
      %1478 = vmatpush1.bf16.msra.mxu0 0
      %1479 = vmatprep.subr.bf16.mxu0 0
      %1480 = vmatpush1.bf16.msra.mxu0 0
      %1481 = vmatprep.subr.bf16.mxu0 0
      %1482 = vmatpush1.bf16.msra.mxu0 0
      %1483 = vmatprep.subr.bf16.mxu0 0
      %1484 = vmatpush1.bf16.msra.mxu0 0
      %1485 = vmatprep.subr.bf16.mxu0 0
      %1486 = vmatpush1.bf16.msra.mxu0 0
      %1487 = vmatprep.subr.bf16.mxu0 0
      %1488 = vmatpush1.bf16.msra.mxu0 0
      %1489 = vmatprep.subr.bf16.mxu0 0
      %1490 = vmatpush1.bf16.msra.mxu0 0
      %1491 = vmatprep.subr.bf16.mxu0 0
      %1492 = vmatpush1.bf16.msra.mxu0 0
      %1493 = vmatprep.subr.bf16.mxu0 0
      %1494 = vmatpush1.bf16.msra.mxu0 0
      %1495 = vmatprep.mubr.bf16.mxu0 0
      %1496 = vmatmul.mubr.bf16.gmra.mrb[0].mxu0 %v1455
      %v1497 = vpop.f32.mrb[0].mxu0
      %v1498 = vadd.f32 0.0, %v1497
      %v1499 = vpop.f32.mrb[0].mxu0
      %v1500 = vpop.f32.mrb[0].mxu0
      %v1501 = vadd.f32 0.0, %v1500
      %v1502 = vpop.f32.mrb[0].mxu0
      %1503 = vmatprep.mubr.bf16.mxu0 0
      %1504 = vmatmul.mubr.bf16.gmra.mrb[0].mxu0 %v1458
      %v1505 = vpop.f32.mrb[0].mxu0
      %v1506 = vadd.f32 0.0, %v1505
      %v1507 = vpop.f32.mrb[0].mxu0
      %v1508 = vpop.f32.mrb[0].mxu0
      %v1509 = vadd.f32 0.0, %v1508
      %v1510 = vpop.f32.mrb[0].mxu0
      %1511 = vmatprep.mubr.bf16.mxu0 0
      %1512 = vmatmul.mubr.bf16.gmra.mrb[0].mxu0 %v1461
      %v1513 = vpop.f32.mrb[0].mxu0
      %v1514 = vadd.f32 0.0, %v1513
      %v1515 = vpop.f32.mrb[0].mxu0
      %v1516 = vpop.f32.mrb[0].mxu0
      %v1517 = vpop.f32.mrb[0].mxu0
      %1518 = vdwg.mxu0
      %v1519 = vld [vmem:[%s11] sm:$0xf]
      %v1520 = vld [vmem:[%s11 + $0x4] sm:$0xf]
      %v1521 = vld [vmem:[%s11 + $0x8] sm:$0xf]
      %v1522 = vld [vmem:[%s11 + $0xc] sm:$0xf]
      %v1523 = vld [vmem:[%s11 + $0x10] sm:$0xf]
      %v1529 = vunpack.c.l.b16 %v1519
      %v1530 = vunpack.c.l.b16 %v1520
      %v1531 = vunpack.c.l.b16 %v1521
      %v1532 = vunpack.c.l.b16 %v1522
      %v1533 = vunpack.c.l.b16 %v1523
      %v1534 = vpack.c.b16 %v1530, %v1529
      %v1535 = vpack.c.b16 %v1532, %v1531
      %v1536 = vpack.c.b16 %v1533, %v1533
      %vm1537 = vcmask 130048
      %v1539 = vsel %vm1537, %v1534, 0
      %v1542 = vsel %vm1537, %v1535, 0
      %v1545 = vsel %vm1537, %v1536, 0
      %1547 = vmatprep.subr.bf16.mxu0 0
      %1548 = vmatpush1.bf16.msra.mxu0 %v1424
      %1549 = vmatprep.subr.bf16.mxu0 0
      %1550 = vmatpush1.bf16.msra.mxu0 0
      %1551 = vmatprep.subr.bf16.mxu0 0
      %1552 = vmatpush1.bf16.msra.mxu0 0
      %1553 = vmatprep.subr.bf16.mxu0 0
      %1554 = vmatpush1.bf16.msra.mxu0 0
      %1555 = vmatprep.subr.bf16.mxu0 0
      %1556 = vmatpush1.bf16.msra.mxu0 0
      %1557 = vmatprep.subr.bf16.mxu0 0
      %1558 = vmatpush1.bf16.msra.mxu0 0
      %1559 = vmatprep.subr.bf16.mxu0 0
      %1560 = vmatpush1.bf16.msra.mxu0 0
      %1561 = vmatprep.subr.bf16.mxu0 0
      %1562 = vmatpush1.bf16.msra.mxu0 0
      %1563 = vmatprep.subr.bf16.mxu0 0
      %1564 = vmatpush1.bf16.msra.mxu0 0
      %1565 = vmatprep.subr.bf16.mxu0 0
      %1566 = vmatpush1.bf16.msra.mxu0 0
      %1567 = vmatprep.subr.bf16.mxu0 0
      %1568 = vmatpush1.bf16.msra.mxu0 0
      %1569 = vmatprep.subr.bf16.mxu0 0
      %1570 = vmatpush1.bf16.msra.mxu0 0
      %1571 = vmatprep.subr.bf16.mxu0 0
      %1572 = vmatpush1.bf16.msra.mxu0 0
      %1573 = vmatprep.subr.bf16.mxu0 0
      %1574 = vmatpush1.bf16.msra.mxu0 0
      %1575 = vmatprep.subr.bf16.mxu0 0
      %1576 = vmatpush1.bf16.msra.mxu0 0
      %1577 = vmatprep.subr.bf16.mxu0 0
      %1578 = vmatpush1.bf16.msra.mxu0 0
      %1579 = vmatprep.mubr.bf16.mxu0 0
      %1580 = vmatmul.mubr.bf16.gmra.mrb[0].mxu0 %v1539
      %v1581 = vpop.f32.mrb[0].mxu0
      %v1582 = vadd.f32 0.0, %v1581
      %v1583 = vpop.f32.mrb[0].mxu0
      %v1584 = vpop.f32.mrb[0].mxu0
      %v1585 = vadd.f32 0.0, %v1584
      %v1586 = vpop.f32.mrb[0].mxu0
      %1587 = vmatprep.mubr.bf16.mxu0 0
      %1588 = vmatmul.mubr.bf16.gmra.mrb[0].mxu0 %v1542
      %v1589 = vpop.f32.mrb[0].mxu0
      %v1590 = vadd.f32 0.0, %v1589
      %v1591 = vpop.f32.mrb[0].mxu0
      %v1592 = vpop.f32.mrb[0].mxu0
      %v1593 = vadd.f32 0.0, %v1592
      %v1594 = vpop.f32.mrb[0].mxu0
      %1595 = vmatprep.mubr.bf16.mxu0 0
      %1596 = vmatmul.mubr.bf16.gmra.mrb[0].mxu0 %v1545
      %v1597 = vpop.f32.mrb[0].mxu0
      %v1598 = vadd.f32 0.0, %v1597
      %v1599 = vpop.f32.mrb[0].mxu0
      %v1600 = vpop.f32.mrb[0].mxu0
      %v1601 = vpop.f32.mrb[0].mxu0
      %1602 = vdwg.mxu0
      %v1603 = vld [vmem:[%s9] sm:$0xf]
      %v1604 = vld [vmem:[%s9 + $0x4] sm:$0xf]
      %v1605 = vld [vmem:[%s9 + $0x8] sm:$0xf]
      %v1606 = vld [vmem:[%s9 + $0xc] sm:$0xf]
      %v1607 = vld [vmem:[%s9 + $0x10] sm:$0xf]
      %v1613 = vunpack.c.l.b16 %v1603
      %v1614 = vunpack.c.l.b16 %v1604
      %v1615 = vunpack.c.l.b16 %v1605
      %v1616 = vunpack.c.l.b16 %v1606
      %v1617 = vunpack.c.l.b16 %v1607
      %v1618 = vpack.c.b16 %v1614, %v1613
      %v1619 = vpack.c.b16 %v1616, %v1615
      %v1620 = vpack.c.b16 %v1617, %v1617
      %1622 = vrot.lane.b32.xlu0 %v1424, 96
      %v1623 = vpop.permute.xlu0 %1622
      %v1626 = vsel %vm1537, %v1618, 0
      %v1629 = vsel %vm1537, %v1619, 0
      %v1632 = vsel %vm1537, %v1620, 0
      %1634 = vmatprep.subr.bf16.mxu0 0
      %1635 = vmatpush1.bf16.msra.mxu0 %v1623
      %1636 = vmatprep.subr.bf16.mxu0 0
      %1637 = vmatpush1.bf16.msra.mxu0 0
      %1638 = vmatprep.subr.bf16.mxu0 0
      %1639 = vmatpush1.bf16.msra.mxu0 0
      %1640 = vmatprep.subr.bf16.mxu0 0
      %1641 = vmatpush1.bf16.msra.mxu0 0
      %1642 = vmatprep.subr.bf16.mxu0 0
      %1643 = vmatpush1.bf16.msra.mxu0 0
      %1644 = vmatprep.subr.bf16.mxu0 0
      %1645 = vmatpush1.bf16.msra.mxu0 0
      %1646 = vmatprep.subr.bf16.mxu0 0
      %1647 = vmatpush1.bf16.msra.mxu0 0
      %1648 = vmatprep.subr.bf16.mxu0 0
      %1649 = vmatpush1.bf16.msra.mxu0 0
      %1650 = vmatprep.subr.bf16.mxu0 0
      %1651 = vmatpush1.bf16.msra.mxu0 0
      %1652 = vmatprep.subr.bf16.mxu0 0
      %1653 = vmatpush1.bf16.msra.mxu0 0
      %1654 = vmatprep.subr.bf16.mxu0 0
      %1655 = vmatpush1.bf16.msra.mxu0 0
      %1656 = vmatprep.subr.bf16.mxu0 0
      %1657 = vmatpush1.bf16.msra.mxu0 0
      %1658 = vmatprep.subr.bf16.mxu0 0
      %1659 = vmatpush1.bf16.msra.mxu0 0
      %1660 = vmatprep.subr.bf16.mxu0 0
      %1661 = vmatpush1.bf16.msra.mxu0 0
      %1662 = vmatprep.subr.bf16.mxu0 0
      %1663 = vmatpush1.bf16.msra.mxu0 0
      %1664 = vmatprep.subr.bf16.mxu0 0
      %1665 = vmatpush1.bf16.msra.mxu0 0
      %1666 = vmatprep.mubr.bf16.mxu0 0
      %1667 = vmatmul.mubr.bf16.gmra.mrb[0].mxu0 %v1626
      %v1668 = vpop.f32.mrb[0].mxu0
      %v1669 = vadd.f32 %v1498, %v1668
      %v1670 = vpop.f32.mrb[0].mxu0
      %v1671 = vpop.f32.mrb[0].mxu0
      %v1672 = vadd.f32 %v1501, %v1671
      %v1673 = vpop.f32.mrb[0].mxu0
      %1674 = vmatprep.mubr.bf16.mxu0 0
      %1675 = vmatmul.mubr.bf16.gmra.mrb[0].mxu0 %v1629
      %v1676 = vpop.f32.mrb[0].mxu0
      %v1677 = vadd.f32 %v1506, %v1676
      %v1678 = vpop.f32.mrb[0].mxu0
      %v1679 = vpop.f32.mrb[0].mxu0
      %v1680 = vadd.f32 %v1509, %v1679
      %v1681 = vpop.f32.mrb[0].mxu0
      %1682 = vmatprep.mubr.bf16.mxu0 0
      %1683 = vmatmul.mubr.bf16.gmra.mrb[0].mxu0 %v1632
      %v1684 = vpop.f32.mrb[0].mxu0
      %v1685 = vadd.f32 %v1514, %v1684
      %v1686 = vpop.f32.mrb[0].mxu0
      %v1687 = vpop.f32.mrb[0].mxu0
      %v1688 = vpop.f32.mrb[0].mxu0
      %1689 = vdwg.mxu0
      %v1690 = vmul.f32 %v1582, %v1669
      %v1691 = vmul.f32 %v1585, %v1672
      %v1692 = vmul.f32 %v1590, %v1677
      %v1693 = vmul.f32 %v1593, %v1680
      %v1694 = vmul.f32 %v1598, %v1685
      %v1695 = vpack.c.bf16 %v1691, %v1690
      %v1696 = vpack.c.bf16 %v1693, %v1692
      %v1697 = vpack.c.bf16 %v1694, %v1694
      %v1698 = vld [vmem:[%s25] sm:$0xf]
      %v1699 = vld [vmem:[%s25 + $0x4] sm:$0xf]
      %v1700 = vld [vmem:[%s25 + $0x8] sm:$0xf]
      %v1701 = vld [vmem:[%s25 + $0xc] sm:$0xf]
      %v1702 = vld [vmem:[%s5] sm:$0xf]
      %v1703 = vld [vmem:[%s5 + $0x4] sm:$0xf]
      %v1704 = vld [vmem:[%s5 + $0x8] sm:$0xf]
      %v1705 = vld [vmem:[%s5 + $0xc] sm:$0xf]
      %v1706 = vld [vmem:[%s5 + $0x10] sm:$0xf]
      %v1707 = vld [vmem:[%s1068] sm:$0xf]
      %v1708 = vld [vmem:[%s1068 + $0x4] sm:$0xf]
      %v1709 = vld [vmem:[%s1068 + $0x8] sm:$0xf]
      %v1710 = vld [vmem:[%s1068 + $0xc] sm:$0xf]
      %v1716 = vunpack.c.l.b16 %v1702
      %v1717 = vunpack.c.l.b16 %v1703
      %v1718 = vunpack.c.l.b16 %v1704
      %v1719 = vunpack.c.l.b16 %v1705
      %v1720 = vunpack.c.l.b16 %v1706
      %v1721 = vpack.c.b16 %v1717, %v1716
      %v1722 = vpack.c.b16 %v1719, %v1718
      %v1723 = vpack.c.b16 %v1720, %v1720
      %v1728 = vunpack.c.l.b16 %v1707
      %v1729 = vunpack.c.l.b16 %v1708
      %v1730 = vunpack.c.l.b16 %v1709
      %v1731 = vunpack.c.l.b16 %v1710
      %v1732 = vpack.c.b16 %v1729, %v1728
      %v1733 = vpack.c.b16 %v1731, %v1730
      %v1737 = vsel %vm1379, %v1721, 0
      %v1740 = vsel %vm1379, %v1722, 0
      %v1743 = vsel %vm1379, %v1723, 0
      %1745 = vmatprep.subr.bf16.mxu0 0
      %1746 = vmatpush1.bf16.msra.mxu0 %v1732
      %1747 = vmatprep.subr.bf16.mxu0 0
      %1748 = vmatpush1.bf16.msra.mxu0 %v1733
      %1749 = vmatprep.subr.bf16.mxu0 0
      %1750 = vmatpush1.bf16.msra.mxu0 0
      %1751 = vmatprep.subr.bf16.mxu0 0
      %1752 = vmatpush1.bf16.msra.mxu0 0
      %1753 = vmatprep.subr.bf16.mxu0 0
      %1754 = vmatpush1.bf16.msra.mxu0 0
      %1755 = vmatprep.subr.bf16.mxu0 0
      %1756 = vmatpush1.bf16.msra.mxu0 0
      %1757 = vmatprep.subr.bf16.mxu0 0
      %1758 = vmatpush1.bf16.msra.mxu0 0
      %1759 = vmatprep.subr.bf16.mxu0 0
      %1760 = vmatpush1.bf16.msra.mxu0 0
      %1761 = vmatprep.subr.bf16.mxu0 0
      %1762 = vmatpush1.bf16.msra.mxu0 0
      %1763 = vmatprep.subr.bf16.mxu0 0
      %1764 = vmatpush1.bf16.msra.mxu0 0
      %1765 = vmatprep.subr.bf16.mxu0 0
      %1766 = vmatpush1.bf16.msra.mxu0 0
      %1767 = vmatprep.subr.bf16.mxu0 0
      %1768 = vmatpush1.bf16.msra.mxu0 0
      %1769 = vmatprep.subr.bf16.mxu0 0
      %1770 = vmatpush1.bf16.msra.mxu0 0
      %1771 = vmatprep.subr.bf16.mxu0 0
      %1772 = vmatpush1.bf16.msra.mxu0 0
      %1773 = vmatprep.subr.bf16.mxu0 0
      %1774 = vmatpush1.bf16.msra.mxu0 0
      %1775 = vmatprep.subr.bf16.mxu0 0
      %1776 = vmatpush1.bf16.msra.mxu0 0
      %1777 = vmatprep.mubr.bf16.mxu0 0
      %1778 = vmatmul.mubr.bf16.gmra.mrb[0].mxu0 %v1737
      %v1779 = vpop.f32.mrb[0].mxu0
      %v1780 = vadd.f32 0.0, %v1779
      %v1781 = vpop.f32.mrb[0].mxu0
      %v1782 = vpop.f32.mrb[0].mxu0
      %v1783 = vadd.f32 0.0, %v1782
      %v1784 = vpop.f32.mrb[0].mxu0
      %1785 = vmatprep.mubr.bf16.mxu0 0
      %1786 = vmatmul.mubr.bf16.gmra.mrb[0].mxu0 %v1740
      %v1787 = vpop.f32.mrb[0].mxu0
      %v1788 = vadd.f32 0.0, %v1787
      %v1789 = vpop.f32.mrb[0].mxu0
      %v1790 = vpop.f32.mrb[0].mxu0
      %v1791 = vadd.f32 0.0, %v1790
      %v1792 = vpop.f32.mrb[0].mxu0
      %1793 = vmatprep.mubr.bf16.mxu0 0
      %1794 = vmatmul.mubr.bf16.gmra.mrb[0].mxu0 %v1743
      %v1795 = vpop.f32.mrb[0].mxu0
      %v1796 = vadd.f32 0.0, %v1795
      %v1797 = vpop.f32.mrb[0].mxu0
      %v1798 = vpop.f32.mrb[0].mxu0
      %v1799 = vpop.f32.mrb[0].mxu0
      %1800 = vdwg.mxu0
      %v1805 = vunpack.c.l.b16 %v1698
      %v1806 = vunpack.c.l.b16 %v1699
      %v1807 = vunpack.c.l.b16 %v1700
      %v1808 = vunpack.c.l.b16 %v1701
      %v1809 = vpack.c.b16 %v1806, %v1805
      %v1810 = vpack.c.b16 %v1808, %v1807
      %v1814 = vsel %vm1379, %v1695, 0
      %v1817 = vsel %vm1379, %v1696, 0
      %v1820 = vsel %vm1379, %v1697, 0
      %1822 = vmatprep.subr.bf16.mxu0 0
      %1823 = vmatpush1.bf16.msra.mxu0 %v1809
      %1824 = vmatprep.subr.bf16.mxu0 0
      %1825 = vmatpush1.bf16.msra.mxu0 %v1810
      %1826 = vmatprep.subr.bf16.mxu0 0
      %1827 = vmatpush1.bf16.msra.mxu0 0
      %1828 = vmatprep.subr.bf16.mxu0 0
      %1829 = vmatpush1.bf16.msra.mxu0 0
      %1830 = vmatprep.subr.bf16.mxu0 0
      %1831 = vmatpush1.bf16.msra.mxu0 0
      %1832 = vmatprep.subr.bf16.mxu0 0
      %1833 = vmatpush1.bf16.msra.mxu0 0
      %1834 = vmatprep.subr.bf16.mxu0 0
      %1835 = vmatpush1.bf16.msra.mxu0 0
      %1836 = vmatprep.subr.bf16.mxu0 0
      %1837 = vmatpush1.bf16.msra.mxu0 0
      %1838 = vmatprep.subr.bf16.mxu0 0
      %1839 = vmatpush1.bf16.msra.mxu0 0
      %1840 = vmatprep.subr.bf16.mxu0 0
      %1841 = vmatpush1.bf16.msra.mxu0 0
      %1842 = vmatprep.subr.bf16.mxu0 0
      %1843 = vmatpush1.bf16.msra.mxu0 0
      %1844 = vmatprep.subr.bf16.mxu0 0
      %1845 = vmatpush1.bf16.msra.mxu0 0
      %1846 = vmatprep.subr.bf16.mxu0 0
      %1847 = vmatpush1.bf16.msra.mxu0 0
      %1848 = vmatprep.subr.bf16.mxu0 0
      %1849 = vmatpush1.bf16.msra.mxu0 0
      %1850 = vmatprep.subr.bf16.mxu0 0
      %1851 = vmatpush1.bf16.msra.mxu0 0
      %1852 = vmatprep.subr.bf16.mxu0 0
      %1853 = vmatpush1.bf16.msra.mxu0 0
      %1854 = vmatprep.mubr.bf16.mxu0 0
      %1855 = vmatmul.mubr.bf16.gmra.mrb[0].mxu0 %v1814
      %v1856 = vpop.f32.mrb[0].mxu0
      %v1857 = vadd.f32 %v1780, %v1856
      %v1858 = vpop.f32.mrb[0].mxu0
      %v1859 = vpop.f32.mrb[0].mxu0
      %v1860 = vadd.f32 %v1783, %v1859
      %v1861 = vpop.f32.mrb[0].mxu0
      %1862 = vmatprep.mubr.bf16.mxu0 0
      %1863 = vmatmul.mubr.bf16.gmra.mrb[0].mxu0 %v1817
      %v1864 = vpop.f32.mrb[0].mxu0
      %v1865 = vadd.f32 %v1788, %v1864
      %v1866 = vpop.f32.mrb[0].mxu0
      %v1867 = vpop.f32.mrb[0].mxu0
      %v1868 = vadd.f32 %v1791, %v1867
      %v1869 = vpop.f32.mrb[0].mxu0
      %1870 = vmatprep.mubr.bf16.mxu0 0
      %1871 = vmatmul.mubr.bf16.gmra.mrb[0].mxu0 %v1820
      %v1872 = vpop.f32.mrb[0].mxu0
      %v1873 = vadd.f32 %v1796, %v1872
      %v1874 = vpop.f32.mrb[0].mxu0
      %v1875 = vpop.f32.mrb[0].mxu0
      %v1876 = vpop.f32.mrb[0].mxu0
      %1877 = vdwg.mxu0
      %v1878 = vsel %vm1379, %v1857, -inf
      %v1879 = vsel %vm1379, %v1860, -inf
      %v1880 = vsel %vm1379, %v1865, -inf
      %v1881 = vsel %vm1379, %v1868, -inf
      %v1882 = vsel %vm1379, %v1873, -inf
      %v1883 = vmax.f32 %v1878, %v1882
      %v1884 = vmax.f32 %v1883, %v1879
      %v1885 = vmax.f32 %v1880, %v1881
      %v1886 = vmax.f32 %v1884, %v1885
      %v1887 = vrot.slane %v1886, 4
      %v1888 = vmax.f32 %v1886, %v1887
      %v1889 = vrot.slane %v1888, 2
      %v1890 = vmax.f32 %v1888, %v1889
      %v1891 = vrot.slane %v1890, 1
      %v1892 = vmax.f32 %v1890, %v1891
      %v1893 = vsub.f32 %v1857, %v1892
      %v1894 = vsub.f32 %v1860, %v1892
      %v1895 = vsub.f32 %v1865, %v1892
      %v1896 = vsub.f32 %v1868, %v1892
      %v1897 = vsub.f32 %v1873, %v1892
      %v1898 = vmul.f32 %v1893, 1.442695
      %v1899 = vpow.pop %v1898
      %v1900 = vmul.f32 %v1894, 1.442695
      %v1901 = vpow.pop %v1900
      %v1902 = vmul.f32 %v1895, 1.442695
      %v1903 = vpow.pop %v1902
      %v1904 = vmul.f32 %v1896, 1.442695
      %v1905 = vpow.pop %v1904
      %v1906 = vmul.f32 %v1897, 1.442695
      %v1907 = vpow.pop %v1906
      %1913 = vrot.lane.b32.xlu0 %v1669, 96
      %v1914 = vpop.permute.xlu0 %1913
      %1915 = vrot.lane.b32.xlu0 %v1672, 96
      %v1916 = vpop.permute.xlu0 %1915
      %1917 = vrot.lane.b32.xlu0 %v1677, 96
      %v1918 = vpop.permute.xlu0 %1917
      %1919 = vrot.lane.b32.xlu0 %v1680, 96
      %v1920 = vpop.permute.xlu0 %1919
      %1921 = vrot.lane.b32.xlu0 %v1685, 96
      %v1922 = vpop.permute.xlu0 %1921
      %v1928 = vmul.f32 %v1899, %v1914
      %v1929 = vmul.f32 %v1901, %v1916
      %v1930 = vmul.f32 %v1903, %v1918
      %v1931 = vmul.f32 %v1905, %v1920
      %v1932 = vmul.f32 %v1907, %v1922
      %1933 = vst.msk [vmem:[#allocation4] sm:$0xff] %vm1379, %v1928
      %1934 = vst.msk [vmem:[#allocation4 + $0x8] sm:$0xff] %vm1379, %v1929
      %1935 = vst.msk [vmem:[#allocation4 + $0x10] sm:$0xff] %vm1379, %v1930
      %1936 = vst.msk [vmem:[#allocation4 + $0x18] sm:$0xff] %vm1379, %v1931
      %1937 = vst.msk [vmem:[#allocation4 + $0x20] sm:$0xff] %vm1379, %v1932
      %1943 = vrot.lane.b32.xlu0 %v1899, 32
      %v1944 = vpop.permute.xlu0 %1943
      %1945 = vrot.lane.b32.xlu0 %v1901, 32
      %v1946 = vpop.permute.xlu0 %1945
      %1947 = vrot.lane.b32.xlu0 %v1903, 32
      %v1948 = vpop.permute.xlu0 %1947
      %1949 = vrot.lane.b32.xlu0 %v1905, 32
      %v1950 = vpop.permute.xlu0 %1949
      %1951 = vrot.lane.b32.xlu0 %v1907, 32
      %v1952 = vpop.permute.xlu0 %1951
      %vm1958 = vcmask 523520
      %1959 = vst.msk [vmem:[#allocation4] sm:$0xff] %vm1958, %v1944
      %1960 = vst.msk [vmem:[#allocation4 + $0x8] sm:$0xff] %vm1958, %v1946
      %1961 = vst.msk [vmem:[#allocation4 + $0x10] sm:$0xff] %vm1958, %v1948
      %1962 = vst.msk [vmem:[#allocation4 + $0x18] sm:$0xff] %vm1958, %v1950
      %1963 = vst.msk [vmem:[#allocation4 + $0x20] sm:$0xff] %vm1958, %v1952
      %v1964 = vld [vmem:[%s13] sm:$0xf]
      %v1965 = vld [vmem:[%s13 + $0x4] sm:$0xf]
      %v1966 = vld [vmem:[#allocation4] sm:$0xff]
      %v1967 = vld [vmem:[#allocation4 + $0x8] sm:$0xff]
      %v1968 = vld [vmem:[#allocation4 + $0x10] sm:$0xff]
      %v1969 = vld [vmem:[#allocation4 + $0x18] sm:$0xff]
      %v1970 = vld [vmem:[#allocation4 + $0x20] sm:$0xff]
      %v1971 = vpack.c.bf16 %v1967, %v1966
      %v1972 = vpack.c.bf16 %v1969, %v1968
      %v1973 = vpack.c.bf16 %v1970, %v1970
      %v1976 = vunpack.c.l.b16 %v1964
      %v1977 = vunpack.c.l.b16 %v1965
      %v1978 = vpack.c.b16 %v1977, %v1976
      %vm1979 = vcmask 326656
      %v1981 = vsel %vm1979, %v1978, 0
      %vm1983 = vcmask 1043456
      %v1985 = vsel %vm1983, %v1973, 0
      %1987 = vmatprep.subr.bf16.mxu0 0
      %1988 = vmatpush1.bf16.msra.mxu0 %v1971
      %1989 = vmatprep.subr.bf16.mxu0 0
      %1990 = vmatpush1.bf16.msra.mxu0 %v1972
      %1991 = vmatprep.subr.bf16.mxu0 0
      %1992 = vmatpush1.bf16.msra.mxu0 %v1985
      %1993 = vmatprep.subr.bf16.mxu0 0
      %1994 = vmatpush1.bf16.msra.mxu0 0
      %1995 = vmatprep.subr.bf16.mxu0 0
      %1996 = vmatpush1.bf16.msra.mxu0 0
      %1997 = vmatprep.subr.bf16.mxu0 0
      %1998 = vmatpush1.bf16.msra.mxu0 0
      %1999 = vmatprep.subr.bf16.mxu0 0
      %2000 = vmatpush1.bf16.msra.mxu0 0
      %2001 = vmatprep.subr.bf16.mxu0 0
      %2002 = vmatpush1.bf16.msra.mxu0 0
      %2003 = vmatprep.subr.bf16.mxu0 0
      %2004 = vmatpush1.bf16.msra.mxu0 0
      %2005 = vmatprep.subr.bf16.mxu0 0
      %2006 = vmatpush1.bf16.msra.mxu0 0
      %2007 = vmatprep.subr.bf16.mxu0 0
      %2008 = vmatpush1.bf16.msra.mxu0 0
      %2009 = vmatprep.subr.bf16.mxu0 0
      %2010 = vmatpush1.bf16.msra.mxu0 0
      %2011 = vmatprep.subr.bf16.mxu0 0
      %2012 = vmatpush1.bf16.msra.mxu0 0
      %2013 = vmatprep.subr.bf16.mxu0 0
      %2014 = vmatpush1.bf16.msra.mxu0 0
      %2015 = vmatprep.subr.bf16.mxu0 0
      %2016 = vmatpush1.bf16.msra.mxu0 0
      %2017 = vmatprep.subr.bf16.mxu0 0
      %2018 = vmatpush1.bf16.msra.mxu0 0
      %2019 = vmatprep.mubr.bf16.mxu0 0
      %2020 = vmatmul.mubr.bf16.gmra.mrb[0].mxu0 %v1981
      %v2021 = vpop.f32.mrb[0].mxu0
      %v2022 = vadd.f32 0.0, %v2021
      %v2023 = vpop.f32.mrb[0].mxu0
      %v2024 = vpop.f32.mrb[0].mxu0
      %v2025 = vadd.f32 0.0, %v2024
      %v2026 = vpop.f32.mrb[0].mxu0
      %2027 = vdwg.mxu0
      %v2028 = vmax.f32 %v2022, 1e-12
      %v2029 = vmax.f32 %v2025, 1e-12
      %2032 = vrot.lane.b32.xlu0 %v2028, 96
      %v2033 = vpop.permute.xlu0 %2032
      %2034 = vrot.lane.b32.xlu0 %v2029, 96
      %v2035 = vpop.permute.xlu0 %2034
      %v2038 = vrcp.pop %v2033
      %v2039 = vmul.f32 %v2022, %v2038
      %v2040 = vrcp.pop %v2035
      %v2041 = vmul.f32 %v2025, %v2040
      %v2042 = vld [vmem:[%s7] sm:$0xf]
      %v2043 = vld [vmem:[%s7 + $0x4] sm:$0xf]
      %v2044 = vld [vmem:[%s1072] sm:$0xf]
      %v2047 = vunpack.c.l.b16 %v2042
      %v2048 = vunpack.c.l.b16 %v2043
      %v2049 = vpack.c.b16 %v2048, %v2047
      %vm2050 = vcmask 64512
      %v2052 = vsel %vm2050, %v2049, 0
      %v2055 = vsel %vm1983, %v2044, 0
      %2057 = vmatprep.subr.bf16.mxu0 0
      %2058 = vmatpush1.bf16.msra.mxu0 %v2055
      %2059 = vmatprep.subr.bf16.mxu0 0
      %2060 = vmatpush1.bf16.msra.mxu0 0
      %2061 = vmatprep.subr.bf16.mxu0 0
      %2062 = vmatpush1.bf16.msra.mxu0 0
      %2063 = vmatprep.subr.bf16.mxu0 0
      %2064 = vmatpush1.bf16.msra.mxu0 0
      %2065 = vmatprep.subr.bf16.mxu0 0
      %2066 = vmatpush1.bf16.msra.mxu0 0
      %2067 = vmatprep.subr.bf16.mxu0 0
      %2068 = vmatpush1.bf16.msra.mxu0 0
      %2069 = vmatprep.subr.bf16.mxu0 0
      %2070 = vmatpush1.bf16.msra.mxu0 0
      %2071 = vmatprep.subr.bf16.mxu0 0
      %2072 = vmatpush1.bf16.msra.mxu0 0
      %2073 = vmatprep.subr.bf16.mxu0 0
      %2074 = vmatpush1.bf16.msra.mxu0 0
      %2075 = vmatprep.subr.bf16.mxu0 0
      %2076 = vmatpush1.bf16.msra.mxu0 0
      %2077 = vmatprep.subr.bf16.mxu0 0
      %2078 = vmatpush1.bf16.msra.mxu0 0
      %2079 = vmatprep.subr.bf16.mxu0 0
      %2080 = vmatpush1.bf16.msra.mxu0 0
      %2081 = vmatprep.subr.bf16.mxu0 0
      %2082 = vmatpush1.bf16.msra.mxu0 0
      %2083 = vmatprep.subr.bf16.mxu0 0
      %2084 = vmatpush1.bf16.msra.mxu0 0
      %2085 = vmatprep.subr.bf16.mxu0 0
      %2086 = vmatpush1.bf16.msra.mxu0 0
      %2087 = vmatprep.subr.bf16.mxu0 0
      %2088 = vmatpush1.bf16.msra.mxu0 0
      %2089 = vmatprep.mubr.bf16.mxu0 0
      %2090 = vmatmul.mubr.bf16.gmra.mrb[0].mxu0 %v2052
      %v2091 = vpop.f32.mrb[0].mxu0
      %v2092 = vadd.f32 0.0, %v2091
      %v2093 = vpop.f32.mrb[0].mxu0
      %v2094 = vpop.f32.mrb[0].mxu0
      %v2095 = vadd.f32 0.0, %v2094
      %v2096 = vpop.f32.mrb[0].mxu0
      %2097 = vdwg.mxu0
      %v2098 = vmul.f32 %v2039, %v2092
      %v2099 = vmul.f32 %v2041, %v2095
      %v2100 = vsel %vm1379, %v2098, 0.0
      %2101 = vadd.xlane.f32.xlu0 %v2100
      %v2102 = vpop.xlane.xlu0 %2101
      %v2103 = vsel %vm1379, %v2099, 0.0
      %2104 = vadd.xlane.f32.xlu0 %v2103
      %v2105 = vpop.xlane.xlu0 %2104
      %v2106 = vmul.f32 %v2098, %v2098
      %v2107 = vmul.f32 %v2099, %v2099
      %v2108 = vsel %vm1379, %v2106, 0.0
      %2109 = vadd.xlane.f32.xlu0 %v2108
      %v2110 = vpop.xlane.xlu0 %2109
      %v2111 = vsel %vm1379, %v2107, 0.0
      %2112 = vadd.xlane.f32.xlu0 %v2111
      %v2113 = vpop.xlane.xlu0 %2112
      %v2114 = vld [vmem:[%s15] sm:$0x3]
      %v2116 = vsel %vm1537, %v2114, 0
      %2118 = vmatprep.subr.mxu0 0.0
      %2119 = vmatpush1.msra.mxu0 %v2102
      %2120 = vmatprep.subr.mxu0 0.0
      %2121 = vmatpush1.msra.mxu0 %v2105
      %2122 = vmatprep.subr.mxu0 0.0
      %2123 = vmatpush1.msra.mxu0 0.0
      %2124 = vmatprep.subr.mxu0 0.0
      %2125 = vmatpush1.msra.mxu0 0.0
      %2126 = vmatprep.subr.mxu0 0.0
      %2127 = vmatpush1.msra.mxu0 0.0
      %2128 = vmatprep.subr.mxu0 0.0
      %2129 = vmatpush1.msra.mxu0 0.0
      %2130 = vmatprep.subr.mxu0 0.0
      %2131 = vmatpush1.msra.mxu0 0.0
      %2132 = vmatprep.subr.mxu0 0.0
      %2133 = vmatpush1.msra.mxu0 0.0
      %2134 = vmatprep.subr.mxu0 0.0
      %2135 = vmatpush1.msra.mxu0 0.0
      %2136 = vmatprep.subr.mxu0 0.0
      %2137 = vmatpush1.msra.mxu0 0.0
      %2138 = vmatprep.subr.mxu0 0.0
      %2139 = vmatpush1.msra.mxu0 0.0
      %2140 = vmatprep.subr.mxu0 0.0
      %2141 = vmatpush1.msra.mxu0 0.0
      %2142 = vmatprep.subr.mxu0 0.0
      %2143 = vmatpush1.msra.mxu0 0.0
      %2144 = vmatprep.subr.mxu0 0.0
      %2145 = vmatpush1.msra.mxu0 0.0
      %2146 = vmatprep.subr.mxu0 0.0
      %2147 = vmatpush1.msra.mxu0 0.0
      %2148 = vmatprep.subr.mxu0 0.0
      %2149 = vmatpush1.msra.mxu0 0.0
      %2150 = vmatprep.subr.mxu0 0.0
      %2151 = vmatpush1.msra.mxu0 0.0
      %2152 = vmatprep.subr.mxu0 0.0
      %2153 = vmatpush1.msra.mxu0 0.0
      %2154 = vmatprep.subr.mxu0 0.0
      %2155 = vmatpush1.msra.mxu0 0.0
      %2156 = vmatprep.subr.mxu0 0.0
      %2157 = vmatpush1.msra.mxu0 0.0
      %2158 = vmatprep.subr.mxu0 0.0
      %2159 = vmatpush1.msra.mxu0 0.0
      %2160 = vmatprep.subr.mxu0 0.0
      %2161 = vmatpush1.msra.mxu0 0.0
      %2162 = vmatprep.subr.mxu0 0.0
      %2163 = vmatpush1.msra.mxu0 0.0
      %2164 = vmatprep.subr.mxu0 0.0
      %2165 = vmatpush1.msra.mxu0 0.0
      %2166 = vmatprep.subr.mxu0 0.0
      %2167 = vmatpush1.msra.mxu0 0.0
      %2168 = vmatprep.subr.mxu0 0.0
      %2169 = vmatpush1.msra.mxu0 0.0
      %2170 = vmatprep.subr.mxu0 0.0
      %2171 = vmatpush1.msra.mxu0 0.0
      %2172 = vmatprep.subr.mxu0 0.0
      %2173 = vmatpush1.msra.mxu0 0.0
      %2174 = vmatprep.subr.mxu0 0.0
      %2175 = vmatpush1.msra.mxu0 0.0
      %2176 = vmatprep.subr.mxu0 0.0
      %2177 = vmatpush1.msra.mxu0 0.0
      %2178 = vmatprep.subr.mxu0 0.0
      %2179 = vmatpush1.msra.mxu0 0.0
      %2180 = vmatprep.subr.mxu0 0.0
      %2181 = vmatpush1.msra.mxu0 0.0
      %2182 = vmatprep.mubr.f32.mxu0 0.0
      %2183 = vmatmul.mubr.f32.gmra.mrb[0].mxu0 %v2116
      %v2184 = vpop.f32.mrb[0].mxu0
      %v2185 = vadd.f32 0.0, %v2184
      %v2186 = vpop.f32.mrb[0].mxu0
      %2187 = vdwg.mxu0
      %2188 = vmatprep.subr.mxu0 0.0
      %2189 = vmatpush1.msra.mxu0 %v2110
      %2190 = vmatprep.subr.mxu0 0.0
      %2191 = vmatpush1.msra.mxu0 %v2113
      %2192 = vmatprep.subr.mxu0 0.0
      %2193 = vmatpush1.msra.mxu0 0.0
      %2194 = vmatprep.subr.mxu0 0.0
      %2195 = vmatpush1.msra.mxu0 0.0
      %2196 = vmatprep.subr.mxu0 0.0
      %2197 = vmatpush1.msra.mxu0 0.0
      %2198 = vmatprep.subr.mxu0 0.0
      %2199 = vmatpush1.msra.mxu0 0.0
      %2200 = vmatprep.subr.mxu0 0.0
      %2201 = vmatpush1.msra.mxu0 0.0
      %2202 = vmatprep.subr.mxu0 0.0
      %2203 = vmatpush1.msra.mxu0 0.0
      %2204 = vmatprep.subr.mxu0 0.0
      %2205 = vmatpush1.msra.mxu0 0.0
      %2206 = vmatprep.subr.mxu0 0.0
      %2207 = vmatpush1.msra.mxu0 0.0
      %2208 = vmatprep.subr.mxu0 0.0
      %2209 = vmatpush1.msra.mxu0 0.0
      %2210 = vmatprep.subr.mxu0 0.0
      %2211 = vmatpush1.msra.mxu0 0.0
      %2212 = vmatprep.subr.mxu0 0.0
      %2213 = vmatpush1.msra.mxu0 0.0
      %2214 = vmatprep.subr.mxu0 0.0
      %2215 = vmatpush1.msra.mxu0 0.0
      %2216 = vmatprep.subr.mxu0 0.0
      %2217 = vmatpush1.msra.mxu0 0.0
      %2218 = vmatprep.subr.mxu0 0.0
      %2219 = vmatpush1.msra.mxu0 0.0
      %2220 = vmatprep.subr.mxu0 0.0
      %2221 = vmatpush1.msra.mxu0 0.0
      %2222 = vmatprep.subr.mxu0 0.0
      %2223 = vmatpush1.msra.mxu0 0.0
      %2224 = vmatprep.subr.mxu0 0.0
      %2225 = vmatpush1.msra.mxu0 0.0
      %2226 = vmatprep.subr.mxu0 0.0
      %2227 = vmatpush1.msra.mxu0 0.0
      %2228 = vmatprep.subr.mxu0 0.0
      %2229 = vmatpush1.msra.mxu0 0.0
      %2230 = vmatprep.subr.mxu0 0.0
      %2231 = vmatpush1.msra.mxu0 0.0
      %2232 = vmatprep.subr.mxu0 0.0
      %2233 = vmatpush1.msra.mxu0 0.0
      %2234 = vmatprep.subr.mxu0 0.0
      %2235 = vmatpush1.msra.mxu0 0.0
      %2236 = vmatprep.subr.mxu0 0.0
      %2237 = vmatpush1.msra.mxu0 0.0
      %2238 = vmatprep.subr.mxu0 0.0
      %2239 = vmatpush1.msra.mxu0 0.0
      %2240 = vmatprep.subr.mxu0 0.0
      %2241 = vmatpush1.msra.mxu0 0.0
      %2242 = vmatprep.subr.mxu0 0.0
      %2243 = vmatpush1.msra.mxu0 0.0
      %2244 = vmatprep.subr.mxu0 0.0
      %2245 = vmatpush1.msra.mxu0 0.0
      %2246 = vmatprep.subr.mxu0 0.0
      %2247 = vmatpush1.msra.mxu0 0.0
      %2248 = vmatprep.subr.mxu0 0.0
      %2249 = vmatpush1.msra.mxu0 0.0
      %2250 = vmatprep.subr.mxu0 0.0
      %2251 = vmatpush1.msra.mxu0 0.0
      %2252 = vmatprep.mubr.f32.mxu0 0.0
      %2253 = vmatmul.mubr.f32.gmra.mrb[0].mxu0 %v2116
      %v2254 = vpop.f32.mrb[0].mxu0
      %v2255 = vadd.f32 0.0, %v2254
      %v2256 = vpop.f32.mrb[0].mxu0
      %2257 = vdwg.mxu0
      %v2258 = vld [vmem:[%s21] sm:$0x3]
      %v2259 = vmul.f32 %v2185, %v2258
      %v2260 = vmul.f32 %v2255, %v2258
      %v2261 = vmul.f32 %v2259, %v2259
      %v2262 = vsub.f32 %v2260, %v2261
      %v2263 = vmax.f32 %v2262, 0.0
      %v2264 = vadd.f32 %v2263, 1e-08
      %v2265 = vrsqrt.pop %v2264
      %v2266 = vld [vmem:[%s17] sm:$0xff]
      %v2267 = vld [vmem:[%s17 + $0x8] sm:$0xff]
      %vm2268 = vcmask 15360
      %v2270 = vsel %vm2268, %v2266, 0
      %v2273 = vsel %vm2268, %v2267, 0
      %vm2275 = vcmask 1041408
      %v2277 = vsel %vm2275, %v2259, 0
      %2279 = vmatprep.subr.mxu0 0.0
      %2280 = vmatpush1.msra.mxu0 %v2277
      %2281 = vmatprep.subr.mxu0 0.0
      %2282 = vmatpush1.msra.mxu0 0.0
      %2283 = vmatprep.subr.mxu0 0.0
      %2284 = vmatpush1.msra.mxu0 0.0
      %2285 = vmatprep.subr.mxu0 0.0
      %2286 = vmatpush1.msra.mxu0 0.0
      %2287 = vmatprep.subr.mxu0 0.0
      %2288 = vmatpush1.msra.mxu0 0.0
      %2289 = vmatprep.subr.mxu0 0.0
      %2290 = vmatpush1.msra.mxu0 0.0
      %2291 = vmatprep.subr.mxu0 0.0
      %2292 = vmatpush1.msra.mxu0 0.0
      %2293 = vmatprep.subr.mxu0 0.0
      %2294 = vmatpush1.msra.mxu0 0.0
      %2295 = vmatprep.subr.mxu0 0.0
      %2296 = vmatpush1.msra.mxu0 0.0
      %2297 = vmatprep.subr.mxu0 0.0
      %2298 = vmatpush1.msra.mxu0 0.0
      %2299 = vmatprep.subr.mxu0 0.0
      %2300 = vmatpush1.msra.mxu0 0.0
      %2301 = vmatprep.subr.mxu0 0.0
      %2302 = vmatpush1.msra.mxu0 0.0
      %2303 = vmatprep.subr.mxu0 0.0
      %2304 = vmatpush1.msra.mxu0 0.0
      %2305 = vmatprep.subr.mxu0 0.0
      %2306 = vmatpush1.msra.mxu0 0.0
      %2307 = vmatprep.subr.mxu0 0.0
      %2308 = vmatpush1.msra.mxu0 0.0
      %2309 = vmatprep.subr.mxu0 0.0
      %2310 = vmatpush1.msra.mxu0 0.0
      %2311 = vmatprep.subr.mxu0 0.0
      %2312 = vmatpush1.msra.mxu0 0.0
      %2313 = vmatprep.subr.mxu0 0.0
      %2314 = vmatpush1.msra.mxu0 0.0
      %2315 = vmatprep.subr.mxu0 0.0
      %2316 = vmatpush1.msra.mxu0 0.0
      %2317 = vmatprep.subr.mxu0 0.0
      %2318 = vmatpush1.msra.mxu0 0.0
      %2319 = vmatprep.subr.mxu0 0.0
      %2320 = vmatpush1.msra.mxu0 0.0
      %2321 = vmatprep.subr.mxu0 0.0
      %2322 = vmatpush1.msra.mxu0 0.0
      %2323 = vmatprep.subr.mxu0 0.0
      %2324 = vmatpush1.msra.mxu0 0.0
      %2325 = vmatprep.subr.mxu0 0.0
      %2326 = vmatpush1.msra.mxu0 0.0
      %2327 = vmatprep.subr.mxu0 0.0
      %2328 = vmatpush1.msra.mxu0 0.0
      %2329 = vmatprep.subr.mxu0 0.0
      %2330 = vmatpush1.msra.mxu0 0.0
      %2331 = vmatprep.subr.mxu0 0.0
      %2332 = vmatpush1.msra.mxu0 0.0
      %2333 = vmatprep.subr.mxu0 0.0
      %2334 = vmatpush1.msra.mxu0 0.0
      %2335 = vmatprep.subr.mxu0 0.0
      %2336 = vmatpush1.msra.mxu0 0.0
      %2337 = vmatprep.subr.mxu0 0.0
      %2338 = vmatpush1.msra.mxu0 0.0
      %2339 = vmatprep.subr.mxu0 0.0
      %2340 = vmatpush1.msra.mxu0 0.0
      %2341 = vmatprep.subr.mxu0 0.0
      %2342 = vmatpush1.msra.mxu0 0.0
      %2343 = vmatprep.mubr.f32.mxu0 0.0
      %2344 = vmatmul.mubr.f32.gmra.mrb[0].mxu0 %v2270
      %v2345 = vpop.f32.mrb[0].mxu0
      %v2346 = vadd.f32 0.0, %v2345
      %v2347 = vpop.f32.mrb[0].mxu0
      %2348 = vmatprep.mubr.f32.mxu0 0.0
      %2349 = vmatmul.mubr.f32.gmra.mrb[0].mxu0 %v2273
      %v2350 = vpop.f32.mrb[0].mxu0
      %v2351 = vadd.f32 0.0, %v2350
      %v2352 = vpop.f32.mrb[0].mxu0
      %2353 = vdwg.mxu0
      %v2355 = vsel %vm2275, %v2265, 0
      %2357 = vmatprep.subr.mxu0 0.0
      %2358 = vmatpush1.msra.mxu0 %v2355
      %2359 = vmatprep.subr.mxu0 0.0
      %2360 = vmatpush1.msra.mxu0 0.0
      %2361 = vmatprep.subr.mxu0 0.0
      %2362 = vmatpush1.msra.mxu0 0.0
      %2363 = vmatprep.subr.mxu0 0.0
      %2364 = vmatpush1.msra.mxu0 0.0
      %2365 = vmatprep.subr.mxu0 0.0
      %2366 = vmatpush1.msra.mxu0 0.0
      %2367 = vmatprep.subr.mxu0 0.0
      %2368 = vmatpush1.msra.mxu0 0.0
      %2369 = vmatprep.subr.mxu0 0.0
      %2370 = vmatpush1.msra.mxu0 0.0
      %2371 = vmatprep.subr.mxu0 0.0
      %2372 = vmatpush1.msra.mxu0 0.0
      %2373 = vmatprep.subr.mxu0 0.0
      %2374 = vmatpush1.msra.mxu0 0.0
      %2375 = vmatprep.subr.mxu0 0.0
      %2376 = vmatpush1.msra.mxu0 0.0
      %2377 = vmatprep.subr.mxu0 0.0
      %2378 = vmatpush1.msra.mxu0 0.0
      %2379 = vmatprep.subr.mxu0 0.0
      %2380 = vmatpush1.msra.mxu0 0.0
      %2381 = vmatprep.subr.mxu0 0.0
      %2382 = vmatpush1.msra.mxu0 0.0
      %2383 = vmatprep.subr.mxu0 0.0
      %2384 = vmatpush1.msra.mxu0 0.0
      %2385 = vmatprep.subr.mxu0 0.0
      %2386 = vmatpush1.msra.mxu0 0.0
      %2387 = vmatprep.subr.mxu0 0.0
      %2388 = vmatpush1.msra.mxu0 0.0
      %2389 = vmatprep.subr.mxu0 0.0
      %2390 = vmatpush1.msra.mxu0 0.0
      %2391 = vmatprep.subr.mxu0 0.0
      %2392 = vmatpush1.msra.mxu0 0.0
      %2393 = vmatprep.subr.mxu0 0.0
      %2394 = vmatpush1.msra.mxu0 0.0
      %2395 = vmatprep.subr.mxu0 0.0
      %2396 = vmatpush1.msra.mxu0 0.0
      %2397 = vmatprep.subr.mxu0 0.0
      %2398 = vmatpush1.msra.mxu0 0.0
      %2399 = vmatprep.subr.mxu0 0.0
      %2400 = vmatpush1.msra.mxu0 0.0
      %2401 = vmatprep.subr.mxu0 0.0
      %2402 = vmatpush1.msra.mxu0 0.0
      %2403 = vmatprep.subr.mxu0 0.0
      %2404 = vmatpush1.msra.mxu0 0.0
      %2405 = vmatprep.subr.mxu0 0.0
      %2406 = vmatpush1.msra.mxu0 0.0
      %2407 = vmatprep.subr.mxu0 0.0
      %2408 = vmatpush1.msra.mxu0 0.0
      %2409 = vmatprep.subr.mxu0 0.0
      %2410 = vmatpush1.msra.mxu0 0.0
      %2411 = vmatprep.subr.mxu0 0.0
      %2412 = vmatpush1.msra.mxu0 0.0
      %2413 = vmatprep.subr.mxu0 0.0
      %2414 = vmatpush1.msra.mxu0 0.0
      %2415 = vmatprep.subr.mxu0 0.0
      %2416 = vmatpush1.msra.mxu0 0.0
      %2417 = vmatprep.subr.mxu0 0.0
      %2418 = vmatpush1.msra.mxu0 0.0
      %2419 = vmatprep.subr.mxu0 0.0
      %2420 = vmatpush1.msra.mxu0 0.0
      %2421 = vmatprep.mubr.f32.mxu0 0.0
      %2422 = vmatmul.mubr.f32.gmra.mrb[0].mxu0 %v2270
      %v2423 = vpop.f32.mrb[0].mxu0
      %v2424 = vadd.f32 0.0, %v2423
      %v2425 = vpop.f32.mrb[0].mxu0
      %2426 = vmatprep.mubr.f32.mxu0 0.0
      %2427 = vmatmul.mubr.f32.gmra.mrb[0].mxu0 %v2273
      %v2428 = vpop.f32.mrb[0].mxu0
      %v2429 = vadd.f32 0.0, %v2428
      %v2430 = vpop.f32.mrb[0].mxu0
      %2431 = vdwg.mxu0
      %2433 = vset.pattern.permute.xlu0 0
      %2434 = vperm.xlu0 %2433, %v2346
      %v2435 = vpop.permute.xlu0 %2434
      %2438 = vset.pattern.permute.xlu0 0
      %2439 = vperm.xlu0 %2438, %v2351
      %v2440 = vpop.permute.xlu0 %2439
      %v2442 = vsub.f32 %v2098, %v2435
      %v2443 = vsub.f32 %v2099, %v2440
      %2445 = vset.pattern.permute.xlu0 0
      %2446 = vperm.xlu0 %2445, %v2424
      %v2447 = vpop.permute.xlu0 %2446
      %2450 = vset.pattern.permute.xlu0 0
      %2451 = vperm.xlu0 %2450, %v2429
      %v2452 = vpop.permute.xlu0 %2451
      %v2454 = vmul.f32 %v2442, %v2447
      %v2455 = vmul.f32 %v2443, %v2452
      %v2456 = vpack.c.bf16 %v2455, %v2454
      %v2457 = vld [vmem:[%s1077] sm:$0xf]
      %v2458 = vld [vmem:[%s1077 + $0x4] sm:$0xf]
      %v2459 = vld [vmem:[%s1077 + $0x8] sm:$0xf]
      %v2460 = vld [vmem:[%s1077 + $0xc] sm:$0xf]
      %v2461 = vld [vmem:[%s1081] sm:$0x1]
      %v2463 = vlaneseq
      %v2464 = vshrl.u32 %v2463, 7
      %v2465 = vsub.s32 0, %v2464
      %v2466 = vrot.slane %v2461, %v2465
      %v2472 = vunpack.c.l.b16 %v2457
      %v2473 = vunpack.c.l.b16 %v2458
      %v2474 = vunpack.c.l.b16 %v2459
      %v2475 = vunpack.c.l.b16 %v2460
      %v2476 = vpack.c.b16 %v2473, %v2472
      %v2477 = vpack.c.b16 %v2475, %v2474
      %v2481 = vsel %vm1379, %v2456, 0
      %2483 = vmatprep.subr.bf16.mxu0 0
      %2484 = vmatpush1.bf16.msra.mxu0 %v2476
      %2485 = vmatprep.subr.bf16.mxu0 0
      %2486 = vmatpush1.bf16.msra.mxu0 %v2477
      %2487 = vmatprep.subr.bf16.mxu0 0
      %2488 = vmatpush1.bf16.msra.mxu0 0
      %2489 = vmatprep.subr.bf16.mxu0 0
      %2490 = vmatpush1.bf16.msra.mxu0 0
      %2491 = vmatprep.subr.bf16.mxu0 0
      %2492 = vmatpush1.bf16.msra.mxu0 0
      %2493 = vmatprep.subr.bf16.mxu0 0
      %2494 = vmatpush1.bf16.msra.mxu0 0
      %2495 = vmatprep.subr.bf16.mxu0 0
      %2496 = vmatpush1.bf16.msra.mxu0 0
      %2497 = vmatprep.subr.bf16.mxu0 0
      %2498 = vmatpush1.bf16.msra.mxu0 0
      %2499 = vmatprep.subr.bf16.mxu0 0
      %2500 = vmatpush1.bf16.msra.mxu0 0
      %2501 = vmatprep.subr.bf16.mxu0 0
      %2502 = vmatpush1.bf16.msra.mxu0 0
      %2503 = vmatprep.subr.bf16.mxu0 0
      %2504 = vmatpush1.bf16.msra.mxu0 0
      %2505 = vmatprep.subr.bf16.mxu0 0
      %2506 = vmatpush1.bf16.msra.mxu0 0
      %2507 = vmatprep.subr.bf16.mxu0 0
      %2508 = vmatpush1.bf16.msra.mxu0 0
      %2509 = vmatprep.subr.bf16.mxu0 0
      %2510 = vmatpush1.bf16.msra.mxu0 0
      %2511 = vmatprep.subr.bf16.mxu0 0
      %2512 = vmatpush1.bf16.msra.mxu0 0
      %2513 = vmatprep.subr.bf16.mxu0 0
      %2514 = vmatpush1.bf16.msra.mxu0 0
      %2515 = vmatprep.mubr.bf16.mxu0 0
      %2516 = vmatmul.mubr.bf16.gmra.mrb[0].mxu0 %v2481
      %v2517 = vpop.f32.mrb[0].mxu0
      %v2518 = vadd.f32 %v2466, %v2517
      %v2519 = vpop.f32.mrb[0].mxu0
      %v2520 = vpop.f32.mrb[0].mxu0
      %v2521 = vadd.f32 %v2466, %v2520
      %v2522 = vpop.f32.mrb[0].mxu0
      %2523 = vdwg.mxu0
      %v2524 = vsub.f32 0.0, %v2518
      %v2525 = vsub.f32 0.0, %v2521
      %v2526 = vmul.f32 %v2524, 1.442695
      %v2527 = vpow.pop %v2526
      %v2528 = vmul.f32 %v2525, 1.442695
      %v2529 = vpow.pop %v2528
      %v2530 = vadd.f32 %v2527, 1.0
      %v2531 = vadd.f32 %v2529, 1.0
      %v2532 = vrcp.pop %v2530
      %v2533 = vmul.f32 %v2518, %v2532
      %v2534 = vrcp.pop %v2531
      %v2535 = vmul.f32 %v2521, %v2534
      %v2536 = vpack.c.bf16 %v2535, %v2533
      %s2537 = scalar_lea.vmem %s1077, 16
      %v2538 = vld [vmem:[%s2537] sm:$0xf]
      %v2539 = vld [vmem:[%s2537 + $0x4] sm:$0xf]
      %v2540 = vld [vmem:[%s2537 + $0x8] sm:$0xf]
      %v2541 = vld [vmem:[%s2537 + $0xc] sm:$0xf]
      %s2542 = scalar_lea.vmem %s1081, 1
      %v2543 = vld [vmem:[%s2542] sm:$0x1]
      %v2545 = vlaneseq
      %v2546 = vshrl.u32 %v2545, 7
      %v2547 = vsub.s32 0, %v2546
      %v2548 = vrot.slane %v2543, %v2547
      %v2554 = vunpack.c.l.b16 %v2538
      %v2555 = vunpack.c.l.b16 %v2539
      %v2556 = vunpack.c.l.b16 %v2540
      %v2557 = vunpack.c.l.b16 %v2541
      %v2558 = vpack.c.b16 %v2555, %v2554
      %v2559 = vpack.c.b16 %v2557, %v2556
      %v2563 = vsel %vm1379, %v2536, 0
      %2565 = vmatprep.subr.bf16.mxu0 0
      %2566 = vmatpush1.bf16.msra.mxu0 %v2558
      %2567 = vmatprep.subr.bf16.mxu0 0
      %2568 = vmatpush1.bf16.msra.mxu0 %v2559
      %2569 = vmatprep.subr.bf16.mxu0 0
      %2570 = vmatpush1.bf16.msra.mxu0 0
      %2571 = vmatprep.subr.bf16.mxu0 0
      %2572 = vmatpush1.bf16.msra.mxu0 0
      %2573 = vmatprep.subr.bf16.mxu0 0
      %2574 = vmatpush1.bf16.msra.mxu0 0
      %2575 = vmatprep.subr.bf16.mxu0 0
      %2576 = vmatpush1.bf16.msra.mxu0 0
      %2577 = vmatprep.subr.bf16.mxu0 0
      %2578 = vmatpush1.bf16.msra.mxu0 0
      %2579 = vmatprep.subr.bf16.mxu0 0
      %2580 = vmatpush1.bf16.msra.mxu0 0
      %2581 = vmatprep.subr.bf16.mxu0 0
      %2582 = vmatpush1.bf16.msra.mxu0 0
      %2583 = vmatprep.subr.bf16.mxu0 0
      %2584 = vmatpush1.bf16.msra.mxu0 0
      %2585 = vmatprep.subr.bf16.mxu0 0
      %2586 = vmatpush1.bf16.msra.mxu0 0
      %2587 = vmatprep.subr.bf16.mxu0 0
      %2588 = vmatpush1.bf16.msra.mxu0 0
      %2589 = vmatprep.subr.bf16.mxu0 0
      %2590 = vmatpush1.bf16.msra.mxu0 0
      %2591 = vmatprep.subr.bf16.mxu0 0
      %2592 = vmatpush1.bf16.msra.mxu0 0
      %2593 = vmatprep.subr.bf16.mxu0 0
      %2594 = vmatpush1.bf16.msra.mxu0 0
      %2595 = vmatprep.subr.bf16.mxu0 0
      %2596 = vmatpush1.bf16.msra.mxu0 0
      %2597 = vmatprep.mubr.bf16.mxu0 0
      %2598 = vmatmul.mubr.bf16.gmra.mrb[0].mxu0 %v2563
      %v2599 = vpop.f32.mrb[0].mxu0
      %v2600 = vadd.f32 %v2548, %v2599
      %v2601 = vpop.f32.mrb[0].mxu0
      %v2602 = vpop.f32.mrb[0].mxu0
      %v2603 = vadd.f32 %v2548, %v2602
      %v2604 = vpop.f32.mrb[0].mxu0
      %2605 = vdwg.mxu0
      %v2606 = vsub.f32 0.0, %v2600
      %v2607 = vsub.f32 0.0, %v2603
      %v2608 = vmul.f32 %v2606, 1.442695
      %v2609 = vpow.pop %v2608
      %v2610 = vmul.f32 %v2607, 1.442695
      %v2611 = vpow.pop %v2610
      %v2612 = vadd.f32 %v2609, 1.0
      %v2613 = vadd.f32 %v2611, 1.0
      %v2614 = vrcp.pop %v2612
      %v2615 = vmul.f32 %v2600, %v2614
      %v2616 = vrcp.pop %v2613
      %v2617 = vmul.f32 %v2603, %v2616
      %v2618 = vadd.f32 %v2454, %v2615
      %v2619 = vadd.f32 %v2455, %v2617
      %v2620 = vpack.c.bf16 %v2619, %v2618
      %s2621 = scalar_lea.vmem %s1077, 32
      %v2622 = vld [vmem:[%s2621] sm:$0xf]
      %v2623 = vld [vmem:[%s2621 + $0x4] sm:$0xf]
      %v2624 = vld [vmem:[%s2621 + $0x8] sm:$0xf]
      %v2625 = vld [vmem:[%s2621 + $0xc] sm:$0xf]
      %s2626 = scalar_lea.vmem %s1081, 2
      %v2627 = vld [vmem:[%s2626] sm:$0x1]
      %v2629 = vlaneseq
      %v2630 = vshrl.u32 %v2629, 7
      %v2631 = vsub.s32 0, %v2630
      %v2632 = vrot.slane %v2627, %v2631
      %v2638 = vunpack.c.l.b16 %v2622
      %v2639 = vunpack.c.l.b16 %v2623
      %v2640 = vunpack.c.l.b16 %v2624
      %v2641 = vunpack.c.l.b16 %v2625
      %v2642 = vpack.c.b16 %v2639, %v2638
      %v2643 = vpack.c.b16 %v2641, %v2640
      %v2647 = vsel %vm1379, %v2620, 0
      %2649 = vmatprep.subr.bf16.mxu0 0
      %2650 = vmatpush1.bf16.msra.mxu0 %v2642
      %2651 = vmatprep.subr.bf16.mxu0 0
      %2652 = vmatpush1.bf16.msra.mxu0 %v2643
      %2653 = vmatprep.subr.bf16.mxu0 0
      %2654 = vmatpush1.bf16.msra.mxu0 0
      %2655 = vmatprep.subr.bf16.mxu0 0
      %2656 = vmatpush1.bf16.msra.mxu0 0
      %2657 = vmatprep.subr.bf16.mxu0 0
      %2658 = vmatpush1.bf16.msra.mxu0 0
      %2659 = vmatprep.subr.bf16.mxu0 0
      %2660 = vmatpush1.bf16.msra.mxu0 0
      %2661 = vmatprep.subr.bf16.mxu0 0
      %2662 = vmatpush1.bf16.msra.mxu0 0
      %2663 = vmatprep.subr.bf16.mxu0 0
      %2664 = vmatpush1.bf16.msra.mxu0 0
      %2665 = vmatprep.subr.bf16.mxu0 0
      %2666 = vmatpush1.bf16.msra.mxu0 0
      %2667 = vmatprep.subr.bf16.mxu0 0
      %2668 = vmatpush1.bf16.msra.mxu0 0
      %2669 = vmatprep.subr.bf16.mxu0 0
      %2670 = vmatpush1.bf16.msra.mxu0 0
      %2671 = vmatprep.subr.bf16.mxu0 0
      %2672 = vmatpush1.bf16.msra.mxu0 0
      %2673 = vmatprep.subr.bf16.mxu0 0
      %2674 = vmatpush1.bf16.msra.mxu0 0
      %2675 = vmatprep.subr.bf16.mxu0 0
      %2676 = vmatpush1.bf16.msra.mxu0 0
      %2677 = vmatprep.subr.bf16.mxu0 0
      %2678 = vmatpush1.bf16.msra.mxu0 0
      %2679 = vmatprep.subr.bf16.mxu0 0
      %2680 = vmatpush1.bf16.msra.mxu0 0
      %2681 = vmatprep.mubr.bf16.mxu0 0
      %2682 = vmatmul.mubr.bf16.gmra.mrb[0].mxu0 %v2647
      %v2683 = vpop.f32.mrb[0].mxu0
      %v2684 = vadd.f32 %v2632, %v2683
      %v2685 = vpop.f32.mrb[0].mxu0
      %v2686 = vpop.f32.mrb[0].mxu0
      %v2687 = vadd.f32 %v2632, %v2686
      %v2688 = vpop.f32.mrb[0].mxu0
      %2689 = vdwg.mxu0
      %v2690 = vsub.f32 0.0, %v2684
      %v2691 = vsub.f32 0.0, %v2687
      %v2692 = vmul.f32 %v2690, 1.442695
      %v2693 = vpow.pop %v2692
      %v2694 = vmul.f32 %v2691, 1.442695
      %v2695 = vpow.pop %v2694
      %v2696 = vadd.f32 %v2693, 1.0
      %v2697 = vadd.f32 %v2695, 1.0
      %v2698 = vrcp.pop %v2696
      %v2699 = vmul.f32 %v2684, %v2698
      %v2700 = vrcp.pop %v2697
      %v2701 = vmul.f32 %v2687, %v2700
      %v2702 = vadd.f32 %v2699, %v1348
      %v2703 = vadd.f32 %v2701, %v1349
      %v2704 = vpack.c.bf16 %v2703, %v2702
      %s2705 = scalar_lea.vmem %s1077, 48
      %v2706 = vld [vmem:[%s2705] sm:$0xf]
      %v2707 = vld [vmem:[%s2705 + $0x4] sm:$0xf]
      %v2708 = vld [vmem:[%s2705 + $0x8] sm:$0xf]
      %v2709 = vld [vmem:[%s2705 + $0xc] sm:$0xf]
      %s2710 = scalar_lea.vmem %s1081, 3
      %v2711 = vld [vmem:[%s2710] sm:$0x1]
      %v2713 = vlaneseq
      %v2714 = vshrl.u32 %v2713, 7
      %v2715 = vsub.s32 0, %v2714
      %v2716 = vrot.slane %v2711, %v2715
      %v2722 = vunpack.c.l.b16 %v2706
      %v2723 = vunpack.c.l.b16 %v2707
      %v2724 = vunpack.c.l.b16 %v2708
      %v2725 = vunpack.c.l.b16 %v2709
      %v2726 = vpack.c.b16 %v2723, %v2722
      %v2727 = vpack.c.b16 %v2725, %v2724
      %v2731 = vsel %vm1379, %v2704, 0
      %2733 = vmatprep.subr.bf16.mxu0 0
      %2734 = vmatpush1.bf16.msra.mxu0 %v2726
      %2735 = vmatprep.subr.bf16.mxu0 0
      %2736 = vmatpush1.bf16.msra.mxu0 %v2727
      %2737 = vmatprep.subr.bf16.mxu0 0
      %2738 = vmatpush1.bf16.msra.mxu0 0
      %2739 = vmatprep.subr.bf16.mxu0 0
      %2740 = vmatpush1.bf16.msra.mxu0 0
      %2741 = vmatprep.subr.bf16.mxu0 0
      %2742 = vmatpush1.bf16.msra.mxu0 0
      %2743 = vmatprep.subr.bf16.mxu0 0
      %2744 = vmatpush1.bf16.msra.mxu0 0
      %2745 = vmatprep.subr.bf16.mxu0 0
      %2746 = vmatpush1.bf16.msra.mxu0 0
      %2747 = vmatprep.subr.bf16.mxu0 0
      %2748 = vmatpush1.bf16.msra.mxu0 0
      %2749 = vmatprep.subr.bf16.mxu0 0
      %2750 = vmatpush1.bf16.msra.mxu0 0
      %2751 = vmatprep.subr.bf16.mxu0 0
      %2752 = vmatpush1.bf16.msra.mxu0 0
      %2753 = vmatprep.subr.bf16.mxu0 0
      %2754 = vmatpush1.bf16.msra.mxu0 0
      %2755 = vmatprep.subr.bf16.mxu0 0
      %2756 = vmatpush1.bf16.msra.mxu0 0
      %2757 = vmatprep.subr.bf16.mxu0 0
      %2758 = vmatpush1.bf16.msra.mxu0 0
      %2759 = vmatprep.subr.bf16.mxu0 0
      %2760 = vmatpush1.bf16.msra.mxu0 0
      %2761 = vmatprep.subr.bf16.mxu0 0
      %2762 = vmatpush1.bf16.msra.mxu0 0
      %2763 = vmatprep.subr.bf16.mxu0 0
      %2764 = vmatpush1.bf16.msra.mxu0 0
      %2765 = vmatprep.mubr.bf16.mxu0 0
      %2766 = vmatmul.mubr.bf16.gmra.mrb[0].mxu0 %v2731
      %v2767 = vpop.f32.mrb[0].mxu0
      %v2768 = vadd.f32 %v2716, %v2767
      %v2769 = vpop.f32.mrb[0].mxu0
      %v2770 = vpop.f32.mrb[0].mxu0
      %v2771 = vadd.f32 %v2716, %v2770
      %v2772 = vpop.f32.mrb[0].mxu0
      %2773 = vdwg.mxu0
      %v2774 = vsub.f32 0.0, %v2768
      %v2775 = vsub.f32 0.0, %v2771
      %v2776 = vmul.f32 %v2774, 1.442695
      %v2777 = vpow.pop %v2776
      %v2778 = vmul.f32 %v2775, 1.442695
      %v2779 = vpow.pop %v2778
      %v2780 = vadd.f32 %v2777, 1.0
      %v2781 = vadd.f32 %v2779, 1.0
      %v2782 = vrcp.pop %v2780
      %v2783 = vmul.f32 %v2768, %v2782
      %v2784 = vrcp.pop %v2781
      %v2785 = vmul.f32 %v2771, %v2784
      %v2786 = vpack.c.bf16 %v2785, %v2783
      %s2787 = scalar_lea.vmem %s1077, 64
      %v2788 = vld [vmem:[%s2787] sm:$0xf]
      %v2789 = vld [vmem:[%s2787 + $0x4] sm:$0xf]
      %v2790 = vld [vmem:[%s2787 + $0x8] sm:$0xf]
      %v2791 = vld [vmem:[%s2787 + $0xc] sm:$0xf]
      %s2792 = scalar_lea.vmem %s1081, 4
      %v2793 = vld [vmem:[%s2792] sm:$0x1]
      %v2795 = vlaneseq
      %v2796 = vshrl.u32 %v2795, 7
      %v2797 = vsub.s32 0, %v2796
      %v2798 = vrot.slane %v2793, %v2797
      %v2804 = vunpack.c.l.b16 %v2788
      %v2805 = vunpack.c.l.b16 %v2789
      %v2806 = vunpack.c.l.b16 %v2790
      %v2807 = vunpack.c.l.b16 %v2791
      %v2808 = vpack.c.b16 %v2805, %v2804
      %v2809 = vpack.c.b16 %v2807, %v2806
      %v2813 = vsel %vm1379, %v2786, 0
      %2815 = vmatprep.subr.bf16.mxu0 0
      %2816 = vmatpush1.bf16.msra.mxu0 %v2808
      %2817 = vmatprep.subr.bf16.mxu0 0
      %2818 = vmatpush1.bf16.msra.mxu0 %v2809
      %2819 = vmatprep.subr.bf16.mxu0 0
      %2820 = vmatpush1.bf16.msra.mxu0 0
      %2821 = vmatprep.subr.bf16.mxu0 0
      %2822 = vmatpush1.bf16.msra.mxu0 0
      %2823 = vmatprep.subr.bf16.mxu0 0
      %2824 = vmatpush1.bf16.msra.mxu0 0
      %2825 = vmatprep.subr.bf16.mxu0 0
      %2826 = vmatpush1.bf16.msra.mxu0 0
      %2827 = vmatprep.subr.bf16.mxu0 0
      %2828 = vmatpush1.bf16.msra.mxu0 0
      %2829 = vmatprep.subr.bf16.mxu0 0
      %2830 = vmatpush1.bf16.msra.mxu0 0
      %2831 = vmatprep.subr.bf16.mxu0 0
      %2832 = vmatpush1.bf16.msra.mxu0 0
      %2833 = vmatprep.subr.bf16.mxu0 0
      %2834 = vmatpush1.bf16.msra.mxu0 0
      %2835 = vmatprep.subr.bf16.mxu0 0
      %2836 = vmatpush1.bf16.msra.mxu0 0
      %2837 = vmatprep.subr.bf16.mxu0 0
      %2838 = vmatpush1.bf16.msra.mxu0 0
      %2839 = vmatprep.subr.bf16.mxu0 0
      %2840 = vmatpush1.bf16.msra.mxu0 0
      %2841 = vmatprep.subr.bf16.mxu0 0
      %2842 = vmatpush1.bf16.msra.mxu0 0
      %2843 = vmatprep.subr.bf16.mxu0 0
      %2844 = vmatpush1.bf16.msra.mxu0 0
      %2845 = vmatprep.subr.bf16.mxu0 0
      %2846 = vmatpush1.bf16.msra.mxu0 0
      %2847 = vmatprep.mubr.bf16.mxu0 0
      %2848 = vmatmul.mubr.bf16.gmra.mrb[0].mxu0 %v2813
      %v2849 = vpop.f32.mrb[0].mxu0
      %v2850 = vadd.f32 %v2798, %v2849
      %v2851 = vpop.f32.mrb[0].mxu0
      %v2852 = vpop.f32.mrb[0].mxu0
      %v2853 = vadd.f32 %v2798, %v2852
      %v2854 = vpop.f32.mrb[0].mxu0
      %2855 = vdwg.mxu0
      %v2856 = vsub.f32 0.0, %v2850
      %v2857 = vsub.f32 0.0, %v2853
      %v2858 = vmul.f32 %v2856, 1.442695
      %v2859 = vpow.pop %v2858
      %v2860 = vmul.f32 %v2857, 1.442695
      %v2861 = vpow.pop %v2860
      %v2862 = vadd.f32 %v2859, 1.0
      %v2863 = vadd.f32 %v2861, 1.0
      %v2864 = vrcp.pop %v2862
      %v2865 = vmul.f32 %v2850, %v2864
      %v2866 = vrcp.pop %v2863
      %v2867 = vmul.f32 %v2853, %v2866
      %v2868 = vadd.f32 %v2702, %v2865
      %v2869 = vadd.f32 %v2703, %v2867
      %v2870 = vpack.c.bf16 %v2869, %v2868
      %s2871 = scalar_lea.vmem %s1077, 80
      %v2872 = vld [vmem:[%s2871] sm:$0xf]
      %v2873 = vld [vmem:[%s2871 + $0x4] sm:$0xf]
      %v2874 = vld [vmem:[%s2871 + $0x8] sm:$0xf]
      %v2875 = vld [vmem:[%s2871 + $0xc] sm:$0xf]
      %s2876 = scalar_lea.vmem %s1081, 5
      %v2877 = vld [vmem:[%s2876] sm:$0x1]
      %v2879 = vlaneseq
      %v2880 = vshrl.u32 %v2879, 7
      %v2881 = vsub.s32 0, %v2880
      %v2882 = vrot.slane %v2877, %v2881
      %v2888 = vunpack.c.l.b16 %v2872
      %v2889 = vunpack.c.l.b16 %v2873
      %v2890 = vunpack.c.l.b16 %v2874
      %v2891 = vunpack.c.l.b16 %v2875
      %v2892 = vpack.c.b16 %v2889, %v2888
      %v2893 = vpack.c.b16 %v2891, %v2890
      %v2897 = vsel %vm1379, %v2870, 0
      %2899 = vmatprep.subr.bf16.mxu0 0
      %2900 = vmatpush1.bf16.msra.mxu0 %v2892
      %2901 = vmatprep.subr.bf16.mxu0 0
      %2902 = vmatpush1.bf16.msra.mxu0 %v2893
      %2903 = vmatprep.subr.bf16.mxu0 0
      %2904 = vmatpush1.bf16.msra.mxu0 0
      %2905 = vmatprep.subr.bf16.mxu0 0
      %2906 = vmatpush1.bf16.msra.mxu0 0
      %2907 = vmatprep.subr.bf16.mxu0 0
      %2908 = vmatpush1.bf16.msra.mxu0 0
      %2909 = vmatprep.subr.bf16.mxu0 0
      %2910 = vmatpush1.bf16.msra.mxu0 0
      %2911 = vmatprep.subr.bf16.mxu0 0
      %2912 = vmatpush1.bf16.msra.mxu0 0
      %2913 = vmatprep.subr.bf16.mxu0 0
      %2914 = vmatpush1.bf16.msra.mxu0 0
      %2915 = vmatprep.subr.bf16.mxu0 0
      %2916 = vmatpush1.bf16.msra.mxu0 0
      %2917 = vmatprep.subr.bf16.mxu0 0
      %2918 = vmatpush1.bf16.msra.mxu0 0
      %2919 = vmatprep.subr.bf16.mxu0 0
      %2920 = vmatpush1.bf16.msra.mxu0 0
      %2921 = vmatprep.subr.bf16.mxu0 0
      %2922 = vmatpush1.bf16.msra.mxu0 0
      %2923 = vmatprep.subr.bf16.mxu0 0
      %2924 = vmatpush1.bf16.msra.mxu0 0
      %2925 = vmatprep.subr.bf16.mxu0 0
      %2926 = vmatpush1.bf16.msra.mxu0 0
      %2927 = vmatprep.subr.bf16.mxu0 0
      %2928 = vmatpush1.bf16.msra.mxu0 0
      %2929 = vmatprep.subr.bf16.mxu0 0
      %2930 = vmatpush1.bf16.msra.mxu0 0
      %2931 = vmatprep.mubr.bf16.mxu0 0
      %2932 = vmatmul.mubr.bf16.gmra.mrb[0].mxu0 %v2897
      %v2933 = vpop.f32.mrb[0].mxu0
      %v2934 = vadd.f32 %v2882, %v2933
      %v2935 = vpop.f32.mrb[0].mxu0
      %v2936 = vpop.f32.mrb[0].mxu0
      %v2937 = vadd.f32 %v2882, %v2936
      %v2938 = vpop.f32.mrb[0].mxu0
      %2939 = vdwg.mxu0
      %v2940 = vsub.f32 0.0, %v2934
      %v2941 = vsub.f32 0.0, %v2937
      %v2942 = vmul.f32 %v2940, 1.442695
      %v2943 = vpow.pop %v2942
      %v2944 = vmul.f32 %v2941, 1.442695
      %v2945 = vpow.pop %v2944
      %v2946 = vadd.f32 %v2943, 1.0
      %v2947 = vadd.f32 %v2945, 1.0
      %v2948 = vrcp.pop %v2946
      %v2949 = vmul.f32 %v2934, %v2948
      %v2950 = vrcp.pop %v2947
      %v2951 = vmul.f32 %v2937, %v2950
      %v2952 = vpack.c.bf16 %v2951, %v2949
      %s2953 = scalar_lea.vmem %s1077, 96
      %v2954 = vld [vmem:[%s2953] sm:$0xf]
      %v2955 = vld [vmem:[%s2953 + $0x4] sm:$0xf]
      %v2956 = vld [vmem:[%s2953 + $0x8] sm:$0xf]
      %v2957 = vld [vmem:[%s2953 + $0xc] sm:$0xf]
      %s2958 = scalar_lea.vmem %s1081, 6
      %v2959 = vld [vmem:[%s2958] sm:$0x1]
      %v2961 = vlaneseq
      %v2962 = vshrl.u32 %v2961, 7
      %v2963 = vsub.s32 0, %v2962
      %v2964 = vrot.slane %v2959, %v2963
      %v2970 = vunpack.c.l.b16 %v2954
      %v2971 = vunpack.c.l.b16 %v2955
      %v2972 = vunpack.c.l.b16 %v2956
      %v2973 = vunpack.c.l.b16 %v2957
      %v2974 = vpack.c.b16 %v2971, %v2970
      %v2975 = vpack.c.b16 %v2973, %v2972
      %v2979 = vsel %vm1379, %v2952, 0
      %2981 = vmatprep.subr.bf16.mxu0 0
      %2982 = vmatpush1.bf16.msra.mxu0 %v2974
      %2983 = vmatprep.subr.bf16.mxu0 0
      %2984 = vmatpush1.bf16.msra.mxu0 %v2975
      %2985 = vmatprep.subr.bf16.mxu0 0
      %2986 = vmatpush1.bf16.msra.mxu0 0
      %2987 = vmatprep.subr.bf16.mxu0 0
      %2988 = vmatpush1.bf16.msra.mxu0 0
      %2989 = vmatprep.subr.bf16.mxu0 0
      %2990 = vmatpush1.bf16.msra.mxu0 0
      %2991 = vmatprep.subr.bf16.mxu0 0
      %2992 = vmatpush1.bf16.msra.mxu0 0
      %2993 = vmatprep.subr.bf16.mxu0 0
      %2994 = vmatpush1.bf16.msra.mxu0 0
      %2995 = vmatprep.subr.bf16.mxu0 0
      %2996 = vmatpush1.bf16.msra.mxu0 0
      %2997 = vmatprep.subr.bf16.mxu0 0
      %2998 = vmatpush1.bf16.msra.mxu0 0
      %2999 = vmatprep.subr.bf16.mxu0 0
      %3000 = vmatpush1.bf16.msra.mxu0 0
      %3001 = vmatprep.subr.bf16.mxu0 0
      %3002 = vmatpush1.bf16.msra.mxu0 0
      %3003 = vmatprep.subr.bf16.mxu0 0
      %3004 = vmatpush1.bf16.msra.mxu0 0
      %3005 = vmatprep.subr.bf16.mxu0 0
      %3006 = vmatpush1.bf16.msra.mxu0 0
      %3007 = vmatprep.subr.bf16.mxu0 0
      %3008 = vmatpush1.bf16.msra.mxu0 0
      %3009 = vmatprep.subr.bf16.mxu0 0
      %3010 = vmatpush1.bf16.msra.mxu0 0
      %3011 = vmatprep.subr.bf16.mxu0 0
      %3012 = vmatpush1.bf16.msra.mxu0 0
      %3013 = vmatprep.mubr.bf16.mxu0 0
      %3014 = vmatmul.mubr.bf16.gmra.mrb[0].mxu0 %v2979
      %v3015 = vpop.f32.mrb[0].mxu0
      %v3016 = vadd.f32 %v2964, %v3015
      %v3017 = vpop.f32.mrb[0].mxu0
      %v3018 = vpop.f32.mrb[0].mxu0
      %v3019 = vadd.f32 %v2964, %v3018
      %v3020 = vpop.f32.mrb[0].mxu0
      %3021 = vdwg.mxu0
      %v3022 = vsub.f32 0.0, %v3016
      %v3023 = vsub.f32 0.0, %v3019
      %v3024 = vmul.f32 %v3022, 1.442695
      %v3025 = vpow.pop %v3024
      %v3026 = vmul.f32 %v3023, 1.442695
      %v3027 = vpow.pop %v3026
      %v3028 = vadd.f32 %v3025, 1.0
      %v3029 = vadd.f32 %v3027, 1.0
      %v3030 = vrcp.pop %v3028
      %v3031 = vmul.f32 %v3016, %v3030
      %v3032 = vrcp.pop %v3029
      %v3033 = vmul.f32 %v3019, %v3032
      %v3034 = vadd.f32 %v2868, %v3031
      %v3035 = vadd.f32 %v2869, %v3033
      %3036 = vst.msk [vmem:[#allocation3] sm:$0xff] %vm1379, %v3034
      %3037 = vst.msk [vmem:[#allocation3 + $0x8] sm:$0xff] %vm1379, %v3035
      %p3038 = scmp.eq.s32.totalorder %s78, 1
      // Predicated region
      $region153: #{sbf_transformer_global_forward.1} parent=147 // pred_check
        %p3039 = pneg %p3038
      $region154: #{sbf_transformer_global_forward.1} parent=147 // pred_check_branch
        %3041 = sbr.rel (%p3039) target = $region156
      $region155: #{sbf_transformer_global_forward.1} parent=147 // pred_region
        %v3042 = vpack.c.bf16 %v3035, %v3034
        %v3043 = vld [vmem:[%s49] sm:$0xf]
        %v3044 = vld [vmem:[%s49 + $0x4] sm:$0xf]
        %v3045 = vld [vmem:[%s49 + $0x8] sm:$0xf]
        %v3046 = vld [vmem:[%s49 + $0xc] sm:$0xf]
        %v3047 = vld [vmem:[%s51] sm:$0x1]
        %v3049 = vlaneseq
        %v3050 = vshrl.u32 %v3049, 7
        %v3051 = vsub.s32 0, %v3050
        %v3052 = vrot.slane %v3047, %v3051
        %v3058 = vunpack.c.l.b16 %v3043
        %v3059 = vunpack.c.l.b16 %v3044
        %v3060 = vunpack.c.l.b16 %v3045
        %v3061 = vunpack.c.l.b16 %v3046
        %v3062 = vpack.c.b16 %v3059, %v3058
        %v3063 = vpack.c.b16 %v3061, %v3060
        %v3067 = vsel %vm1379, %v3042, 0
        %3069 = vmatprep.subr.bf16.mxu0 0
        %3070 = vmatpush1.bf16.msra.mxu0 %v3062
        %3071 = vmatprep.subr.bf16.mxu0 0
        %3072 = vmatpush1.bf16.msra.mxu0 %v3063
        %3073 = vmatprep.subr.bf16.mxu0 0
        %3074 = vmatpush1.bf16.msra.mxu0 0
        %3075 = vmatprep.subr.bf16.mxu0 0
        %3076 = vmatpush1.bf16.msra.mxu0 0
        %3077 = vmatprep.subr.bf16.mxu0 0
        %3078 = vmatpush1.bf16.msra.mxu0 0
        %3079 = vmatprep.subr.bf16.mxu0 0
        %3080 = vmatpush1.bf16.msra.mxu0 0
        %3081 = vmatprep.subr.bf16.mxu0 0
        %3082 = vmatpush1.bf16.msra.mxu0 0
        %3083 = vmatprep.subr.bf16.mxu0 0
        %3084 = vmatpush1.bf16.msra.mxu0 0
        %3085 = vmatprep.subr.bf16.mxu0 0
        %3086 = vmatpush1.bf16.msra.mxu0 0
        %3087 = vmatprep.subr.bf16.mxu0 0
        %3088 = vmatpush1.bf16.msra.mxu0 0
        %3089 = vmatprep.subr.bf16.mxu0 0
        %3090 = vmatpush1.bf16.msra.mxu0 0
        %3091 = vmatprep.subr.bf16.mxu0 0
        %3092 = vmatpush1.bf16.msra.mxu0 0
        %3093 = vmatprep.subr.bf16.mxu0 0
        %3094 = vmatpush1.bf16.msra.mxu0 0
        %3095 = vmatprep.subr.bf16.mxu0 0
        %3096 = vmatpush1.bf16.msra.mxu0 0
        %3097 = vmatprep.subr.bf16.mxu0 0
        %3098 = vmatpush1.bf16.msra.mxu0 0
        %3099 = vmatprep.subr.bf16.mxu0 0
        %3100 = vmatpush1.bf16.msra.mxu0 0
        %3101 = vmatprep.mubr.bf16.mxu0 0
        %3102 = vmatmul.mubr.bf16.gmra.mrb[0].mxu0 %v3067
        %v3103 = vpop.f32.mrb[0].mxu0
        %v3104 = vadd.f32 %v3052, %v3103
        %v3105 = vpop.f32.mrb[0].mxu0
        %v3106 = vpop.f32.mrb[0].mxu0
        %v3107 = vadd.f32 %v3052, %v3106
        %v3108 = vpop.f32.mrb[0].mxu0
        %3109 = vdwg.mxu0
        %v3110 = vsub.f32 0.0, %v3104
        %v3111 = vsub.f32 0.0, %v3107
        %v3112 = vmul.f32 %v3110, 1.442695
        %v3113 = vpow.pop %v3112
        %v3114 = vmul.f32 %v3111, 1.442695
        %v3115 = vpow.pop %v3114
        %v3116 = vadd.f32 %v3113, 1.0
        %v3117 = vadd.f32 %v3115, 1.0
        %v3118 = vrcp.pop %v3116
        %v3119 = vmul.f32 %v3104, %v3118
        %v3120 = vrcp.pop %v3117
        %v3121 = vmul.f32 %v3107, %v3120
        %v3122 = vld [vmem:[%s7] sm:$0xf]
        %v3123 = vld [vmem:[%s7 + $0x4] sm:$0xf]
        %v3124 = vld [vmem:[%s53] sm:$0xf]
        %v3127 = vunpack.c.l.b16 %v3122
        %v3128 = vunpack.c.l.b16 %v3123
        %v3129 = vpack.c.b16 %v3128, %v3127
        %v3131 = vsel %vm2050, %v3129, 0
        %v3134 = vsel %vm1983, %v3124, 0
        %3136 = vmatprep.subr.bf16.mxu0 0
        %3137 = vmatpush1.bf16.msra.mxu0 %v3134
        %3138 = vmatprep.subr.bf16.mxu0 0
        %3139 = vmatpush1.bf16.msra.mxu0 0
        %3140 = vmatprep.subr.bf16.mxu0 0
        %3141 = vmatpush1.bf16.msra.mxu0 0
        %3142 = vmatprep.subr.bf16.mxu0 0
        %3143 = vmatpush1.bf16.msra.mxu0 0
        %3144 = vmatprep.subr.bf16.mxu0 0
        %3145 = vmatpush1.bf16.msra.mxu0 0
        %3146 = vmatprep.subr.bf16.mxu0 0
        %3147 = vmatpush1.bf16.msra.mxu0 0
        %3148 = vmatprep.subr.bf16.mxu0 0
        %3149 = vmatpush1.bf16.msra.mxu0 0
        %3150 = vmatprep.subr.bf16.mxu0 0
        %3151 = vmatpush1.bf16.msra.mxu0 0
        %3152 = vmatprep.subr.bf16.mxu0 0
        %3153 = vmatpush1.bf16.msra.mxu0 0
        %3154 = vmatprep.subr.bf16.mxu0 0
        %3155 = vmatpush1.bf16.msra.mxu0 0
        %3156 = vmatprep.subr.bf16.mxu0 0
        %3157 = vmatpush1.bf16.msra.mxu0 0
        %3158 = vmatprep.subr.bf16.mxu0 0
        %3159 = vmatpush1.bf16.msra.mxu0 0
        %3160 = vmatprep.subr.bf16.mxu0 0
        %3161 = vmatpush1.bf16.msra.mxu0 0
        %3162 = vmatprep.subr.bf16.mxu0 0
        %3163 = vmatpush1.bf16.msra.mxu0 0
        %3164 = vmatprep.subr.bf16.mxu0 0
        %3165 = vmatpush1.bf16.msra.mxu0 0
        %3166 = vmatprep.subr.bf16.mxu0 0
        %3167 = vmatpush1.bf16.msra.mxu0 0
        %3168 = vmatprep.mubr.bf16.mxu0 0
        %3169 = vmatmul.mubr.bf16.gmra.mrb[0].mxu0 %v3131
        %v3170 = vpop.f32.mrb[0].mxu0
        %v3171 = vadd.f32 0.0, %v3170
        %v3172 = vpop.f32.mrb[0].mxu0
        %v3173 = vpop.f32.mrb[0].mxu0
        %v3174 = vadd.f32 0.0, %v3173
        %v3175 = vpop.f32.mrb[0].mxu0
        %3176 = vdwg.mxu0
        %v3177 = vadd.f32 %v3119, %v3171
        %v3178 = vadd.f32 %v3121, %v3174
        %v3179 = vld [vmem:[%s55] sm:$0x1]
        %v3181 = vlaneseq
        %v3182 = vshrl.u32 %v3181, 7
        %v3183 = vsub.s32 0, %v3182
        %v3184 = vrot.slane %v3179, %v3183
        %v3186 = vadd.f32 %v3177, %v3184
        %v3187 = vadd.f32 %v3178, %v3184
        %v3188 = vpack.c.bf16 %v3187, %v3186
        %v3189 = vld [vmem:[%s57] sm:$0xf]
        %v3190 = vld [vmem:[%s57 + $0x4] sm:$0xf]
        %v3191 = vld [vmem:[%s57 + $0x8] sm:$0xf]
        %v3192 = vld [vmem:[%s57 + $0xc] sm:$0xf]
        %v3193 = vld [vmem:[%s57 + $0x10] sm:$0xf]
        %v3194 = vld [vmem:[%s57 + $0x14] sm:$0xf]
        %v3195 = vld [vmem:[%s57 + $0x18] sm:$0xf]
        %v3196 = vld [vmem:[%s57 + $0x1c] sm:$0xf]
        %v3197 = vld [vmem:[%s59] sm:$0x1]
        %v3199 = vlaneseq
        %v3200 = vshrl.u32 %v3199, 7
        %v3201 = vsub.s32 0, %v3200
        %v3202 = vrot.slane %v3197, %v3201
        %v3212 = vunpack.c.l.b16 %v3189
        %v3213 = vunpack.c.l.b16 %v3190
        %v3214 = vunpack.c.l.b16 %v3191
        %v3215 = vunpack.c.l.b16 %v3192
        %v3216 = vunpack.c.l.b16 %v3193
        %v3217 = vunpack.c.l.b16 %v3194
        %v3218 = vunpack.c.l.b16 %v3195
        %v3219 = vunpack.c.l.b16 %v3196
        %v3220 = vpack.c.b16 %v3213, %v3212
        %v3221 = vpack.c.b16 %v3215, %v3214
        %v3222 = vpack.c.b16 %v3217, %v3216
        %v3223 = vpack.c.b16 %v3219, %v3218
        %vm3228 = vcmask 523264
        %v3230 = vsel %vm3228, %v3188, 0
        %3232 = vmatprep.subr.bf16.mxu0 0
        %3233 = vmatpush1.bf16.msra.mxu0 %v3220
        %3234 = vmatprep.subr.bf16.mxu0 0
        %3235 = vmatpush1.bf16.msra.mxu0 %v3221
        %3236 = vmatprep.subr.bf16.mxu0 0
        %3237 = vmatpush1.bf16.msra.mxu0 %v3222
        %3238 = vmatprep.subr.bf16.mxu0 0
        %3239 = vmatpush1.bf16.msra.mxu0 %v3223
        %3240 = vmatprep.subr.bf16.mxu0 0
        %3241 = vmatpush1.bf16.msra.mxu0 0
        %3242 = vmatprep.subr.bf16.mxu0 0
        %3243 = vmatpush1.bf16.msra.mxu0 0
        %3244 = vmatprep.subr.bf16.mxu0 0
        %3245 = vmatpush1.bf16.msra.mxu0 0
        %3246 = vmatprep.subr.bf16.mxu0 0
        %3247 = vmatpush1.bf16.msra.mxu0 0
        %3248 = vmatprep.subr.bf16.mxu0 0
        %3249 = vmatpush1.bf16.msra.mxu0 0
        %3250 = vmatprep.subr.bf16.mxu0 0
        %3251 = vmatpush1.bf16.msra.mxu0 0
        %3252 = vmatprep.subr.bf16.mxu0 0
        %3253 = vmatpush1.bf16.msra.mxu0 0
        %3254 = vmatprep.subr.bf16.mxu0 0
        %3255 = vmatpush1.bf16.msra.mxu0 0
        %3256 = vmatprep.subr.bf16.mxu0 0
        %3257 = vmatpush1.bf16.msra.mxu0 0
        %3258 = vmatprep.subr.bf16.mxu0 0
        %3259 = vmatpush1.bf16.msra.mxu0 0
        %3260 = vmatprep.subr.bf16.mxu0 0
        %3261 = vmatpush1.bf16.msra.mxu0 0
        %3262 = vmatprep.subr.bf16.mxu0 0
        %3263 = vmatpush1.bf16.msra.mxu0 0
        %3264 = vmatprep.mubr.bf16.mxu0 0
        %3265 = vmatmul.mubr.bf16.gmra.mrb[0].mxu0 %v3230
        %v3266 = vpop.f32.mrb[0].mxu0
        %v3267 = vadd.f32 %v3202, %v3266
        %v3268 = vpop.f32.mrb[0].mxu0
        %v3269 = vpop.f32.mrb[0].mxu0
        %v3270 = vadd.f32 %v3202, %v3269
        %v3271 = vpop.f32.mrb[0].mxu0
        %3272 = vdwg.mxu0
        %v3273 = vsub.f32 0.0, %v3267
        %v3274 = vsub.f32 0.0, %v3270
        %v3275 = vmul.f32 %v3273, 1.442695
        %v3276 = vpow.pop %v3275
        %v3277 = vmul.f32 %v3274, 1.442695
        %v3278 = vpow.pop %v3277
        %v3279 = vadd.f32 %v3276, 1.0
        %v3280 = vadd.f32 %v3278, 1.0
        %v3281 = vrcp.pop %v3279
        %v3282 = vmul.f32 %v3267, %v3281
        %v3283 = vrcp.pop %v3280
        %v3284 = vmul.f32 %v3270, %v3283
        %v3285 = vpack.c.bf16 %v3284, %v3282
        %s3286 = scalar_lea.vmem %s57, 32
        %v3287 = vld [vmem:[%s3286] sm:$0xf]
        %v3288 = vld [vmem:[%s3286 + $0x4] sm:$0xf]
        %v3289 = vld [vmem:[%s3286 + $0x8] sm:$0xf]
        %v3290 = vld [vmem:[%s3286 + $0xc] sm:$0xf]
        %v3291 = vld [vmem:[%s3286 + $0x10] sm:$0xf]
        %v3292 = vld [vmem:[%s3286 + $0x14] sm:$0xf]
        %v3293 = vld [vmem:[%s3286 + $0x18] sm:$0xf]
        %v3294 = vld [vmem:[%s3286 + $0x1c] sm:$0xf]
        %s3295 = scalar_lea.vmem %s59, 1
        %v3296 = vld [vmem:[%s3295] sm:$0x1]
        %v3298 = vlaneseq
        %v3299 = vshrl.u32 %v3298, 7
        %v3300 = vsub.s32 0, %v3299
        %v3301 = vrot.slane %v3296, %v3300
        %v3311 = vunpack.c.l.b16 %v3287
        %v3312 = vunpack.c.l.b16 %v3288
        %v3313 = vunpack.c.l.b16 %v3289
        %v3314 = vunpack.c.l.b16 %v3290
        %v3315 = vunpack.c.l.b16 %v3291
        %v3316 = vunpack.c.l.b16 %v3292
        %v3317 = vunpack.c.l.b16 %v3293
        %v3318 = vunpack.c.l.b16 %v3294
        %v3319 = vpack.c.b16 %v3312, %v3311
        %v3320 = vpack.c.b16 %v3314, %v3313
        %v3321 = vpack.c.b16 %v3316, %v3315
        %v3322 = vpack.c.b16 %v3318, %v3317
        %v3328 = vsel %vm3228, %v3285, 0
        %3330 = vmatprep.subr.bf16.mxu0 0
        %3331 = vmatpush1.bf16.msra.mxu0 %v3319
        %3332 = vmatprep.subr.bf16.mxu0 0
        %3333 = vmatpush1.bf16.msra.mxu0 %v3320
        %3334 = vmatprep.subr.bf16.mxu0 0
        %3335 = vmatpush1.bf16.msra.mxu0 %v3321
        %3336 = vmatprep.subr.bf16.mxu0 0
        %3337 = vmatpush1.bf16.msra.mxu0 %v3322
        %3338 = vmatprep.subr.bf16.mxu0 0
        %3339 = vmatpush1.bf16.msra.mxu0 0
        %3340 = vmatprep.subr.bf16.mxu0 0
        %3341 = vmatpush1.bf16.msra.mxu0 0
        %3342 = vmatprep.subr.bf16.mxu0 0
        %3343 = vmatpush1.bf16.msra.mxu0 0
        %3344 = vmatprep.subr.bf16.mxu0 0
        %3345 = vmatpush1.bf16.msra.mxu0 0
        %3346 = vmatprep.subr.bf16.mxu0 0
        %3347 = vmatpush1.bf16.msra.mxu0 0
        %3348 = vmatprep.subr.bf16.mxu0 0
        %3349 = vmatpush1.bf16.msra.mxu0 0
        %3350 = vmatprep.subr.bf16.mxu0 0
        %3351 = vmatpush1.bf16.msra.mxu0 0
        %3352 = vmatprep.subr.bf16.mxu0 0
        %3353 = vmatpush1.bf16.msra.mxu0 0
        %3354 = vmatprep.subr.bf16.mxu0 0
        %3355 = vmatpush1.bf16.msra.mxu0 0
        %3356 = vmatprep.subr.bf16.mxu0 0
        %3357 = vmatpush1.bf16.msra.mxu0 0
        %3358 = vmatprep.subr.bf16.mxu0 0
        %3359 = vmatpush1.bf16.msra.mxu0 0
        %3360 = vmatprep.subr.bf16.mxu0 0
        %3361 = vmatpush1.bf16.msra.mxu0 0
        %3362 = vmatprep.mubr.bf16.mxu0 0
        %3363 = vmatmul.mubr.bf16.gmra.mrb[0].mxu0 %v3328
        %v3364 = vpop.f32.mrb[0].mxu0
        %v3365 = vadd.f32 %v3301, %v3364
        %v3366 = vpop.f32.mrb[0].mxu0
        %v3367 = vpop.f32.mrb[0].mxu0
        %v3368 = vadd.f32 %v3301, %v3367
        %v3369 = vpop.f32.mrb[0].mxu0
        %3370 = vdwg.mxu0
        %v3371 = vsub.f32 0.0, %v3365
        %v3372 = vsub.f32 0.0, %v3368
        %v3373 = vmul.f32 %v3371, 1.442695
        %v3374 = vpow.pop %v3373
        %v3375 = vmul.f32 %v3372, 1.442695
        %v3376 = vpow.pop %v3375
        %v3377 = vadd.f32 %v3374, 1.0
        %v3378 = vadd.f32 %v3376, 1.0
        %v3379 = vrcp.pop %v3377
        %v3380 = vmul.f32 %v3365, %v3379
        %v3381 = vrcp.pop %v3378
        %v3382 = vmul.f32 %v3368, %v3381
        %v3383 = vpack.c.bf16 %v3382, %v3380
        %v3384 = vld [vmem:[%s61] sm:$0xf]
        %v3385 = vld [vmem:[%s61 + $0x4] sm:$0xf]
        %v3386 = vld [vmem:[%s61 + $0x8] sm:$0xf]
        %v3387 = vld [vmem:[%s61 + $0xc] sm:$0xf]
        %v3388 = vld [vmem:[%s61 + $0x10] sm:$0xf]
        %v3389 = vld [vmem:[%s61 + $0x14] sm:$0xf]
        %v3390 = vld [vmem:[%s61 + $0x18] sm:$0xf]
        %v3391 = vld [vmem:[%s61 + $0x1c] sm:$0xf]
        %v3392 = vld [vmem:[#allocation5] sm:$0x1]
        %v3394 = vlaneseq
        %v3395 = vshrl.u32 %v3394, 7
        %v3396 = vsub.s32 0, %v3395
        %v3397 = vrot.slane %v3392, %v3396
        %v3407 = vunpack.c.l.b16 %v3384
        %v3408 = vunpack.c.l.b16 %v3385
        %v3409 = vunpack.c.l.b16 %v3386
        %v3410 = vunpack.c.l.b16 %v3387
        %v3411 = vunpack.c.l.b16 %v3388
        %v3412 = vunpack.c.l.b16 %v3389
        %v3413 = vunpack.c.l.b16 %v3390
        %v3414 = vunpack.c.l.b16 %v3391
        %v3415 = vpack.c.b16 %v3408, %v3407
        %v3416 = vpack.c.b16 %v3410, %v3409
        %v3417 = vpack.c.b16 %v3412, %v3411
        %v3418 = vpack.c.b16 %v3414, %v3413
        %v3424 = vsel %vm3228, %v3383, 0
        %3426 = vmatprep.subr.bf16.mxu0 0
        %3427 = vmatpush1.bf16.msra.mxu0 %v3415
        %3428 = vmatprep.subr.bf16.mxu0 0
        %3429 = vmatpush1.bf16.msra.mxu0 %v3416
        %3430 = vmatprep.subr.bf16.mxu0 0
        %3431 = vmatpush1.bf16.msra.mxu0 %v3417
        %3432 = vmatprep.subr.bf16.mxu0 0
        %3433 = vmatpush1.bf16.msra.mxu0 %v3418
        %3434 = vmatprep.subr.bf16.mxu0 0
        %3435 = vmatpush1.bf16.msra.mxu0 0
        %3436 = vmatprep.subr.bf16.mxu0 0
        %3437 = vmatpush1.bf16.msra.mxu0 0
        %3438 = vmatprep.subr.bf16.mxu0 0
        %3439 = vmatpush1.bf16.msra.mxu0 0
        %3440 = vmatprep.subr.bf16.mxu0 0
        %3441 = vmatpush1.bf16.msra.mxu0 0
        %3442 = vmatprep.subr.bf16.mxu0 0
        %3443 = vmatpush1.bf16.msra.mxu0 0
        %3444 = vmatprep.subr.bf16.mxu0 0
        %3445 = vmatpush1.bf16.msra.mxu0 0
        %3446 = vmatprep.subr.bf16.mxu0 0
        %3447 = vmatpush1.bf16.msra.mxu0 0
        %3448 = vmatprep.subr.bf16.mxu0 0
        %3449 = vmatpush1.bf16.msra.mxu0 0
        %3450 = vmatprep.subr.bf16.mxu0 0
        %3451 = vmatpush1.bf16.msra.mxu0 0
        %3452 = vmatprep.subr.bf16.mxu0 0
        %3453 = vmatpush1.bf16.msra.mxu0 0
        %3454 = vmatprep.subr.bf16.mxu0 0
        %3455 = vmatpush1.bf16.msra.mxu0 0
        %3456 = vmatprep.subr.bf16.mxu0 0
        %3457 = vmatpush1.bf16.msra.mxu0 0
        %3458 = vmatprep.mubr.bf16.mxu0 0
        %3459 = vmatmul.mubr.bf16.gmra.mrb[0].mxu0 %v3424
        %v3460 = vpop.f32.mrb[0].mxu0
        %v3461 = vadd.f32 %v3397, %v3460
        %v3462 = vpop.f32.mrb[0].mxu0
        %v3463 = vpop.f32.mrb[0].mxu0
        %v3464 = vadd.f32 %v3397, %v3463
        %v3465 = vpop.f32.mrb[0].mxu0
        %3466 = vdwg.mxu0
        %v3467 = vld [vmem:[%s19] sm:$0x3]
        %v3469 = vsel %vm1537, %v3467, 0
        %3471 = vmatprep.subr.mxu0 0.0
        %3472 = vmatpush1.msra.mxu0 %v3461
        %3473 = vmatprep.subr.mxu0 0.0
        %3474 = vmatpush1.msra.mxu0 %v3464
        %3475 = vmatprep.subr.mxu0 0.0
        %3476 = vmatpush1.msra.mxu0 0.0
        %3477 = vmatprep.subr.mxu0 0.0
        %3478 = vmatpush1.msra.mxu0 0.0
        %3479 = vmatprep.subr.mxu0 0.0
        %3480 = vmatpush1.msra.mxu0 0.0
        %3481 = vmatprep.subr.mxu0 0.0
        %3482 = vmatpush1.msra.mxu0 0.0
        %3483 = vmatprep.subr.mxu0 0.0
        %3484 = vmatpush1.msra.mxu0 0.0
        %3485 = vmatprep.subr.mxu0 0.0
        %3486 = vmatpush1.msra.mxu0 0.0
        %3487 = vmatprep.subr.mxu0 0.0
        %3488 = vmatpush1.msra.mxu0 0.0
        %3489 = vmatprep.subr.mxu0 0.0
        %3490 = vmatpush1.msra.mxu0 0.0
        %3491 = vmatprep.subr.mxu0 0.0
        %3492 = vmatpush1.msra.mxu0 0.0
        %3493 = vmatprep.subr.mxu0 0.0
        %3494 = vmatpush1.msra.mxu0 0.0
        %3495 = vmatprep.subr.mxu0 0.0
        %3496 = vmatpush1.msra.mxu0 0.0
        %3497 = vmatprep.subr.mxu0 0.0
        %3498 = vmatpush1.msra.mxu0 0.0
        %3499 = vmatprep.subr.mxu0 0.0
        %3500 = vmatpush1.msra.mxu0 0.0
        %3501 = vmatprep.subr.mxu0 0.0
        %3502 = vmatpush1.msra.mxu0 0.0
        %3503 = vmatprep.subr.mxu0 0.0
        %3504 = vmatpush1.msra.mxu0 0.0
        %3505 = vmatprep.subr.mxu0 0.0
        %3506 = vmatpush1.msra.mxu0 0.0
        %3507 = vmatprep.subr.mxu0 0.0
        %3508 = vmatpush1.msra.mxu0 0.0
        %3509 = vmatprep.subr.mxu0 0.0
        %3510 = vmatpush1.msra.mxu0 0.0
        %3511 = vmatprep.subr.mxu0 0.0
        %3512 = vmatpush1.msra.mxu0 0.0
        %3513 = vmatprep.subr.mxu0 0.0
        %3514 = vmatpush1.msra.mxu0 0.0
        %3515 = vmatprep.subr.mxu0 0.0
        %3516 = vmatpush1.msra.mxu0 0.0
        %3517 = vmatprep.subr.mxu0 0.0
        %3518 = vmatpush1.msra.mxu0 0.0
        %3519 = vmatprep.subr.mxu0 0.0
        %3520 = vmatpush1.msra.mxu0 0.0
        %3521 = vmatprep.subr.mxu0 0.0
        %3522 = vmatpush1.msra.mxu0 0.0
        %3523 = vmatprep.subr.mxu0 0.0
        %3524 = vmatpush1.msra.mxu0 0.0
        %3525 = vmatprep.subr.mxu0 0.0
        %3526 = vmatpush1.msra.mxu0 0.0
        %3527 = vmatprep.subr.mxu0 0.0
        %3528 = vmatpush1.msra.mxu0 0.0
        %3529 = vmatprep.subr.mxu0 0.0
        %3530 = vmatpush1.msra.mxu0 0.0
        %3531 = vmatprep.subr.mxu0 0.0
        %3532 = vmatpush1.msra.mxu0 0.0
        %3533 = vmatprep.subr.mxu0 0.0
        %3534 = vmatpush1.msra.mxu0 0.0
        %3535 = vmatprep.mubr.f32.mxu0 0.0
        %3536 = vmatmul.mubr.f32.gmra.mrb[0].mxu0 %v3469
        %v3537 = vpop.f32.mrb[0].mxu0
        %v3538 = vadd.f32 0.0, %v3537
        %v3539 = vpop.f32.mrb[0].mxu0
        %3540 = vdwg.mxu0
        %v3541 = vld [vmem:[%s23] sm:$0x3]
        %v3542 = vmul.f32 %v3538, %v3541
        %vm3543 = vcmask 1024
        %3544 = vst.msk [vmem:[%s65] sm:$0x3] %vm3543, %v3542
      $region156: #{sbf_transformer_global_forward.1} parent=147 // pred_fallthru
        _
      // Predicated region
      $region157: #{sbf_transformer_global_forward.1} parent=147 // pred_check
        %p3545 = pneg %p798
      $region158: #{sbf_transformer_global_forward.1} parent=147 // pred_check_branch
        %3547 = sbr.rel (%p3545) target = $region160
      $region159: #{sbf_transformer_global_forward.1} parent=147 // pred_region
        _
      $region160: #{sbf_transformer_global_forward.1} parent=147 // pred_fallthru
        _
      // Predicated region
      $region161: #{sbf_transformer_global_forward.1} parent=147 // pred_check
        %p3548 = pneg %p798
      $region162: #{sbf_transformer_global_forward.1} parent=147 // pred_check_branch
        %3550 = sbr.rel (%p3548) target = $region164
      $region163: #{sbf_transformer_global_forward.1} parent=147 // pred_region
        _
      $region164: #{sbf_transformer_global_forward.1} parent=147 // pred_fallthru
        _
    $region148: #{sbf_transformer_global_forward.1} parent=5 // pred_fallthru
      _
    %p3551 = scmp.le.s32.totalorder 2, %s73
    // Predicated region
    $region165: #{sbf_transformer_global_forward.1} parent=5 // pred_check
      %p3552 = pneg %p3551
    $region166: #{sbf_transformer_global_forward.1} parent=5 // pred_check_branch
      %3554 = sbr.rel (%p3552) target = $region168
    $region167: #{sbf_transformer_global_forward.1} parent=5 // pred_region
      %s3555 = ssub.s32 %s73, 2
    $region168: #{sbf_transformer_global_forward.1} parent=5 // pred_fallthru
      _
  $region6: #{sbf_transformer_global_forward.1} parent=0 // loop_footer
    %s77 = sadd.s32 1, %s73
  $region7: #{sbf_transformer_global_forward.1} parent=0 // loop_footer_branch
    %72 = sbr.rel target = $region3
  $region8: #{sbf_transformer_global_forward.1} parent=0 // loop_exit
    _

</llo_original>
